<compile_context>
chip_gen: v5e
topology: v5e:2x2
jax: 0.10.0
libtpu: 0.0.40
codegen_flags: <defaults>
</compile_context>

<pallas_src>
import functools
import math

import jax
import jax.numpy as jnp
import numpy as np
from jax.experimental import pallas as pl
from jax.experimental.pallas import tpu as pltpu

CP = 128          # padded channel width (TPU lane count)
CIN_P = 8         # padded input-channel count (RGB 3 -> 8, sublane aligned)
K_IM2COL = 128    # 9 taps * CIN_P = 72 lanes, padded to a dense 128-lane contraction
_TAPS = tuple((dy, dx) for dy in range(3) for dx in range(3))

_BYTES_PER_ROW = 6144   # conservative VMEM bytes per flattened (., 128) row


def _round_up(x, m):
    return (x + m - 1) // m * m


# --------------------------------------------------------------------------- #
# Fused kernel.  Activations are (r_pad, 128) tiles: rows = flattened
# (TH+4, WI) spatial grid of one row-tile (2-pixel halo included), channels on
# the 128-lane axis.  `gg` guard rows around the depthwise buffer let every
# 3x3 tap be a static shifted slice (offset (dy-1)*WI + (dx-1)).
# --------------------------------------------------------------------------- #
def _fused_unet_kernel(mask_ref, xcol_ref, wstem_ref, bstem_ref, wexp_ref,
                       bexp_ref, wdw_ref, bdw_ref, wps_ref, wsc_ref, csc_ref,
                       o_ref, h2g_ref, *, wi, r_pad, gg):
    f32 = jnp.float32
    bf16 = jnp.bfloat16

    # ---- stem 3x3: one K=72 (lane-padded 128) bf16 MXU push, f32 accumulate --
    h1 = jnp.dot(xcol_ref[...], wstem_ref[...], preferred_element_type=f32)
    h1 = jnp.clip(h1 + bstem_ref[...], 0.0, 6.0)              # (r_pad, CP) f32
    h1b = h1.astype(bf16)

    # ---- expand 1x1 + ReLU6; mask zeros the halo ring (conv zero-padding) ----
    h2 = jnp.dot(h1b, wexp_ref[...], preferred_element_type=f32) + bexp_ref[...]
    h2 = jnp.clip(h2, 0.0, 6.0) * mask_ref[...]               # (r_pad, CP)

    # ---- depthwise 3x3 + ReLU6: taps = shifted slices of a guarded buffer ----
    # TODO(synk): bf16 VPU path here would help on v6e/v7x; kept f32 for v5e.
    h2g_ref[pl.ds(0, gg), :] = jnp.zeros((gg, CP), f32)
    h2g_ref[pl.ds(gg + r_pad, gg), :] = jnp.zeros((gg, CP), f32)
    h2g_ref[pl.ds(gg, r_pad), :] = h2
    acc = jnp.zeros((r_pad, CP), f32)
    for k, (dy, dx) in enumerate(_TAPS):
        off = (dy - 1) * wi + (dx - 1)
        acc = acc + h2g_ref[pl.ds(gg + off, r_pad), :] * wdw_ref[pl.ds(k, 1), :]
    h3 = jnp.clip(acc + bdw_ref[...], 0.0, 6.0)

    # ---- fused project 1x1 + residual + score 1x1: two skinny K=128 dots -----
    sc = jax.lax.dot_general(wps_ref[...], h3.astype(bf16),
                             dimension_numbers=(((1,), (1,)), ((), ())),
                             preferred_element_type=f32)       # (8, r_pad)
    sc = sc + jax.lax.dot_general(wsc_ref[...], h1b,
                                  dimension_numbers=(((1,), (1,)), ((), ())),
                                  preferred_element_type=f32)
    o_ref[...] = sc[0:1, :] + csc_ref[...]                     # (1, r_pad) lane-major


# --------------------------------------------------------------------------- #
# Host-side packing: pad channel axes to 128 lanes, fold the Wrapper scales,
# fold project+residual+score, cast MXU weights to bf16.
# --------------------------------------------------------------------------- #
def _pack_params(raw, scale):
    f32, bf16 = jnp.float32, jnp.bfloat16
    cin = raw["w_stem"].shape[2]
    c1 = raw["b_stem"].shape[0]
    e = raw["b_exp"].shape[0]

    wstem = jnp.zeros((K_IM2COL, CP), f32)        # rows grouped per tap k
    wdw = jnp.zeros((9, CP), f32)
    for k, (dy, dx) in enumerate(_TAPS):
        wstem = wstem.at[CIN_P * k:CIN_P * k + cin, :c1].set(raw["w_stem"][dy, dx] / scale)
        wdw = wdw.at[k, :e].set(raw["w_dw"][dy, dx])

    bstem = jnp.zeros((1, CP), f32).at[0, :c1].set(raw["b_stem"])
    wexp = jnp.zeros((CP, CP), f32).at[:c1, :e].set(raw["w_exp"])
    bexp = jnp.zeros((1, CP), f32).at[0, :e].set(raw["b_exp"])
    bdw = jnp.zeros((1, CP), f32).at[0, :e].set(raw["b_dw"])

    # project + residual + score folded (valid because h4 only feeds the score):
    #   sc = h3 . (Wproj @ Wscore) s + h1 . Wscore s + (Wscore . bproj + bscore) s
    wps = jnp.zeros((8, CP), f32).at[0, :e].set((raw["w_proj"] @ raw["w_score"]) * scale)
    wsc = jnp.zeros((8, CP), f32).at[0, :c1].set(raw["w_score"] * scale)
    csc = ((raw["w_score"] @ raw["b_proj"] + raw["b_score"]) * scale
           ).reshape(1, 1).astype(f32)
    return (wstem.astype(bf16), bstem, wexp.astype(bf16), bexp, wdw, bdw,
            wps.astype(bf16), wsc.astype(bf16), csc)


# --------------------------------------------------------------------------- #
# Tile plan: size row tiles by VMEM bytes (v7x 64 MiB aware), cdiv tiling,
# guarantee >=2 grid steps so both v7x TensorCores get work.
# --------------------------------------------------------------------------- #
def _tile_plan(n, h, wi):
    try:
        vmem_total = int(pltpu.get_tpu_info().vmem_capacity_bytes)
    except Exception:
        vmem_total = 64 << 20                      # conservative (v7x per-core)
    budget = min(vmem_total // 2, 48 << 20)        # ~32 MiB v7x, 48 MiB v5e/v6e
    rows_cap = max(budget // _BYTES_PER_ROW, 2 * wi)
    th = max(min(rows_cap // wi - 4, h), 1)
    if n * math.ceil(h / th) < 2 and h > 1:        # keep both v7x TCs busy
        th = (h + 1) // 2
    n_tiles = math.ceil(h / th)
    vmem_limit = int(min(vmem_total * 3 // 4, 96 << 20))
    return th, n_tiles, vmem_limit


# --------------------------------------------------------------------------- #
# Wrapper.forward:  x / 255 -> unet -> * 255 -> cat3 along channels.
# --------------------------------------------------------------------------- #
def wrapper_forward(x_nchw, raw_params, *, scale=255.0):
    n, cin, h, w = x_nchw.shape
    wi = _round_up(w + 4, 8)                 # padded flattened row stride
    th, n_tiles, vmem_limit = _tile_plan(n, h, wi)
    thi = th + 4
    r = thi * wi
    r_pad = _round_up(r, 128)
    gg = _round_up(wi + 1, 8)
    rg = gg + r_pad + gg

    # ---- host-side packing: NCHW -> NHWC, 72-lane stem im2col per tile -------
    x = jnp.transpose(x_nchw, (0, 2, 3, 1))
    xp3 = jnp.pad(x, ((0, 0),
                      (3, n_tiles * th + 3 - h),
                      (3, wi - w - 1),
                      (0, CIN_P - cin)))          # (n, n_tiles*th+6, wi+2, CIN_P)
    tiles = []
    for t in range(n_tiles):
        taps = [xp3[:, t * th + dy: t * th + dy + thi, dx: dx + wi, :]
                .reshape(n, r, CIN_P) for (dy, dx) in _TAPS]
        tiles.append(jnp.concatenate(taps, axis=-1))          # (n, r, 72)
    xcol = jnp.stack(tiles, axis=1)                           # (n, n_tiles, r, 72)
    xcol = jnp.pad(xcol, ((0, 0), (0, 0), (0, r_pad - r),
                          (0, K_IM2COL - 9 * CIN_P))).astype(jnp.bfloat16)

    # Per-tile validity mask: 1 inside the true image, 0 on halo / padding rows.
    g = jnp.arange(r_pad)
    p, q = g // wi, g % wi
    col_ok = (q >= 2) & (q < w + 2) & (g < r)
    mask = jnp.stack(
        [col_ok & (t * th - 2 + p >= 0) & (t * th - 2 + p < h) for t in range(n_tiles)]
    ).astype(jnp.float32)[:, :, None]                         # (n_tiles, r_pad, 1)

    packed = _pack_params(raw_params, scale)
    kern = functools.partial(_fused_unet_kernel, wi=wi, r_pad=r_pad, gg=gg)
    w_spec = lambda shape: pl.BlockSpec(shape, lambda i, j: (0,) * len(shape))

    out = pl.pallas_call(
        kern,
        out_shape=jax.ShapeDtypeStruct((n, n_tiles, 1, r_pad), jnp.float32),
        grid_spec=pltpu.PrefetchScalarGridSpec(
            num_scalar_prefetch=0,
            grid=(n, n_tiles),
            in_specs=[
                pl.BlockSpec((None, r_pad, 1), lambda i, j: (j, 0, 0)),              # mask
                pl.BlockSpec((None, None, r_pad, K_IM2COL), lambda i, j: (i, j, 0, 0)),  # im2col
                w_spec((K_IM2COL, CP)),   # wstem (bf16, 1/scale folded)
                w_spec((1, CP)),          # bstem
                w_spec((CP, CP)),         # wexp (bf16)
                w_spec((1, CP)),          # bexp
                w_spec((9, CP)),          # wdw  (f32 VPU path)
                w_spec((1, CP)),          # bdw
                w_spec((8, CP)),          # wps  (bf16, Wproj@Wscore * scale)
                w_spec((8, CP)),          # wsc  (bf16, Wscore * scale, residual path)
                w_spec((1, 1)),           # csc  (folded bias)
            ],
            out_specs=pl.BlockSpec((None, None, 1, r_pad), lambda i, j: (i, j, 0, 0)),
            scratch_shapes=[pltpu.VMEM((rg, CP), jnp.float32)],
        ),
        compiler_params=pltpu.CompilerParams(
            dimension_semantics=("parallel", "parallel"),
            vmem_limit_bytes=vmem_limit),
    )(mask, xcol, *packed)

    y = out[:, :, 0, :r].reshape(n, n_tiles, thi, wi)[:, :, 2:2 + th, 2:2 + w]
    y = y.reshape(n, n_tiles * th, w)[:, :h]
    return jnp.concatenate([y[:, None]] * 3, axis=1)          # cat3, NCHW


# --------------------------------------------------------------------------- #
# Pure-JAX f32 reference (same synthetic net) for correctness checking.
# --------------------------------------------------------------------------- #
def reference_forward(x_nchw, raw, *, scale=255.0):
    hi = jax.lax.Precision.HIGHEST
    n, cin, h, w = x_nchw.shape
    x = jnp.transpose(x_nchw, (0, 2, 3, 1)) / scale
    xp = jnp.pad(x, ((0, 0), (1, 1), (1, 1), (0, 0)))
    h1 = raw["b_stem"]
    for dy in range(3):
        for dx in range(3):
            h1 = h1 + jnp.einsum("nhwc,cd->nhwd", xp[:, dy:dy + h, dx:dx + w, :],
                                 raw["w_stem"][dy, dx], precision=hi)
    h1 = jnp.clip(h1, 0.0, 6.0)
    h2 = jnp.clip(jnp.einsum("nhwc,ce->nhwe", h1, raw["w_exp"], precision=hi)
                  + raw["b_exp"], 0.0, 6.0)
    h2p = jnp.pad(h2, ((0, 0), (1, 1), (1, 1), (0, 0)))
    h3 = raw["b_dw"]
    for dy in range(3):
        for dx in range(3):
            h3 = h3 + h2p[:, dy:dy + h, dx:dx + w, :] * raw["w_dw"][dy, dx]
    h3 = jnp.clip(h3, 0.0, 6.0)
    h4 = jnp.einsum("nhwe,ec->nhwc", h3, raw["w_proj"], precision=hi) + raw["b_proj"] + h1
    sc = (jnp.einsum("nhwc,c->nhw", h4, raw["w_score"], precision=hi) + raw["b_score"]) * scale
    return jnp.concatenate([sc[:, None]] * 3, axis=1)


def init_params(key, cin=3, c1=8, e=16):
    ks = jax.random.split(key, 10)
    f = lambda k, shape, s=0.1: jax.random.normal(k, shape, jnp.float32) * s
    return dict(
        w_stem=f(ks[0], (3, 3, cin, c1)),
        b_stem=f(ks[1], (c1,)),
        w_exp=f(ks[2], (c1, e)),
        b_exp=f(ks[3], (e,)),
        w_dw=f(ks[4], (3, 3, e)),
        b_dw=f(ks[5], (e,)),
        w_proj=f(ks[6], (e, c1)),
        b_proj=f(ks[7], (c1,)),
        w_score=f(ks[8], (c1,)),
        b_score=f(ks[9], ()),
    )


if __name__ == "__main__":
    key = jax.random.PRNGKey(0)
    kx, kp = jax.random.split(key)
    # Small shapes: batch=2, 3 RGB channels, 16x16 spatial (NCHW, PyTorch-style).
    x = jax.random.uniform(kx, (2, 3, 16, 16), jnp.float32, 0.0, 255.0)
    params = init_params(kp)

    fwd = jax.jit(functools.partial(wrapper_forward, scale=255.0))
    out = jax.block_until_ready(fwd(x, params))

    assert out.shape == (2, 3, 16, 16), out.shape
    assert out.dtype == jnp.float32
    # cat((x, x, x), dim=1): all three output channels identical.
    assert bool(jnp.all(out[:, 0] == out[:, 1])) and bool(jnp.all(out[:, 1] == out[:, 2]))
    assert bool(jnp.all(jnp.isfinite(out)))

    # Tolerance accounts for bf16 MXU operands (f32 accumulation) vs f32 reference.
    ref = jax.jit(functools.partial(reference_forward, scale=255.0))(x, params)
    np.testing.assert_allclose(np.asarray(out), np.asarray(ref), rtol=3e-2, atol=1.0)
    print("KERNEL_OK")
</pallas_src>

<mosaic_0001>
module attributes {stable_mosaic.version = 11 : i64} {
  func.func @_fused_unet_kernel(%arg0: i32, %arg1: i32, %arg2: memref<1x512x1xf32, #tpu.memory_space<vmem>>, %arg3: memref<1x1x512x128xbf16, #tpu.memory_space<vmem>>, %arg4: memref<128x128xbf16, #tpu.memory_space<vmem>>, %arg5: memref<1x128xf32, #tpu.memory_space<vmem>>, %arg6: memref<128x128xbf16, #tpu.memory_space<vmem>>, %arg7: memref<1x128xf32, #tpu.memory_space<vmem>>, %arg8: memref<9x128xf32, #tpu.memory_space<vmem>>, %arg9: memref<1x128xf32, #tpu.memory_space<vmem>>, %arg10: memref<8x128xbf16, #tpu.memory_space<vmem>>, %arg11: memref<8x128xbf16, #tpu.memory_space<vmem>>, %arg12: memref<1x1xf32, #tpu.memory_space<vmem>>, %arg13: memref<1x1x1x512xf32, #tpu.memory_space<vmem>>, %arg14: memref<576x128xf32, #tpu.memory_space<vmem>>) attributes {dimension_semantics = [#tpu.dimension_semantics<parallel>, #tpu.dimension_semantics<parallel>], iteration_bounds = array<i64: 2, 1>, scalar_prefetch = 0 : i64, scratch_operands = 1 : i64, tpu.core_type = #tpu.core_type<tc>, window_params = [{transform_indices = @transform_0, window_bounds = array<i64: 1, 512, 1>}, {transform_indices = @transform_1, window_bounds = array<i64: 1, 1, 512, 128>}, {pipeline_mode = #tpu.pipeline_mode<synchronous>, transform_indices = @transform_2, window_bounds = array<i64: 128, 128>}, {pipeline_mode = #tpu.pipeline_mode<synchronous>, transform_indices = @transform_3, window_bounds = array<i64: 1, 128>}, {pipeline_mode = #tpu.pipeline_mode<synchronous>, transform_indices = @transform_4, window_bounds = array<i64: 128, 128>}, {pipeline_mode = #tpu.pipeline_mode<synchronous>, transform_indices = @transform_5, window_bounds = array<i64: 1, 128>}, {pipeline_mode = #tpu.pipeline_mode<synchronous>, transform_indices = @transform_6, window_bounds = array<i64: 9, 128>}, {pipeline_mode = #tpu.pipeline_mode<synchronous>, transform_indices = @transform_7, window_bounds = array<i64: 1, 128>}, {pipeline_mode = #tpu.pipeline_mode<synchronous>, transform_indices = @transform_8, window_bounds = array<i64: 8, 128>}, {pipeline_mode = #tpu.pipeline_mode<synchronous>, transform_indices = @transform_9, window_bounds = array<i64: 8, 128>}, {pipeline_mode = #tpu.pipeline_mode<synchronous>, transform_indices = @transform_10, window_bounds = array<i64: 1, 1>}, {transform_indices = @transform_11, window_bounds = array<i64: 1, 1, 1, 512>}]} {
    %c0 = arith.constant 0 : index
    %c0_0 = arith.constant 0 : index
    %c0_1 = arith.constant 0 : index
    %c0_2 = arith.constant 0 : index
    %0 = vector.load %arg3[%c0, %c0_0, %c0_1, %c0_2] : memref<1x1x512x128xbf16, #tpu.memory_space<vmem>>, vector<1x1x512x128xbf16>
    %1 = vector.shape_cast %0 : vector<1x1x512x128xbf16> to vector<512x128xbf16>
    %c0_3 = arith.constant 0 : index
    %c0_4 = arith.constant 0 : index
    %2 = vector.load %arg4[%c0_3, %c0_4] : memref<128x128xbf16, #tpu.memory_space<vmem>>, vector<128x128xbf16>
    %cst = arith.constant dense<0.000000e+00> : vector<512x128xf32>
    %3 = tpu.matmul %1, %2, %cst {dimension_numbers = #tpu.dot_dimension_numbers<[1], [0], [0], [1], [0, 0, 1, 1], [], []>} : vector<512x128xbf16>, vector<128x128xbf16>, vector<512x128xf32> -> vector<512x128xf32>
    %c0_5 = arith.constant 0 : index
    %c0_6 = arith.constant 0 : index
    %4 = vector.load %arg5[%c0_5, %c0_6] : memref<1x128xf32, #tpu.memory_space<vmem>>, vector<1x128xf32>
    %5 = vector.broadcast %4 : vector<1x128xf32> to vector<512x128xf32>
    %6 = arith.addf %3, %5 : vector<512x128xf32>
    %cst_7 = arith.constant 0.000000e+00 : f32
    %cst_8 = arith.constant 6.000000e+00 : f32
    %7 = vector.broadcast %cst_7 : f32 to vector<512x128xf32>
    %8 = arith.maximumf %7, %6 : vector<512x128xf32>
    %9 = vector.broadcast %cst_8 : f32 to vector<512x128xf32>
    %10 = arith.minimumf %9, %8 : vector<512x128xf32>
    %11 = arith.truncf %10 : vector<512x128xf32> to vector<512x128xbf16>
    %c0_9 = arith.constant 0 : index
    %c0_10 = arith.constant 0 : index
    %12 = vector.load %arg6[%c0_9, %c0_10] : memref<128x128xbf16, #tpu.memory_space<vmem>>, vector<128x128xbf16>
    %cst_11 = arith.constant dense<0.000000e+00> : vector<512x128xf32>
    %13 = tpu.matmul %11, %12, %cst_11 {dimension_numbers = #tpu.dot_dimension_numbers<[1], [0], [0], [1], [0, 0, 1, 1], [], []>} : vector<512x128xbf16>, vector<128x128xbf16>, vector<512x128xf32> -> vector<512x128xf32>
    %c0_12 = arith.constant 0 : index
    %c0_13 = arith.constant 0 : index
    %14 = vector.load %arg7[%c0_12, %c0_13] : memref<1x128xf32, #tpu.memory_space<vmem>>, vector<1x128xf32>
    %15 = vector.broadcast %14 : vector<1x128xf32> to vector<512x128xf32>
    %16 = arith.addf %13, %15 : vector<512x128xf32>
    %cst_14 = arith.constant 0.000000e+00 : f32
    %cst_15 = arith.constant 6.000000e+00 : f32
    %17 = vector.broadcast %cst_14 : f32 to vector<512x128xf32>
    %18 = arith.maximumf %17, %16 : vector<512x128xf32>
    %19 = vector.broadcast %cst_15 : f32 to vector<512x128xf32>
    %20 = arith.minimumf %19, %18 : vector<512x128xf32>
    %c0_16 = arith.constant 0 : index
    %c0_17 = arith.constant 0 : index
    %c0_18 = arith.constant 0 : index
    %21 = vector.load %arg2[%c0_16, %c0_17, %c0_18] : memref<1x512x1xf32, #tpu.memory_space<vmem>>, vector<1x512x1xf32>
    %22 = vector.shape_cast %21 : vector<1x512x1xf32> to vector<512x1xf32>
    %23 = vector.broadcast %22 : vector<512x1xf32> to vector<512x128xf32>
    %24 = arith.mulf %20, %23 : vector<512x128xf32>
    %cst_19 = arith.constant 0.000000e+00 : f32
    %25 = vector.broadcast %cst_19 : f32 to vector<32x128xf32>
    %c0_20 = arith.constant 0 : index
    %c0_21 = arith.constant 0 : index
    %26 = vector.load %arg14[%c0_20, %c0_21] : memref<576x128xf32, #tpu.memory_space<vmem>>, vector<32x128xf32>
    tpu.vector_store %arg14[%c0_20, %c0_21], %25 {strides = array<i32>} : memref<576x128xf32, #tpu.memory_space<vmem>>, vector<32x128xf32>,
    %cst_22 = arith.constant 0.000000e+00 : f32
    %27 = vector.broadcast %cst_22 : f32 to vector<32x128xf32>
    %c544 = arith.constant 544 : index
    %c0_23 = arith.constant 0 : index
    %28 = vector.load %arg14[%c544, %c0_23] : memref<576x128xf32, #tpu.memory_space<vmem>>, vector<32x128xf32>
    tpu.vector_store %arg14[%c544, %c0_23], %27 {strides = array<i32>} : memref<576x128xf32, #tpu.memory_space<vmem>>, vector<32x128xf32>,
    %c32 = arith.constant 32 : index
    %c0_24 = arith.constant 0 : index
    %29 = vector.load %arg14[%c32, %c0_24] : memref<576x128xf32, #tpu.memory_space<vmem>>, vector<512x128xf32>
    tpu.vector_store %arg14[%c32, %c0_24], %24 {strides = array<i32>} : memref<576x128xf32, #tpu.memory_space<vmem>>, vector<512x128xf32>,
    %cst_25 = arith.constant 0.000000e+00 : f32
    %30 = vector.broadcast %cst_25 : f32 to vector<512x128xf32>
    %c7 = arith.constant 7 : index
    %c0_26 = arith.constant 0 : index
    %31 = vector.load %arg14[%c7, %c0_26] : memref<576x128xf32, #tpu.memory_space<vmem>>, vector<512x128xf32>
    %c0_27 = arith.constant 0 : index
    %c0_28 = arith.constant 0 : index
    %32 = vector.load %arg8[%c0_27, %c0_28] : memref<9x128xf32, #tpu.memory_space<vmem>>, vector<1x128xf32>
    %33 = vector.broadcast %32 : vector<1x128xf32> to vector<512x128xf32>
    %34 = arith.mulf %31, %33 : vector<512x128xf32>
    %35 = arith.addf %30, %34 : vector<512x128xf32>
    %c8 = arith.constant 8 : index
    %c0_29 = arith.constant 0 : index
    %36 = vector.load %arg14[%c8, %c0_29] : memref<576x128xf32, #tpu.memory_space<vmem>>, vector<512x128xf32>
    %c1 = arith.constant 1 : index
    %c0_30 = arith.constant 0 : index
    %37 = vector.load %arg8[%c1, %c0_30] : memref<9x128xf32, #tpu.memory_space<vmem>>, vector<1x128xf32>
    %38 = vector.broadcast %37 : vector<1x128xf32> to vector<512x128xf32>
    %39 = arith.mulf %36, %38 : vector<512x128xf32>
    %40 = arith.addf %35, %39 : vector<512x128xf32>
    %c9 = arith.constant 9 : index
    %c0_31 = arith.constant 0 : index
    %41 = vector.load %arg14[%c9, %c0_31] : memref<576x128xf32, #tpu.memory_space<vmem>>, vector<512x128xf32>
    %c2 = arith.constant 2 : index
    %c0_32 = arith.constant 0 : index
    %42 = vector.load %arg8[%c2, %c0_32] : memref<9x128xf32, #tpu.memory_space<vmem>>, vector<1x128xf32>
    %43 = vector.broadcast %42 : vector<1x128xf32> to vector<512x128xf32>
    %44 = arith.mulf %41, %43 : vector<512x128xf32>
    %45 = arith.addf %40, %44 : vector<512x128xf32>
    %c31 = arith.constant 31 : index
    %c0_33 = arith.constant 0 : index
    %46 = vector.load %arg14[%c31, %c0_33] : memref<576x128xf32, #tpu.memory_space<vmem>>, vector<512x128xf32>
    %c3 = arith.constant 3 : index
    %c0_34 = arith.constant 0 : index
    %47 = vector.load %arg8[%c3, %c0_34] : memref<9x128xf32, #tpu.memory_space<vmem>>, vector<1x128xf32>
    %48 = vector.broadcast %47 : vector<1x128xf32> to vector<512x128xf32>
    %49 = arith.mulf %46, %48 : vector<512x128xf32>
    %50 = arith.addf %45, %49 : vector<512x128xf32>
    %c32_35 = arith.constant 32 : index
    %c0_36 = arith.constant 0 : index
    %51 = vector.load %arg14[%c32_35, %c0_36] : memref<576x128xf32, #tpu.memory_space<vmem>>, vector<512x128xf32>
    %c4 = arith.constant 4 : index
    %c0_37 = arith.constant 0 : index
    %52 = vector.load %arg8[%c4, %c0_37] : memref<9x128xf32, #tpu.memory_space<vmem>>, vector<1x128xf32>
    %53 = vector.broadcast %52 : vector<1x128xf32> to vector<512x128xf32>
    %54 = arith.mulf %51, %53 : vector<512x128xf32>
    %55 = arith.addf %50, %54 : vector<512x128xf32>
    %c33 = arith.constant 33 : index
    %c0_38 = arith.constant 0 : index
    %56 = vector.load %arg14[%c33, %c0_38] : memref<576x128xf32, #tpu.memory_space<vmem>>, vector<512x128xf32>
    %c5 = arith.constant 5 : index
    %c0_39 = arith.constant 0 : index
    %57 = vector.load %arg8[%c5, %c0_39] : memref<9x128xf32, #tpu.memory_space<vmem>>, vector<1x128xf32>
    %58 = vector.broadcast %57 : vector<1x128xf32> to vector<512x128xf32>
    %59 = arith.mulf %56, %58 : vector<512x128xf32>
    %60 = arith.addf %55, %59 : vector<512x128xf32>
    %c55 = arith.constant 55 : index
    %c0_40 = arith.constant 0 : index
    %61 = vector.load %arg14[%c55, %c0_40] : memref<576x128xf32, #tpu.memory_space<vmem>>, vector<512x128xf32>
    %c6 = arith.constant 6 : index
    %c0_41 = arith.constant 0 : index
    %62 = vector.load %arg8[%c6, %c0_41] : memref<9x128xf32, #tpu.memory_space<vmem>>, vector<1x128xf32>
    %63 = vector.broadcast %62 : vector<1x128xf32> to vector<512x128xf32>
    %64 = arith.mulf %61, %63 : vector<512x128xf32>
    %65 = arith.addf %60, %64 : vector<512x128xf32>
    %c56 = arith.constant 56 : index
    %c0_42 = arith.constant 0 : index
    %66 = vector.load %arg14[%c56, %c0_42] : memref<576x128xf32, #tpu.memory_space<vmem>>, vector<512x128xf32>
    %c7_43 = arith.constant 7 : index
    %c0_44 = arith.constant 0 : index
    %67 = vector.load %arg8[%c7_43, %c0_44] : memref<9x128xf32, #tpu.memory_space<vmem>>, vector<1x128xf32>
    %68 = vector.broadcast %67 : vector<1x128xf32> to vector<512x128xf32>
    %69 = arith.mulf %66, %68 : vector<512x128xf32>
    %70 = arith.addf %65, %69 : vector<512x128xf32>
    %c57 = arith.constant 57 : index
    %c0_45 = arith.constant 0 : index
    %71 = vector.load %arg14[%c57, %c0_45] : memref<576x128xf32, #tpu.memory_space<vmem>>, vector<512x128xf32>
    %c8_46 = arith.constant 8 : index
    %c0_47 = arith.constant 0 : index
    %72 = vector.load %arg8[%c8_46, %c0_47] : memref<9x128xf32, #tpu.memory_space<vmem>>, vector<1x128xf32>
    %73 = vector.broadcast %72 : vector<1x128xf32> to vector<512x128xf32>
    %74 = arith.mulf %71, %73 : vector<512x128xf32>
    %75 = arith.addf %70, %74 : vector<512x128xf32>
    %c0_48 = arith.constant 0 : index
    %c0_49 = arith.constant 0 : index
    %76 = vector.load %arg9[%c0_48, %c0_49] : memref<1x128xf32, #tpu.memory_space<vmem>>, vector<1x128xf32>
    %77 = vector.broadcast %76 : vector<1x128xf32> to vector<512x128xf32>
    %78 = arith.addf %75, %77 : vector<512x128xf32>
    %cst_50 = arith.constant 0.000000e+00 : f32
    %cst_51 = arith.constant 6.000000e+00 : f32
    %79 = vector.broadcast %cst_50 : f32 to vector<512x128xf32>
    %80 = arith.maximumf %79, %78 : vector<512x128xf32>
    %81 = vector.broadcast %cst_51 : f32 to vector<512x128xf32>
    %82 = arith.minimumf %81, %80 : vector<512x128xf32>
    %c0_52 = arith.constant 0 : index
    %c0_53 = arith.constant 0 : index
    %83 = vector.load %arg10[%c0_52, %c0_53] : memref<8x128xbf16, #tpu.memory_space<vmem>>, vector<8x128xbf16>
    %84 = arith.truncf %82 : vector<512x128xf32> to vector<512x128xbf16>
    %cst_54 = arith.constant dense<0.000000e+00> : vector<8x512xf32>
    %85 = tpu.matmul %83, %84, %cst_54 {dimension_numbers = #tpu.dot_dimension_numbers<[1], [1], [0], [0], [0, 0, 1, 0], [], []>} : vector<8x128xbf16>, vector<512x128xbf16>, vector<8x512xf32> -> vector<8x512xf32>
    %c0_55 = arith.constant 0 : index
    %c0_56 = arith.constant 0 : index
    %86 = vector.load %arg11[%c0_55, %c0_56] : memref<8x128xbf16, #tpu.memory_space<vmem>>, vector<8x128xbf16>
    %cst_57 = arith.constant dense<0.000000e+00> : vector<8x512xf32>
    %87 = tpu.matmul %86, %11, %cst_57 {dimension_numbers = #tpu.dot_dimension_numbers<[1], [1], [0], [0], [0, 0, 1, 0], [], []>} : vector<8x128xbf16>, vector<512x128xbf16>, vector<8x512xf32> -> vector<8x512xf32>
    %88 = arith.addf %85, %87 : vector<8x512xf32>
    %89 = vector.extract_strided_slice %88 {offsets = [0, 0], sizes = [1, 512], strides = [1, 1]} : vector<8x512xf32> to vector<1x512xf32>
    %c0_58 = arith.constant 0 : index
    %c0_59 = arith.constant 0 : index
    %90 = vector.load %arg12[%c0_58, %c0_59] : memref<1x1xf32, #tpu.memory_space<vmem>>, vector<1x1xf32>
    %91 = vector.broadcast %90 : vector<1x1xf32> to vector<1x512xf32>
    %92 = arith.addf %89, %91 : vector<1x512xf32>
    %c0_60 = arith.constant 0 : index
    %c0_61 = arith.constant 0 : index
    %c0_62 = arith.constant 0 : index
    %c0_63 = arith.constant 0 : index
    %93 = vector.load %arg13[%c0_60, %c0_61, %c0_62, %c0_63] : memref<1x1x1x512xf32, #tpu.memory_space<vmem>>, vector<1x1x1x512xf32>
    %94 = vector.shape_cast %93 : vector<1x1x1x512xf32> to vector<1x512xf32>
    %95 = vector.shape_cast %92 : vector<1x512xf32> to vector<1x1x1x512xf32>
    tpu.vector_store %arg13[%c0_60, %c0_61, %c0_62, %c0_63], %95 {strides = array<i32>} : memref<1x1x1x512xf32, #tpu.memory_space<vmem>>, vector<1x1x1x512xf32>,
    return
  }
  func.func @transform_0(%arg0: i32, %arg1: i32) -> (i32, i32, i32) {
    %c0_i32 = arith.constant 0 : i32
    %c0_i32_0 = arith.constant 0 : i32
    %c0_i32_1 = arith.constant 0 : i32
    return %arg1, %c0_i32, %c0_i32_0 : i32, i32, i32
  }
  func.func @transform_1(%arg0: i32, %arg1: i32) -> (i32, i32, i32, i32) {
    %c0_i32 = arith.constant 0 : i32
    %c0_i32_0 = arith.constant 0 : i32
    %c0_i32_1 = arith.constant 0 : i32
    return %arg0, %arg1, %c0_i32, %c0_i32_0 : i32, i32, i32, i32
  }
  func.func @transform_2(%arg0: i32, %arg1: i32) -> (i32, i32) {
    %c0_i32 = arith.constant 0 : i32
    %c0_i32_0 = arith.constant 0 : i32
    %c0_i32_1 = arith.constant 0 : i32
    return %c0_i32, %c0_i32_0 : i32, i32
  }
  func.func @transform_3(%arg0: i32, %arg1: i32) -> (i32, i32) {
    %c0_i32 = arith.constant 0 : i32
    %c0_i32_0 = arith.constant 0 : i32
    %c0_i32_1 = arith.constant 0 : i32
    return %c0_i32, %c0_i32_0 : i32, i32
  }
  func.func @transform_4(%arg0: i32, %arg1: i32) -> (i32, i32) {
    %c0_i32 = arith.constant 0 : i32
    %c0_i32_0 = arith.constant 0 : i32
    %c0_i32_1 = arith.constant 0 : i32
    return %c0_i32, %c0_i32_0 : i32, i32
  }
  func.func @transform_5(%arg0: i32, %arg1: i32) -> (i32, i32) {
    %c0_i32 = arith.constant 0 : i32
    %c0_i32_0 = arith.constant 0 : i32
    %c0_i32_1 = arith.constant 0 : i32
    return %c0_i32, %c0_i32_0 : i32, i32
  }
  func.func @transform_6(%arg0: i32, %arg1: i32) -> (i32, i32) {
    %c0_i32 = arith.constant 0 : i32
    %c0_i32_0 = arith.constant 0 : i32
    %c0_i32_1 = arith.constant 0 : i32
    return %c0_i32, %c0_i32_0 : i32, i32
  }
  func.func @transform_7(%arg0: i32, %arg1: i32) -> (i32, i32) {
    %c0_i32 = arith.constant 0 : i32
    %c0_i32_0 = arith.constant 0 : i32
    %c0_i32_1 = arith.constant 0 : i32
    return %c0_i32, %c0_i32_0 : i32, i32
  }
  func.func @transform_8(%arg0: i32, %arg1: i32) -> (i32, i32) {
    %c0_i32 = arith.constant 0 : i32
    %c0_i32_0 = arith.constant 0 : i32
    %c0_i32_1 = arith.constant 0 : i32
    return %c0_i32, %c0_i32_0 : i32, i32
  }
  func.func @transform_9(%arg0: i32, %arg1: i32) -> (i32, i32) {
    %c0_i32 = arith.constant 0 : i32
    %c0_i32_0 = arith.constant 0 : i32
    %c0_i32_1 = arith.constant 0 : i32
    return %c0_i32, %c0_i32_0 : i32, i32
  }
  func.func @transform_10(%arg0: i32, %arg1: i32) -> (i32, i32) {
    %c0_i32 = arith.constant 0 : i32
    %c0_i32_0 = arith.constant 0 : i32
    %c0_i32_1 = arith.constant 0 : i32
    return %c0_i32, %c0_i32_0 : i32, i32
  }
  func.func @transform_11(%arg0: i32, %arg1: i32) -> (i32, i32, i32, i32) {
    %c0_i32 = arith.constant 0 : i32
    %c0_i32_0 = arith.constant 0 : i32
    %c0_i32_1 = arith.constant 0 : i32
    return %arg0, %arg1, %c0_i32, %c0_i32_0 : i32, i32, i32, i32
  }
}

</mosaic_0001>

<llo_original>
// kernel: squeeze.37
$region0: #{squeeze.37}
  %s0 = inlined_call_operand.vmem [shape: f32[2,480], index: 0, kind: input, shape index: {}]
  %s1 = inlined_call_operand.vmem [shape: f32[2,1,20,24], index: 1, kind: output, shape index: {}]
  $region1: #{squeeze.37} parent=0
    #allocation0 [shape = 'u8[16384]{0}', space=vmem, size = 0x4000, scoped, tag = 'scoped mem for input reshape']
    %s3 = ssub.s32 4, 1
    %s4 = scalar_lea.vmem %s0, 6
    %v5 = vld [vmem:[%s4] sm:%s3]
    %s6 = scalar_lea.vmem [#allocation0], 24
    %7 = vst [vmem:[%s6] sm:%s3] %v5
    %s8 = scalar_lea.vmem %s0, 4
    %v9 = vld [vmem:[%s8] sm:%s3]
    %s10 = scalar_lea.vmem [#allocation0], 16
    %11 = vst [vmem:[%s10] sm:%s3] %v9
    %s12 = scalar_lea.vmem %s0, 2
    %v13 = vld [vmem:[%s12] sm:%s3]
    %s14 = scalar_lea.vmem [#allocation0], 8
    %15 = vst [vmem:[%s14] sm:%s3] %v13
    %v16 = vld [vmem:[%s0] sm:%s3]
    %17 = vst [vmem:[#allocation0] sm:%s3] %v16
    %v18 = vld [vmem:[#allocation0] sm:$0x3]
    %vm19 = vcmask 195584
    %20 = vst.msk [vmem:[%s1] ss:$24 sm:$0x3] %vm19, %v18
    %s21 = scalar_lea.vmem [#allocation0], 24
    %v22 = vld [vmem:[%s21] sm:$0x3]
    %vm23 = vcmask 195584
    %s24 = scalar_lea.vmem %s1, 16
    %25 = vst.msk [vmem:[%s24] ss:$24 sm:$0x3] %vm23, %v22
    %s26 = scalar_lea.vmem [#allocation0], 17
    %s27 = smov 3
    %v28 = vld [vmem:[%s26] ss:$-1 sm:%s27]
    %29 = vrot.lane.b32.xlu0 %v28, 120
    %v30 = vpop.permute.xlu0 %29
    %vm31 = vcmask 195584
    %s32 = scalar_lea.vmem %s1, 35
    %33 = vst.msk [vmem:[%s32] ss:$-24 sm:$0x3] %vm31, %v30
    %s34 = scalar_lea.vmem [#allocation0], 8
    %v35 = vld [vmem:[%s34] sm:$0x3]
    %36 = vrot.lane.b32.xlu0 %v35, 112
    %v37 = vpop.permute.xlu0 %36
    %vm38 = vcmask 195584
    %s39 = scalar_lea.vmem %s1, 6
    %40 = vst.msk [vmem:[%s39] ss:$24 sm:$0x3] %vm38, %v37
    %s41 = smov 3
    %v42 = vld [vmem:[#allocation0] ss:$25 sm:%s41]
    %s43 = scalar_lea.vmem [#allocation0], 70
    %s44 = smov 12
    %v45 = vld [vmem:[%s43] ss:$-23 sm:%s44]
    %vm46 = vcmask 1043458
    %v47 = vsel %vm46, %v45, %v42
    %48 = vrot.lane.b32.xlu0 %v47, 104
    %v49 = vpop.permute.xlu0 %48
    %vm50 = vcmask 195584
    %s51 = scalar_lea.vmem %s1, 1
    %52 = vst.msk [vmem:[%s51] ss:$40 sm:$0x3] %vm50, %v49
    %s53 = scalar_lea.vmem %s1, 1
    %54 = vst.msk [vmem:[%s53] ss:$8 sm:$0xc] %vm50, %v49
    %s55 = scalar_lea.vmem [#allocation0], 17
    %s56 = smov 3
    %v57 = vld [vmem:[%s55] ss:$-1 sm:%s56]
    %58 = vrot.lane.b32.xlu0 %v57, 96
    %v59 = vpop.permute.xlu0 %58
    %vm60 = vcmask 195584
    %s61 = scalar_lea.vmem %s1, 36
    %62 = vst.msk [vmem:[%s61] ss:$-24 sm:$0x3] %vm60, %v59
    %s63 = scalar_lea.vmem [#allocation0], 8
    %v64 = vld [vmem:[%s63] sm:$0x3]
    %65 = vrot.lane.b32.xlu0 %v64, 88
    %v66 = vpop.permute.xlu0 %65
    %vm67 = vcmask 195584
    %s68 = scalar_lea.vmem %s1, 7
    %69 = vst.msk [vmem:[%s68] ss:$24 sm:$0x3] %vm67, %v66
    %s70 = smov 3
    %v71 = vld [vmem:[#allocation0] ss:$25 sm:%s70]
    %s72 = scalar_lea.vmem [#allocation0], 70
    %s73 = smov 12
    %v74 = vld [vmem:[%s72] ss:$-23 sm:%s73]
    %vm75 = vcmask 1043458
    %v76 = vsel %vm75, %v74, %v71
    %77 = vrot.lane.b32.xlu0 %v76, 80
    %v78 = vpop.permute.xlu0 %77
    %vm79 = vcmask 195584
    %s80 = scalar_lea.vmem %s1, 2
    %81 = vst.msk [vmem:[%s80] ss:$40 sm:$0x3] %vm79, %v78
    %s82 = scalar_lea.vmem %s1, 2
    %83 = vst.msk [vmem:[%s82] ss:$8 sm:$0xc] %vm79, %v78
    %s84 = scalar_lea.vmem [#allocation0], 17
    %s85 = smov 3
    %v86 = vld [vmem:[%s84] ss:$-1 sm:%s85]
    %87 = vrot.lane.b32.xlu0 %v86, 72
    %v88 = vpop.permute.xlu0 %87
    %vm89 = vcmask 195584
    %s90 = scalar_lea.vmem %s1, 37
    %91 = vst.msk [vmem:[%s90] ss:$-24 sm:$0x3] %vm89, %v88
    %s92 = scalar_lea.vmem [#allocation0], 9
    %s93 = smov 3
    %v94 = vld [vmem:[%s92] ss:$-1 sm:%s93]
    %95 = vrot.lane.b32.xlu0 %v94, 64
    %v96 = vpop.permute.xlu0 %95
    %vm97 = vcmask 195584
    %s98 = scalar_lea.vmem %s1, 32
    %99 = vst.msk [vmem:[%s98] ss:$-24 sm:$0x3] %vm97, %v96
    %s100 = smov 3
    %v101 = vld [vmem:[#allocation0] ss:$25 sm:%s100]
    %s102 = scalar_lea.vmem [#allocation0], 70
    %s103 = smov 12
    %v104 = vld [vmem:[%s102] ss:$-23 sm:%s103]
    %vm105 = vcmask 1043458
    %v106 = vsel %vm105, %v104, %v101
    %107 = vrot.lane.b32.xlu0 %v106, 56
    %v108 = vpop.permute.xlu0 %107
    %vm109 = vcmask 195584
    %s110 = scalar_lea.vmem %s1, 3
    %111 = vst.msk [vmem:[%s110] ss:$40 sm:$0x3] %vm109, %v108
    %s112 = scalar_lea.vmem %s1, 3
    %113 = vst.msk [vmem:[%s112] ss:$8 sm:$0xc] %vm109, %v108
    %s114 = scalar_lea.vmem [#allocation0], 17
    %s115 = smov 3
    %v116 = vld [vmem:[%s114] ss:$-1 sm:%s115]
    %117 = vrot.lane.b32.xlu0 %v116, 48
    %v118 = vpop.permute.xlu0 %117
    %vm119 = vcmask 195584
    %s120 = scalar_lea.vmem %s1, 38
    %121 = vst.msk [vmem:[%s120] ss:$-24 sm:$0x3] %vm119, %v118
    %s122 = scalar_lea.vmem [#allocation0], 9
    %s123 = smov 3
    %v124 = vld [vmem:[%s122] ss:$-1 sm:%s123]
    %125 = vrot.lane.b32.xlu0 %v124, 40
    %v126 = vpop.permute.xlu0 %125
    %vm127 = vcmask 195584
    %s128 = scalar_lea.vmem %s1, 33
    %129 = vst.msk [vmem:[%s128] ss:$-24 sm:$0x3] %vm127, %v126
    %v130 = vld [vmem:[#allocation0] sm:$0x3]
    %131 = vrot.lane.b32.xlu0 %v130, 32
    %v132 = vpop.permute.xlu0 %131
    %vm133 = vcmask 195584
    %s134 = scalar_lea.vmem %s1, 4
    %135 = vst.msk [vmem:[%s134] ss:$24 sm:$0x3] %vm133, %v132
    %s136 = scalar_lea.vmem [#allocation0], 17
    %s137 = smov 3
    %v138 = vld [vmem:[%s136] ss:$-1 sm:%s137]
    %139 = vrot.lane.b32.xlu0 %v138, 24
    %v140 = vpop.permute.xlu0 %139
    %vm141 = vcmask 195584
    %s142 = scalar_lea.vmem %s1, 39
    %143 = vst.msk [vmem:[%s142] ss:$-24 sm:$0x3] %vm141, %v140
    %s144 = scalar_lea.vmem [#allocation0], 9
    %s145 = smov 3
    %v146 = vld [vmem:[%s144] ss:$-1 sm:%s145]
    %s147 = scalar_lea.vmem [#allocation0], 17
    %s148 = smov 3
    %v149 = vld [vmem:[%s147] ss:$-1 sm:%s148]
    %vm150 = vcmask 916480
    %v151 = vsel %vm150, %v149, %v146
    %152 = vrot.lane.b32.xlu0 %v151, 16
    %v153 = vpop.permute.xlu0 %152
    %vm154 = vcmask 130048
    %s155 = scalar_lea.vmem %s1, 34
    %156 = vst.msk [vmem:[%s155] ss:$-24 sm:$0x3] %vm154, %v153
    %vm157 = vcmask 195712
    %s158 = scalar_lea.vmem %s1, 34
    %159 = vst.msk [vmem:[%s158] ss:$-24 sm:$0x3] %vm157, %v153
    %v160 = vld [vmem:[#allocation0] sm:$0x3]
    %s161 = scalar_lea.vmem [#allocation0], 8
    %v162 = vld [vmem:[%s161] sm:$0x3]
    %vm163 = vcmask 982016
    %v164 = vsel %vm163, %v162, %v160
    %165 = vrot.lane.b32.xlu0 %v164, 8
    %v166 = vpop.permute.xlu0 %165
    %vm167 = vcmask 64512
    %s168 = scalar_lea.vmem %s1, 5
    %169 = vst.msk [vmem:[%s168] ss:$24 sm:$0x3] %vm167, %v166
    %vm170 = vcmask 195648
    %s171 = scalar_lea.vmem %s1, 5
    %172 = vst.msk [vmem:[%s171] ss:$24 sm:$0x3] %vm170, %v166

// kernel: wrapper_forward.1
$region0: #{wrapper_forward.1}
  #allocation0 [shape = 'u32[]', space=smem, size = 0x4, offset = 0x4, fixed_abs, tag = 'smem constant byte address 0x4 - core index']
  #allocation1 [shape = 'u32[72,128]{1,0:T(1,128)}', space=vmem, size = 0x9000, scoped, tag = 'internal scratch']
  #allocation2 [shape = 'f32[576,128]{1,0:T(8,128)}', space=vmem, size = 0x48000, scoped, tag = 'scratch operand']
  #allocation3 [shape = 'f32[1,1]{1,0:T(1,128)S(1)}', space=vmem, size = 0x200, scoped, tag = 'scoped memory for wrapper_forward.1']
  %s0 = inlined_call_operand.vmem [shape: f32[1,512,1], index: 0, kind: input, shape index: {}]
  %s1 = inlined_call_operand.vmem [shape: bf16[2,1,512,128], index: 1, kind: input, shape index: {}]
  %s2 = inlined_call_operand.vmem [shape: bf16[128,128], index: 2, kind: input, shape index: {}]
  %s3 = inlined_call_operand.vmem [shape: f32[1,128], index: 3, kind: input, shape index: {}]
  %s4 = inlined_call_operand.vmem [shape: bf16[128,128], index: 4, kind: input, shape index: {}]
  %s5 = inlined_call_operand.vmem [shape: f32[1,128], index: 5, kind: input, shape index: {}]
  %s6 = inlined_call_operand.vmem [shape: f32[9,128], index: 6, kind: input, shape index: {}]
  %s7 = inlined_call_operand.vmem [shape: f32[1,128], index: 7, kind: input, shape index: {}]
  %s8 = inlined_call_operand.vmem [shape: bf16[8,128], index: 8, kind: input, shape index: {}]
  %s9 = inlined_call_operand.vmem [shape: bf16[8,128], index: 9, kind: input, shape index: {}]
  %s10 = inlined_call_operand.<no memory space> [shape: f32[1,1], index: 10, kind: input, shape index: {}]
  %s11 = inlined_call_operand.vmem [shape: f32[2,1,1,512], index: 11, kind: output, shape index: {}]
  %s12 = sld [smem:[#allocation0]]
  $region77: #{wrapper_forward.1} parent=0
    _
  %s14 = ssub.s32 1, %s12
  %s15 = scalar_select 0, %s14, %s12
  %v16 = vstv %s10
  %17 = vst [vmem:[#allocation3] sm:$0x1] %v16
  loop: start=0, step=1, limit=4
  $region2: #{wrapper_forward.1} parent=0 // loop_pre_header
    _
  $region3: #{wrapper_forward.1} parent=0 // loop_header
    %s19 = sphi 0, %s23
    %p20 = scmp.ge.s32.totalorder %s19, 4
    %s26 = sphi 0, %s38
    %s27 = sphi 0, %s34
    %s28 = sphi 0, %s26
    %s29 = sphi 0, %s27
    %s30 = sphi 0, %s28
    %s31 = sphi 0, %s29
    %s41 = sphi 0, %s43
    %s44 = sphi 0, %s41
    %s45 = sphi 0, %s44
    %s61 = sphi 0, %s45
    %s69 = sphi 0, %s71
    %s72 = sphi 0, %s69
    %s73 = sphi 0, %s72
    %s89 = sphi 0, %s73
    %s93 = sphi 0, %s93
    %s95 = sphi 0, %s93
    %s96 = sphi 0, %s95
    %s110 = sphi 0, %s96
    %s114 = sphi 0, %s114
    %s116 = sphi 0, %s114
    %s117 = sphi 0, %s116
    %s131 = sphi 0, %s117
    %s135 = sphi 0, %s135
    %s137 = sphi 0, %s135
    %s138 = sphi 0, %s137
    %s152 = sphi 0, %s138
    %s156 = sphi 0, %s156
    %s158 = sphi 0, %s156
    %s159 = sphi 0, %s158
    %s173 = sphi 0, %s159
    %s177 = sphi 0, %s177
    %s179 = sphi 0, %s177
    %s180 = sphi 0, %s179
    %s194 = sphi 0, %s180
    %s198 = sphi 0, %s198
    %s200 = sphi 0, %s198
    %s201 = sphi 0, %s200
    %s215 = sphi 0, %s201
    %s219 = sphi 0, %s219
    %s221 = sphi 0, %s219
    %s222 = sphi 0, %s221
    %s236 = sphi 0, %s222
    %s240 = sphi 0, %s240
    %s242 = sphi 0, %s240
    %s243 = sphi 0, %s242
    %s257 = sphi 0, %s243
    %s261 = sphi 0, %s261
    %s263 = sphi 0, %s261
    %s264 = sphi 0, %s263
    %s278 = sphi 0, %s264
    %s286 = sphi 0, %s288
    %s289 = sphi 0, %s286
    %s290 = sphi 0, %s289
    %s306 = sphi 0, %s290
  $region4: #{wrapper_forward.1} parent=0 // loop_header_branch
    %22 = sbr.rel (%p20) target = $region8
  $region5: #{wrapper_forward.1} parent=0 // loop_body
    %s24 = ssub.s32 %s19, 1
    %s25 = ssub.s32 %s19, 2
    %s32 = sadd.s32 1, %s27
    %p33 = scmp.ge.s32.totalorder %s32, 1
    %s34 = scalar_select %p33, 0, %s32
    %s35 = sadd.s32 1, %s26
    %s36 = scalar_select %p33, %s35, %s26
    %p37 = scmp.ge.s32.totalorder %s36, 2
    %s38 = scalar_select %p37, 0, %s36
    %s39 = ssub.s32 %s27, %s34
    %p40 = scmp.eq.s32.totalorder %s39, 0
    %s42 = sadd.s32 %s41, 1
    %s43 = scalar_select %p40, %s41, %s42
    %p46 = pneg %p40
    %p47 = scmp.eq.s32.totalorder %s19, 1
    %p48 = por %p46, %p47
    %p49 = scmp.ne.s32.totalorder %s41, %s44
    %p50 = scmp.eq.s32.totalorder %s19, 0
    %p51 = por %p49, %p50
    %p52 = scmp.ne.s32.totalorder %s41, %s44
    %p53 = scmp.eq.s32.totalorder %s24, 1
    %p54 = por %p52, %p53
    %p55 = scmp.ne.s32.totalorder %s44, %s45
    %p56 = scmp.eq.s32.totalorder %s24, 0
    %p57 = por %p55, %p56
    %p58 = scmp.ne.s32.totalorder %s44, %s45
    %p59 = scmp.eq.s32.totalorder %s25, 1
    %p60 = por %p58, %p59
    %p62 = scmp.ne.s32.totalorder %s45, %s61
    %p63 = scmp.eq.s32.totalorder %s25, 0
    %p64 = por %p62, %p63
    %s65 = ssub.s32 %s26, %s38
    %s66 = ssub.s32 %s27, %s34
    %s67 = sor.u32 %s65, %s66
    %p68 = scmp.eq.s32.totalorder %s67, 0
    %s70 = sadd.s32 %s69, 1
    %s71 = scalar_select %p68, %s69, %s70
    %p74 = pneg %p68
    %p75 = scmp.eq.s32.totalorder %s19, 1
    %p76 = por %p74, %p75
    %p77 = scmp.ne.s32.totalorder %s69, %s72
    %p78 = scmp.eq.s32.totalorder %s19, 0
    %p79 = por %p77, %p78
    %p80 = scmp.ne.s32.totalorder %s69, %s72
    %p81 = scmp.eq.s32.totalorder %s24, 1
    %p82 = por %p80, %p81
    %p83 = scmp.ne.s32.totalorder %s72, %s73
    %p84 = scmp.eq.s32.totalorder %s24, 0
    %p85 = por %p83, %p84
    %p86 = scmp.ne.s32.totalorder %s72, %s73
    %p87 = scmp.eq.s32.totalorder %s25, 1
    %p88 = por %p86, %p87
    %p90 = scmp.ne.s32.totalorder %s73, %s89
    %p91 = scmp.eq.s32.totalorder %s25, 0
    %p92 = por %p90, %p91
    %s94 = sadd.s32 %s93, 1
    %p97 = scmp.eq.s32.totalorder %s19, 1
    %p98 = scmp.ne.s32.totalorder %s93, %s95
    %p99 = scmp.eq.s32.totalorder %s19, 0
    %p100 = por %p98, %p99
    %p101 = scmp.ne.s32.totalorder %s93, %s95
    %p102 = scmp.eq.s32.totalorder %s24, 1
    %p103 = por %p101, %p102
    %p104 = scmp.ne.s32.totalorder %s95, %s96
    %p105 = scmp.eq.s32.totalorder %s24, 0
    %p106 = por %p104, %p105
    %p107 = scmp.ne.s32.totalorder %s95, %s96
    %p108 = scmp.eq.s32.totalorder %s25, 1
    %p109 = por %p107, %p108
    %p111 = scmp.ne.s32.totalorder %s96, %s110
    %p112 = scmp.eq.s32.totalorder %s25, 0
    %p113 = por %p111, %p112
    %s115 = sadd.s32 %s114, 1
    %p118 = scmp.eq.s32.totalorder %s19, 1
    %p119 = scmp.ne.s32.totalorder %s114, %s116
    %p120 = scmp.eq.s32.totalorder %s19, 0
    %p121 = por %p119, %p120
    %p122 = scmp.ne.s32.totalorder %s114, %s116
    %p123 = scmp.eq.s32.totalorder %s24, 1
    %p124 = por %p122, %p123
    %p125 = scmp.ne.s32.totalorder %s116, %s117
    %p126 = scmp.eq.s32.totalorder %s24, 0
    %p127 = por %p125, %p126
    %p128 = scmp.ne.s32.totalorder %s116, %s117
    %p129 = scmp.eq.s32.totalorder %s25, 1
    %p130 = por %p128, %p129
    %p132 = scmp.ne.s32.totalorder %s117, %s131
    %p133 = scmp.eq.s32.totalorder %s25, 0
    %p134 = por %p132, %p133
    %s136 = sadd.s32 %s135, 1
    %p139 = scmp.eq.s32.totalorder %s19, 1
    %p140 = scmp.ne.s32.totalorder %s135, %s137
    %p141 = scmp.eq.s32.totalorder %s19, 0
    %p142 = por %p140, %p141
    %p143 = scmp.ne.s32.totalorder %s135, %s137
    %p144 = scmp.eq.s32.totalorder %s24, 1
    %p145 = por %p143, %p144
    %p146 = scmp.ne.s32.totalorder %s137, %s138
    %p147 = scmp.eq.s32.totalorder %s24, 0
    %p148 = por %p146, %p147
    %p149 = scmp.ne.s32.totalorder %s137, %s138
    %p150 = scmp.eq.s32.totalorder %s25, 1
    %p151 = por %p149, %p150
    %p153 = scmp.ne.s32.totalorder %s138, %s152
    %p154 = scmp.eq.s32.totalorder %s25, 0
    %p155 = por %p153, %p154
    %s157 = sadd.s32 %s156, 1
    %p160 = scmp.eq.s32.totalorder %s19, 1
    %p161 = scmp.ne.s32.totalorder %s156, %s158
    %p162 = scmp.eq.s32.totalorder %s19, 0
    %p163 = por %p161, %p162
    %p164 = scmp.ne.s32.totalorder %s156, %s158
    %p165 = scmp.eq.s32.totalorder %s24, 1
    %p166 = por %p164, %p165
    %p167 = scmp.ne.s32.totalorder %s158, %s159
    %p168 = scmp.eq.s32.totalorder %s24, 0
    %p169 = por %p167, %p168
    %p170 = scmp.ne.s32.totalorder %s158, %s159
    %p171 = scmp.eq.s32.totalorder %s25, 1
    %p172 = por %p170, %p171
    %p174 = scmp.ne.s32.totalorder %s159, %s173
    %p175 = scmp.eq.s32.totalorder %s25, 0
    %p176 = por %p174, %p175
    %s178 = sadd.s32 %s177, 1
    %p181 = scmp.eq.s32.totalorder %s19, 1
    %p182 = scmp.ne.s32.totalorder %s177, %s179
    %p183 = scmp.eq.s32.totalorder %s19, 0
    %p184 = por %p182, %p183
    %p185 = scmp.ne.s32.totalorder %s177, %s179
    %p186 = scmp.eq.s32.totalorder %s24, 1
    %p187 = por %p185, %p186
    %p188 = scmp.ne.s32.totalorder %s179, %s180
    %p189 = scmp.eq.s32.totalorder %s24, 0
    %p190 = por %p188, %p189
    %p191 = scmp.ne.s32.totalorder %s179, %s180
    %p192 = scmp.eq.s32.totalorder %s25, 1
    %p193 = por %p191, %p192
    %p195 = scmp.ne.s32.totalorder %s180, %s194
    %p196 = scmp.eq.s32.totalorder %s25, 0
    %p197 = por %p195, %p196
    %s199 = sadd.s32 %s198, 1
    %p202 = scmp.eq.s32.totalorder %s19, 1
    %p203 = scmp.ne.s32.totalorder %s198, %s200
    %p204 = scmp.eq.s32.totalorder %s19, 0
    %p205 = por %p203, %p204
    %p206 = scmp.ne.s32.totalorder %s198, %s200
    %p207 = scmp.eq.s32.totalorder %s24, 1
    %p208 = por %p206, %p207
    %p209 = scmp.ne.s32.totalorder %s200, %s201
    %p210 = scmp.eq.s32.totalorder %s24, 0
    %p211 = por %p209, %p210
    %p212 = scmp.ne.s32.totalorder %s200, %s201
    %p213 = scmp.eq.s32.totalorder %s25, 1
    %p214 = por %p212, %p213
    %p216 = scmp.ne.s32.totalorder %s201, %s215
    %p217 = scmp.eq.s32.totalorder %s25, 0
    %p218 = por %p216, %p217
    %s220 = sadd.s32 %s219, 1
    %p223 = scmp.eq.s32.totalorder %s19, 1
    %p224 = scmp.ne.s32.totalorder %s219, %s221
    %p225 = scmp.eq.s32.totalorder %s19, 0
    %p226 = por %p224, %p225
    %p227 = scmp.ne.s32.totalorder %s219, %s221
    %p228 = scmp.eq.s32.totalorder %s24, 1
    %p229 = por %p227, %p228
    %p230 = scmp.ne.s32.totalorder %s221, %s222
    %p231 = scmp.eq.s32.totalorder %s24, 0
    %p232 = por %p230, %p231
    %p233 = scmp.ne.s32.totalorder %s221, %s222
    %p234 = scmp.eq.s32.totalorder %s25, 1
    %p235 = por %p233, %p234
    %p237 = scmp.ne.s32.totalorder %s222, %s236
    %p238 = scmp.eq.s32.totalorder %s25, 0
    %p239 = por %p237, %p238
    %s241 = sadd.s32 %s240, 1
    %p244 = scmp.eq.s32.totalorder %s19, 1
    %p245 = scmp.ne.s32.totalorder %s240, %s242
    %p246 = scmp.eq.s32.totalorder %s19, 0
    %p247 = por %p245, %p246
    %p248 = scmp.ne.s32.totalorder %s240, %s242
    %p249 = scmp.eq.s32.totalorder %s24, 1
    %p250 = por %p248, %p249
    %p251 = scmp.ne.s32.totalorder %s242, %s243
    %p252 = scmp.eq.s32.totalorder %s24, 0
    %p253 = por %p251, %p252
    %p254 = scmp.ne.s32.totalorder %s242, %s243
    %p255 = scmp.eq.s32.totalorder %s25, 1
    %p256 = por %p254, %p255
    %p258 = scmp.ne.s32.totalorder %s243, %s257
    %p259 = scmp.eq.s32.totalorder %s25, 0
    %p260 = por %p258, %p259
    %s262 = sadd.s32 %s261, 1
    %p265 = scmp.eq.s32.totalorder %s19, 1
    %p266 = scmp.ne.s32.totalorder %s261, %s263
    %p267 = scmp.eq.s32.totalorder %s19, 0
    %p268 = por %p266, %p267
    %p269 = scmp.ne.s32.totalorder %s261, %s263
    %p270 = scmp.eq.s32.totalorder %s24, 1
    %p271 = por %p269, %p270
    %p272 = scmp.ne.s32.totalorder %s263, %s264
    %p273 = scmp.eq.s32.totalorder %s24, 0
    %p274 = por %p272, %p273
    %p275 = scmp.ne.s32.totalorder %s263, %s264
    %p276 = scmp.eq.s32.totalorder %s25, 1
    %p277 = por %p275, %p276
    %p279 = scmp.ne.s32.totalorder %s264, %s278
    %p280 = scmp.eq.s32.totalorder %s25, 0
    %p281 = por %p279, %p280
    %s282 = ssub.s32 %s26, %s38
    %s283 = ssub.s32 %s27, %s34
    %s284 = sor.u32 %s282, %s283
    %p285 = scmp.eq.s32.totalorder %s284, 0
    %s287 = sadd.s32 %s286, 1
    %s288 = scalar_select %p285, %s286, %s287
    %p291 = pneg %p285
    %p292 = scmp.eq.s32.totalorder %s19, 1
    %p293 = por %p291, %p292
    %p294 = scmp.ne.s32.totalorder %s286, %s289
    %p295 = scmp.eq.s32.totalorder %s19, 0
    %p296 = por %p294, %p295
    %p297 = scmp.ne.s32.totalorder %s286, %s289
    %p298 = scmp.eq.s32.totalorder %s24, 1
    %p299 = por %p297, %p298
    %p300 = scmp.ne.s32.totalorder %s289, %s290
    %p301 = scmp.eq.s32.totalorder %s24, 0
    %p302 = por %p300, %p301
    %p303 = scmp.ne.s32.totalorder %s289, %s290
    %p304 = scmp.eq.s32.totalorder %s25, 1
    %p305 = por %p303, %p304
    %p307 = scmp.ne.s32.totalorder %s290, %s306
    %p308 = scmp.eq.s32.totalorder %s25, 0
    %p309 = por %p307, %p308
    %p310 = scmp.le.s32.totalorder 1, %s19
    %p311 = scmp.lt.s32.totalorder %s19, 3
    %p312 = pnand %p310, %p311
    %p313 = pneg %p312
    // Predicated region
    $region9: #{wrapper_forward.1} parent=5 // pred_check
      _
    $region10: #{wrapper_forward.1} parent=5 // pred_check_branch
      %315 = sbr.rel (%p312) target = $region12
    $region11: #{wrapper_forward.1} parent=5 // pred_region
      %s316 = ssub.s32 %s19, 1
      // Predicated region
      $region13: #{wrapper_forward.1} parent=11 // pred_check
        %p317 = pneg %p57
      $region14: #{wrapper_forward.1} parent=11 // pred_check_branch
        %319 = sbr.rel (%p317) target = $region16
      $region15: #{wrapper_forward.1} parent=11 // pred_region
        %p320 = scmp.lt.s32.totalorder %s29, 0
        %s321 = scalar_select %p320, %s29, 0
        %s322 = smul.addr %s321, 64
        %s323 = smul.addr %s322, 8
        %s324 = scalar_lea.vmem %s0, %s323
      $region16: #{wrapper_forward.1} parent=11 // pred_fallthru
        _
      // Predicated region
      $region17: #{wrapper_forward.1} parent=11 // pred_check
        %p325 = pneg %p106
      $region18: #{wrapper_forward.1} parent=11 // pred_check_branch
        %327 = sbr.rel (%p325) target = $region20
      $region19: #{wrapper_forward.1} parent=11 // pred_region
        _
      $region20: #{wrapper_forward.1} parent=11 // pred_fallthru
        _
      // Predicated region
      $region21: #{wrapper_forward.1} parent=11 // pred_check
        %p328 = pneg %p127
      $region22: #{wrapper_forward.1} parent=11 // pred_check_branch
        %330 = sbr.rel (%p328) target = $region24
      $region23: #{wrapper_forward.1} parent=11 // pred_region
        _
      $region24: #{wrapper_forward.1} parent=11 // pred_fallthru
        _
      // Predicated region
      $region25: #{wrapper_forward.1} parent=11 // pred_check
        %p331 = pneg %p148
      $region26: #{wrapper_forward.1} parent=11 // pred_check_branch
        %333 = sbr.rel (%p331) target = $region28
      $region27: #{wrapper_forward.1} parent=11 // pred_region
        _
      $region28: #{wrapper_forward.1} parent=11 // pred_fallthru
        _
      // Predicated region
      $region29: #{wrapper_forward.1} parent=11 // pred_check
        %p334 = pneg %p169
      $region30: #{wrapper_forward.1} parent=11 // pred_check_branch
        %336 = sbr.rel (%p334) target = $region32
      $region31: #{wrapper_forward.1} parent=11 // pred_region
        _
      $region32: #{wrapper_forward.1} parent=11 // pred_fallthru
        _
      // Predicated region
      $region33: #{wrapper_forward.1} parent=11 // pred_check
        %p337 = pneg %p190
      $region34: #{wrapper_forward.1} parent=11 // pred_check_branch
        %339 = sbr.rel (%p337) target = $region36
      $region35: #{wrapper_forward.1} parent=11 // pred_region
        _
      $region36: #{wrapper_forward.1} parent=11 // pred_fallthru
        _
      // Predicated region
      $region37: #{wrapper_forward.1} parent=11 // pred_check
        %p340 = pneg %p211
      $region38: #{wrapper_forward.1} parent=11 // pred_check_branch
        %342 = sbr.rel (%p340) target = $region40
      $region39: #{wrapper_forward.1} parent=11 // pred_region
        _
      $region40: #{wrapper_forward.1} parent=11 // pred_fallthru
        _
      // Predicated region
      $region41: #{wrapper_forward.1} parent=11 // pred_check
        %p343 = pneg %p232
      $region42: #{wrapper_forward.1} parent=11 // pred_check_branch
        %345 = sbr.rel (%p343) target = $region44
      $region43: #{wrapper_forward.1} parent=11 // pred_region
        _
      $region44: #{wrapper_forward.1} parent=11 // pred_fallthru
        _
      // Predicated region
      $region45: #{wrapper_forward.1} parent=11 // pred_check
        %p346 = pneg %p253
      $region46: #{wrapper_forward.1} parent=11 // pred_check_branch
        %348 = sbr.rel (%p346) target = $region48
      $region47: #{wrapper_forward.1} parent=11 // pred_region
        _
      $region48: #{wrapper_forward.1} parent=11 // pred_fallthru
        _
      // Predicated region
      $region49: #{wrapper_forward.1} parent=11 // pred_check
        %p349 = pneg %p274
      $region50: #{wrapper_forward.1} parent=11 // pred_check_branch
        %351 = sbr.rel (%p349) target = $region52
      $region51: #{wrapper_forward.1} parent=11 // pred_region
        _
      $region52: #{wrapper_forward.1} parent=11 // pred_fallthru
        _
    $region12: #{wrapper_forward.1} parent=5 // pred_fallthru
      _
    %p352 = scmp.lt.s32.totalorder %s19, 2
    // Predicated region
    $region53: #{wrapper_forward.1} parent=5 // pred_check
      %p353 = pneg %p352
    $region54: #{wrapper_forward.1} parent=5 // pred_check_branch
      %355 = sbr.rel (%p353) target = $region56
    $region55: #{wrapper_forward.1} parent=5 // pred_region
      // Predicated region
      $region57: #{wrapper_forward.1} parent=55 // pred_check
        %p356 = pneg %p79
      $region58: #{wrapper_forward.1} parent=55 // pred_check_branch
        %358 = sbr.rel (%p356) target = $region60
      $region59: #{wrapper_forward.1} parent=55 // pred_region
        %p359 = scmp.lt.s32.totalorder %s26, 1
        %s360 = scalar_select %p359, %s26, 1
        %p361 = scmp.lt.s32.totalorder %s27, 0
        %s362 = scalar_select %p361, %s27, 0
        %s363 = smul.addr %s362, 64
        %s364 = smul.addr %s360, 64
        %s365 = sadd.s32 %s363, %s364
        %s366 = smul.addr %s365, 4
        %s367 = scalar_lea.vmem %s1, %s366
      $region60: #{wrapper_forward.1} parent=55 // pred_fallthru
        _
    $region56: #{wrapper_forward.1} parent=5 // pred_fallthru
      _
    %p368 = scmp.le.s32.totalorder 1, %s19
    %p369 = scmp.lt.s32.totalorder %s19, 3
    %p370 = pnand %p368, %p369
    %p371 = pneg %p370
    // Predicated region
    $region61: #{wrapper_forward.1} parent=5 // pred_check
      _
    $region62: #{wrapper_forward.1} parent=5 // pred_check_branch
      %373 = sbr.rel (%p370) target = $region64
    $region63: #{wrapper_forward.1} parent=5 // pred_region
      %s374 = ssub.s32 %s19, 1
      %p375 = scmp.lt.s32.totalorder %s29, 0
      %s376 = scalar_select %p375, %s29, 0
      %s377 = smul.addr %s376, 64
      %s378 = smul.addr %s377, 8
      %s379 = scalar_lea.vmem %s0, %s378
      %p380 = pneg %p57
      %p381 = pneg %p54
      %p382 = scmp.lt.s32.totalorder %s28, 1
      %s383 = scalar_select %p382, %s28, 1
      %p384 = scmp.lt.s32.totalorder %s29, 0
      %s385 = scalar_select %p384, %s29, 0
      %s386 = smul.addr %s385, 64
      %s387 = smul.addr %s383, 64
      %s388 = sadd.s32 %s386, %s387
      %s389 = smul.addr %s388, 4
      %s390 = scalar_lea.vmem %s1, %s389
      %p391 = pneg %p85
      %p392 = pneg %p82
      %p393 = pneg %p106
      %p394 = pneg %p103
      %p395 = pneg %p127
      %p396 = pneg %p124
      %p397 = pneg %p148
      %p398 = pneg %p145
      %p399 = pneg %p169
      %p400 = pneg %p166
      %p401 = pneg %p190
      %p402 = pneg %p187
      %p403 = pneg %p211
      %p404 = pneg %p208
      %p405 = pneg %p232
      %p406 = pneg %p229
      %p407 = pneg %p253
      %p408 = pneg %p250
      %p409 = pneg %p274
      %p410 = pneg %p271
      %p411 = pneg %p302
      %p412 = pneg %p299
      %p413 = scmp.lt.s32.totalorder %s28, 1
      %s414 = scalar_select %p413, %s28, 1
      %p415 = scmp.lt.s32.totalorder %s29, 0
      %s416 = scalar_select %p415, %s29, 0
      %s417 = smul.addr %s416, 4
      %s418 = smul.addr %s414, 4
      %s419 = sadd.s32 %s417, %s418
      %s420 = scalar_lea.vmem %s11, %s419
      %p421 = scmp.lt.s32.totalorder %s29, 0
      %s422 = scalar_select %p421, %s29, 0
      %s423 = smul.addr %s422, 64
      %s424 = smul.addr %s423, 8
      %s425 = scalar_lea.vmem %s0, %s424
      %p426 = scmp.lt.s32.totalorder %s28, 1
      %s427 = scalar_select %p426, %s28, 1
      %p428 = scmp.lt.s32.totalorder %s29, 0
      %s429 = scalar_select %p428, %s29, 0
      %s430 = smul.addr %s429, 64
      %s431 = smul.addr %s427, 64
      %s432 = sadd.s32 %s430, %s431
      %s433 = smul.addr %s432, 4
      %s434 = scalar_lea.vmem %s1, %s433
      %p435 = scmp.lt.s32.totalorder %s28, 1
      %s436 = scalar_select %p435, %s28, 1
      %p437 = scmp.lt.s32.totalorder %s29, 0
      %s438 = scalar_select %p437, %s29, 0
      %s439 = smul.addr %s438, 4
      %s440 = smul.addr %s436, 4
      %s441 = sadd.s32 %s439, %s440
      %s442 = scalar_lea.vmem %s11, %s441
      %v443 = vld [vmem:[%s434] sm:$0xf]
      %v444 = vld [vmem:[%s434 + $0x4] sm:$0xf]
      %v445 = vld [vmem:[%s434 + $0x8] sm:$0xf]
      %v446 = vld [vmem:[%s434 + $0xc] sm:$0xf]
      %v447 = vld [vmem:[%s434 + $0x10] sm:$0xf]
      %v448 = vld [vmem:[%s434 + $0x14] sm:$0xf]
      %v449 = vld [vmem:[%s434 + $0x18] sm:$0xf]
      %v450 = vld [vmem:[%s434 + $0x1c] sm:$0xf]
      %v451 = vld [vmem:[%s434 + $0x20] sm:$0xf]
      %v452 = vld [vmem:[%s434 + $0x24] sm:$0xf]
      %v453 = vld [vmem:[%s434 + $0x28] sm:$0xf]
      %v454 = vld [vmem:[%s434 + $0x2c] sm:$0xf]
      %v455 = vld [vmem:[%s434 + $0x30] sm:$0xf]
      %v456 = vld [vmem:[%s434 + $0x34] sm:$0xf]
      %v457 = vld [vmem:[%s434 + $0x38] sm:$0xf]
      %v458 = vld [vmem:[%s434 + $0x3c] sm:$0xf]
      %v459 = vld [vmem:[%s434 + $0x40] sm:$0xf]
      %v460 = vld [vmem:[%s434 + $0x44] sm:$0xf]
      %v461 = vld [vmem:[%s434 + $0x48] sm:$0xf]
      %v462 = vld [vmem:[%s434 + $0x4c] sm:$0xf]
      %v463 = vld [vmem:[%s434 + $0x50] sm:$0xf]
      %v464 = vld [vmem:[%s434 + $0x54] sm:$0xf]
      %v465 = vld [vmem:[%s434 + $0x58] sm:$0xf]
      %v466 = vld [vmem:[%s434 + $0x5c] sm:$0xf]
      %v467 = vld [vmem:[%s434 + $0x60] sm:$0xf]
      %v468 = vld [vmem:[%s434 + $0x64] sm:$0xf]
      %v469 = vld [vmem:[%s434 + $0x68] sm:$0xf]
      %v470 = vld [vmem:[%s434 + $0x6c] sm:$0xf]
      %v471 = vld [vmem:[%s434 + $0x70] sm:$0xf]
      %v472 = vld [vmem:[%s434 + $0x74] sm:$0xf]
      %v473 = vld [vmem:[%s434 + $0x78] sm:$0xf]
      %v474 = vld [vmem:[%s434 + $0x7c] sm:$0xf]
      %v475 = vld [vmem:[%s434 + $0x80] sm:$0xf]
      %v476 = vld [vmem:[%s434 + $0x84] sm:$0xf]
      %v477 = vld [vmem:[%s434 + $0x88] sm:$0xf]
      %v478 = vld [vmem:[%s434 + $0x8c] sm:$0xf]
      %v479 = vld [vmem:[%s434 + $0x90] sm:$0xf]
      %v480 = vld [vmem:[%s434 + $0x94] sm:$0xf]
      %v481 = vld [vmem:[%s434 + $0x98] sm:$0xf]
      %v482 = vld [vmem:[%s434 + $0x9c] sm:$0xf]
      %v483 = vld [vmem:[%s434 + $0xa0] sm:$0xf]
      %v484 = vld [vmem:[%s434 + $0xa4] sm:$0xf]
      %v485 = vld [vmem:[%s434 + $0xa8] sm:$0xf]
      %v486 = vld [vmem:[%s434 + $0xac] sm:$0xf]
      %v487 = vld [vmem:[%s434 + $0xb0] sm:$0xf]
      %v488 = vld [vmem:[%s434 + $0xb4] sm:$0xf]
      %v489 = vld [vmem:[%s434 + $0xb8] sm:$0xf]
      %v490 = vld [vmem:[%s434 + $0xbc] sm:$0xf]
      %v491 = vld [vmem:[%s434 + $0xc0] sm:$0xf]
      %v492 = vld [vmem:[%s434 + $0xc4] sm:$0xf]
      %v493 = vld [vmem:[%s434 + $0xc8] sm:$0xf]
      %v494 = vld [vmem:[%s434 + $0xcc] sm:$0xf]
      %v495 = vld [vmem:[%s434 + $0xd0] sm:$0xf]
      %v496 = vld [vmem:[%s434 + $0xd4] sm:$0xf]
      %v497 = vld [vmem:[%s434 + $0xd8] sm:$0xf]
      %v498 = vld [vmem:[%s434 + $0xdc] sm:$0xf]
      %v499 = vld [vmem:[%s434 + $0xe0] sm:$0xf]
      %v500 = vld [vmem:[%s434 + $0xe4] sm:$0xf]
      %v501 = vld [vmem:[%s434 + $0xe8] sm:$0xf]
      %v502 = vld [vmem:[%s434 + $0xec] sm:$0xf]
      %v503 = vld [vmem:[%s434 + $0xf0] sm:$0xf]
      %v504 = vld [vmem:[%s434 + $0xf4] sm:$0xf]
      %v505 = vld [vmem:[%s434 + $0xf8] sm:$0xf]
      %v506 = vld [vmem:[%s434 + $0xfc] sm:$0xf]
      %v507 = vld [vmem:[%s2] sm:$0xf]
      %v508 = vld [vmem:[%s2 + $0x4] sm:$0xf]
      %v509 = vld [vmem:[%s2 + $0x8] sm:$0xf]
      %v510 = vld [vmem:[%s2 + $0xc] sm:$0xf]
      %v511 = vld [vmem:[%s2 + $0x10] sm:$0xf]
      %v512 = vld [vmem:[%s2 + $0x14] sm:$0xf]
      %v513 = vld [vmem:[%s2 + $0x18] sm:$0xf]
      %v514 = vld [vmem:[%s2 + $0x1c] sm:$0xf]
      %v515 = vld [vmem:[%s2 + $0x20] sm:$0xf]
      %v516 = vld [vmem:[%s2 + $0x24] sm:$0xf]
      %v517 = vld [vmem:[%s2 + $0x28] sm:$0xf]
      %v518 = vld [vmem:[%s2 + $0x2c] sm:$0xf]
      %v519 = vld [vmem:[%s2 + $0x30] sm:$0xf]
      %v520 = vld [vmem:[%s2 + $0x34] sm:$0xf]
      %v521 = vld [vmem:[%s2 + $0x38] sm:$0xf]
      %v522 = vld [vmem:[%s2 + $0x3c] sm:$0xf]
      %v523 = vld [vmem:[%s3] sm:$0x1]
      %v525 = vperm.slane %v523, 0
      %v591 = vunpack.c.l.b16 %v443
      %v592 = vunpack.c.l.b16 %v444
      %v593 = vunpack.c.l.b16 %v445
      %v594 = vunpack.c.l.b16 %v446
      %v595 = vunpack.c.l.b16 %v447
      %v596 = vunpack.c.l.b16 %v448
      %v597 = vunpack.c.l.b16 %v449
      %v598 = vunpack.c.l.b16 %v450
      %v599 = vunpack.c.l.b16 %v451
      %v600 = vunpack.c.l.b16 %v452
      %v601 = vunpack.c.l.b16 %v453
      %v602 = vunpack.c.l.b16 %v454
      %v603 = vunpack.c.l.b16 %v455
      %v604 = vunpack.c.l.b16 %v456
      %v605 = vunpack.c.l.b16 %v457
      %v606 = vunpack.c.l.b16 %v458
      %v607 = vunpack.c.l.b16 %v459
      %v608 = vunpack.c.l.b16 %v460
      %v609 = vunpack.c.l.b16 %v461
      %v610 = vunpack.c.l.b16 %v462
      %v611 = vunpack.c.l.b16 %v463
      %v612 = vunpack.c.l.b16 %v464
      %v613 = vunpack.c.l.b16 %v465
      %v614 = vunpack.c.l.b16 %v466
      %v615 = vunpack.c.l.b16 %v467
      %v616 = vunpack.c.l.b16 %v468
      %v617 = vunpack.c.l.b16 %v469
      %v618 = vunpack.c.l.b16 %v470
      %v619 = vunpack.c.l.b16 %v471
      %v620 = vunpack.c.l.b16 %v472
      %v621 = vunpack.c.l.b16 %v473
      %v622 = vunpack.c.l.b16 %v474
      %v623 = vunpack.c.l.b16 %v475
      %v624 = vunpack.c.l.b16 %v476
      %v625 = vunpack.c.l.b16 %v477
      %v626 = vunpack.c.l.b16 %v478
      %v627 = vunpack.c.l.b16 %v479
      %v628 = vunpack.c.l.b16 %v480
      %v629 = vunpack.c.l.b16 %v481
      %v630 = vunpack.c.l.b16 %v482
      %v631 = vunpack.c.l.b16 %v483
      %v632 = vunpack.c.l.b16 %v484
      %v633 = vunpack.c.l.b16 %v485
      %v634 = vunpack.c.l.b16 %v486
      %v635 = vunpack.c.l.b16 %v487
      %v636 = vunpack.c.l.b16 %v488
      %v637 = vunpack.c.l.b16 %v489
      %v638 = vunpack.c.l.b16 %v490
      %v639 = vunpack.c.l.b16 %v491
      %v640 = vunpack.c.l.b16 %v492
      %v641 = vunpack.c.l.b16 %v493
      %v642 = vunpack.c.l.b16 %v494
      %v643 = vunpack.c.l.b16 %v495
      %v644 = vunpack.c.l.b16 %v496
      %v645 = vunpack.c.l.b16 %v497
      %v646 = vunpack.c.l.b16 %v498
      %v647 = vunpack.c.l.b16 %v499
      %v648 = vunpack.c.l.b16 %v500
      %v649 = vunpack.c.l.b16 %v501
      %v650 = vunpack.c.l.b16 %v502
      %v651 = vunpack.c.l.b16 %v503
      %v652 = vunpack.c.l.b16 %v504
      %v653 = vunpack.c.l.b16 %v505
      %v654 = vunpack.c.l.b16 %v506
      %v655 = vpack.c.b16 %v592, %v591
      %v656 = vpack.c.b16 %v594, %v593
      %v657 = vpack.c.b16 %v596, %v595
      %v658 = vpack.c.b16 %v598, %v597
      %v659 = vpack.c.b16 %v600, %v599
      %v660 = vpack.c.b16 %v602, %v601
      %v661 = vpack.c.b16 %v604, %v603
      %v662 = vpack.c.b16 %v606, %v605
      %v663 = vpack.c.b16 %v608, %v607
      %v664 = vpack.c.b16 %v610, %v609
      %v665 = vpack.c.b16 %v612, %v611
      %v666 = vpack.c.b16 %v614, %v613
      %v667 = vpack.c.b16 %v616, %v615
      %v668 = vpack.c.b16 %v618, %v617
      %v669 = vpack.c.b16 %v620, %v619
      %v670 = vpack.c.b16 %v622, %v621
      %v671 = vpack.c.b16 %v624, %v623
      %v672 = vpack.c.b16 %v626, %v625
      %v673 = vpack.c.b16 %v628, %v627
      %v674 = vpack.c.b16 %v630, %v629
      %v675 = vpack.c.b16 %v632, %v631
      %v676 = vpack.c.b16 %v634, %v633
      %v677 = vpack.c.b16 %v636, %v635
      %v678 = vpack.c.b16 %v638, %v637
      %v679 = vpack.c.b16 %v640, %v639
      %v680 = vpack.c.b16 %v642, %v641
      %v681 = vpack.c.b16 %v644, %v643
      %v682 = vpack.c.b16 %v646, %v645
      %v683 = vpack.c.b16 %v648, %v647
      %v684 = vpack.c.b16 %v650, %v649
      %v685 = vpack.c.b16 %v652, %v651
      %v686 = vpack.c.b16 %v654, %v653
      %v735 = vunpack.c.l.b16 %v507
      %v736 = vunpack.c.l.b16 %v508
      %v737 = vunpack.c.l.b16 %v509
      %v738 = vunpack.c.l.b16 %v510
      %v739 = vunpack.c.l.b16 %v511
      %v740 = vunpack.c.l.b16 %v512
      %v741 = vunpack.c.l.b16 %v513
      %v742 = vunpack.c.l.b16 %v514
      %v743 = vunpack.c.l.b16 %v515
      %v744 = vunpack.c.l.b16 %v516
      %v745 = vunpack.c.l.b16 %v517
      %v746 = vunpack.c.l.b16 %v518
      %v747 = vunpack.c.l.b16 %v519
      %v748 = vunpack.c.l.b16 %v520
      %v749 = vunpack.c.l.b16 %v521
      %v750 = vunpack.c.l.b16 %v522
      %v751 = vpack.c.b16 %v736, %v735
      %v752 = vpack.c.b16 %v738, %v737
      %v753 = vpack.c.b16 %v740, %v739
      %v754 = vpack.c.b16 %v742, %v741
      %v755 = vpack.c.b16 %v744, %v743
      %v756 = vpack.c.b16 %v746, %v745
      %v757 = vpack.c.b16 %v748, %v747
      %v758 = vpack.c.b16 %v750, %v749
      %767 = vmatpush.bf16.msra.mxu0 %v758
      %768 = vmatpush.bf16.msra.mxu0 %v757
      %769 = vmatpush.bf16.msra.mxu0 %v756
      %770 = vmatpush.bf16.msra.mxu0 %v755
      %771 = vmatpush.bf16.msra.mxu0 %v754
      %772 = vmatpush.bf16.msra.mxu0 %v753
      %773 = vmatpush.bf16.msra.mxu0 %v752
      %774 = vmatpush.bf16.msra.mxu0 %v751
      %775 = vmatmul.bf16.gmra.mxu0 %v655
      %v776 = vpop.f32.mrf.mxu0
      %v777 = vadd.f32 %v525, %v776
      %v778 = vpop.f32.mrf.mxu0
      %v779 = vadd.f32 %v525, %v778
      %780 = vmatmul.bf16.gmra.mxu0 %v656
      %v781 = vpop.f32.mrf.mxu0
      %v782 = vadd.f32 %v525, %v781
      %v783 = vpop.f32.mrf.mxu0
      %v784 = vadd.f32 %v525, %v783
      %785 = vmatmul.bf16.gmra.mxu0 %v657
      %v786 = vpop.f32.mrf.mxu0
      %v787 = vadd.f32 %v525, %v786
      %v788 = vpop.f32.mrf.mxu0
      %v789 = vadd.f32 %v525, %v788
      %790 = vmatmul.bf16.gmra.mxu0 %v658
      %v791 = vpop.f32.mrf.mxu0
      %v792 = vadd.f32 %v525, %v791
      %v793 = vpop.f32.mrf.mxu0
      %v794 = vadd.f32 %v525, %v793
      %795 = vmatmul.bf16.gmra.mxu0 %v659
      %v796 = vpop.f32.mrf.mxu0
      %v797 = vadd.f32 %v525, %v796
      %v798 = vpop.f32.mrf.mxu0
      %v799 = vadd.f32 %v525, %v798
      %800 = vmatmul.bf16.gmra.mxu0 %v660
      %v801 = vpop.f32.mrf.mxu0
      %v802 = vadd.f32 %v525, %v801
      %v803 = vpop.f32.mrf.mxu0
      %v804 = vadd.f32 %v525, %v803
      %805 = vmatmul.bf16.gmra.mxu0 %v661
      %v806 = vpop.f32.mrf.mxu0
      %v807 = vadd.f32 %v525, %v806
      %v808 = vpop.f32.mrf.mxu0
      %v809 = vadd.f32 %v525, %v808
      %810 = vmatmul.bf16.gmra.mxu0 %v662
      %v811 = vpop.f32.mrf.mxu0
      %v812 = vadd.f32 %v525, %v811
      %v813 = vpop.f32.mrf.mxu0
      %v814 = vadd.f32 %v525, %v813
      %815 = vmatmul.bf16.gmra.mxu0 %v663
      %v816 = vpop.f32.mrf.mxu0
      %v817 = vadd.f32 %v525, %v816
      %v818 = vpop.f32.mrf.mxu0
      %v819 = vadd.f32 %v525, %v818
      %820 = vmatmul.bf16.gmra.mxu0 %v664
      %v821 = vpop.f32.mrf.mxu0
      %v822 = vadd.f32 %v525, %v821
      %v823 = vpop.f32.mrf.mxu0
      %v824 = vadd.f32 %v525, %v823
      %825 = vmatmul.bf16.gmra.mxu0 %v665
      %v826 = vpop.f32.mrf.mxu0
      %v827 = vadd.f32 %v525, %v826
      %v828 = vpop.f32.mrf.mxu0
      %v829 = vadd.f32 %v525, %v828
      %830 = vmatmul.bf16.gmra.mxu0 %v666
      %v831 = vpop.f32.mrf.mxu0
      %v832 = vadd.f32 %v525, %v831
      %v833 = vpop.f32.mrf.mxu0
      %v834 = vadd.f32 %v525, %v833
      %835 = vmatmul.bf16.gmra.mxu0 %v667
      %v836 = vpop.f32.mrf.mxu0
      %v837 = vadd.f32 %v525, %v836
      %v838 = vpop.f32.mrf.mxu0
      %v839 = vadd.f32 %v525, %v838
      %840 = vmatmul.bf16.gmra.mxu0 %v668
      %v841 = vpop.f32.mrf.mxu0
      %v842 = vadd.f32 %v525, %v841
      %v843 = vpop.f32.mrf.mxu0
      %v844 = vadd.f32 %v525, %v843
      %845 = vmatmul.bf16.gmra.mxu0 %v669
      %v846 = vpop.f32.mrf.mxu0
      %v847 = vadd.f32 %v525, %v846
      %v848 = vpop.f32.mrf.mxu0
      %v849 = vadd.f32 %v525, %v848
      %850 = vmatmul.bf16.gmra.mxu0 %v670
      %v851 = vpop.f32.mrf.mxu0
      %v852 = vadd.f32 %v525, %v851
      %v853 = vpop.f32.mrf.mxu0
      %v854 = vadd.f32 %v525, %v853
      %855 = vmatmul.bf16.gmra.mxu0 %v671
      %v856 = vpop.f32.mrf.mxu0
      %v857 = vadd.f32 %v525, %v856
      %v858 = vpop.f32.mrf.mxu0
      %v859 = vadd.f32 %v525, %v858
      %860 = vmatmul.bf16.gmra.mxu0 %v672
      %v861 = vpop.f32.mrf.mxu0
      %v862 = vadd.f32 %v525, %v861
      %v863 = vpop.f32.mrf.mxu0
      %v864 = vadd.f32 %v525, %v863
      %865 = vmatmul.bf16.gmra.mxu0 %v673
      %v866 = vpop.f32.mrf.mxu0
      %v867 = vadd.f32 %v525, %v866
      %v868 = vpop.f32.mrf.mxu0
      %v869 = vadd.f32 %v525, %v868
      %870 = vmatmul.bf16.gmra.mxu0 %v674
      %v871 = vpop.f32.mrf.mxu0
      %v872 = vadd.f32 %v525, %v871
      %v873 = vpop.f32.mrf.mxu0
      %v874 = vadd.f32 %v525, %v873
      %875 = vmatmul.bf16.gmra.mxu0 %v675
      %v876 = vpop.f32.mrf.mxu0
      %v877 = vadd.f32 %v525, %v876
      %v878 = vpop.f32.mrf.mxu0
      %v879 = vadd.f32 %v525, %v878
      %880 = vmatmul.bf16.gmra.mxu0 %v676
      %v881 = vpop.f32.mrf.mxu0
      %v882 = vadd.f32 %v525, %v881
      %v883 = vpop.f32.mrf.mxu0
      %v884 = vadd.f32 %v525, %v883
      %885 = vmatmul.bf16.gmra.mxu0 %v677
      %v886 = vpop.f32.mrf.mxu0
      %v887 = vadd.f32 %v525, %v886
      %v888 = vpop.f32.mrf.mxu0
      %v889 = vadd.f32 %v525, %v888
      %890 = vmatmul.bf16.gmra.mxu0 %v678
      %v891 = vpop.f32.mrf.mxu0
      %v892 = vadd.f32 %v525, %v891
      %v893 = vpop.f32.mrf.mxu0
      %v894 = vadd.f32 %v525, %v893
      %895 = vmatmul.bf16.gmra.mxu0 %v679
      %v896 = vpop.f32.mrf.mxu0
      %v897 = vadd.f32 %v525, %v896
      %v898 = vpop.f32.mrf.mxu0
      %v899 = vadd.f32 %v525, %v898
      %900 = vmatmul.bf16.gmra.mxu0 %v680
      %v901 = vpop.f32.mrf.mxu0
      %v902 = vadd.f32 %v525, %v901
      %v903 = vpop.f32.mrf.mxu0
      %v904 = vadd.f32 %v525, %v903
      %905 = vmatmul.bf16.gmra.mxu0 %v681
      %v906 = vpop.f32.mrf.mxu0
      %v907 = vadd.f32 %v525, %v906
      %v908 = vpop.f32.mrf.mxu0
      %v909 = vadd.f32 %v525, %v908
      %910 = vmatmul.bf16.gmra.mxu0 %v682
      %v911 = vpop.f32.mrf.mxu0
      %v912 = vadd.f32 %v525, %v911
      %v913 = vpop.f32.mrf.mxu0
      %v914 = vadd.f32 %v525, %v913
      %915 = vmatmul.bf16.gmra.mxu0 %v683
      %v916 = vpop.f32.mrf.mxu0
      %v917 = vadd.f32 %v525, %v916
      %v918 = vpop.f32.mrf.mxu0
      %v919 = vadd.f32 %v525, %v918
      %920 = vmatmul.bf16.gmra.mxu0 %v684
      %v921 = vpop.f32.mrf.mxu0
      %v922 = vadd.f32 %v525, %v921
      %v923 = vpop.f32.mrf.mxu0
      %v924 = vadd.f32 %v525, %v923
      %925 = vmatmul.bf16.gmra.mxu0 %v685
      %v926 = vpop.f32.mrf.mxu0
      %v927 = vadd.f32 %v525, %v926
      %v928 = vpop.f32.mrf.mxu0
      %v929 = vadd.f32 %v525, %v928
      %930 = vmatmul.bf16.gmra.mxu0 %v686
      %v931 = vpop.f32.mrf.mxu0
      %v932 = vadd.f32 %v525, %v931
      %v933 = vpop.f32.mrf.mxu0
      %v934 = vadd.f32 %v525, %v933
      %935 = vdwg.mxu0
      %v936 = vmax.f32 %v777, 0.0
      %v937 = vmax.f32 %v779, 0.0
      %v938 = vmax.f32 %v782, 0.0
      %v939 = vmax.f32 %v784, 0.0
      %v940 = vmax.f32 %v787, 0.0
      %v941 = vmax.f32 %v789, 0.0
      %v942 = vmax.f32 %v792, 0.0
      %v943 = vmax.f32 %v794, 0.0
      %v944 = vmax.f32 %v797, 0.0
      %v945 = vmax.f32 %v799, 0.0
      %v946 = vmax.f32 %v802, 0.0
      %v947 = vmax.f32 %v804, 0.0
      %v948 = vmax.f32 %v807, 0.0
      %v949 = vmax.f32 %v809, 0.0
      %v950 = vmax.f32 %v812, 0.0
      %v951 = vmax.f32 %v814, 0.0
      %v952 = vmax.f32 %v817, 0.0
      %v953 = vmax.f32 %v819, 0.0
      %v954 = vmax.f32 %v822, 0.0
      %v955 = vmax.f32 %v824, 0.0
      %v956 = vmax.f32 %v827, 0.0
      %v957 = vmax.f32 %v829, 0.0
      %v958 = vmax.f32 %v832, 0.0
      %v959 = vmax.f32 %v834, 0.0
      %v960 = vmax.f32 %v837, 0.0
      %v961 = vmax.f32 %v839, 0.0
      %v962 = vmax.f32 %v842, 0.0
      %v963 = vmax.f32 %v844, 0.0
      %v964 = vmax.f32 %v847, 0.0
      %v965 = vmax.f32 %v849, 0.0
      %v966 = vmax.f32 %v852, 0.0
      %v967 = vmax.f32 %v854, 0.0
      %v968 = vmax.f32 %v857, 0.0
      %v969 = vmax.f32 %v859, 0.0
      %v970 = vmax.f32 %v862, 0.0
      %v971 = vmax.f32 %v864, 0.0
      %v972 = vmax.f32 %v867, 0.0
      %v973 = vmax.f32 %v869, 0.0
      %v974 = vmax.f32 %v872, 0.0
      %v975 = vmax.f32 %v874, 0.0
      %v976 = vmax.f32 %v877, 0.0
      %v977 = vmax.f32 %v879, 0.0
      %v978 = vmax.f32 %v882, 0.0
      %v979 = vmax.f32 %v884, 0.0
      %v980 = vmax.f32 %v887, 0.0
      %v981 = vmax.f32 %v889, 0.0
      %v982 = vmax.f32 %v892, 0.0
      %v983 = vmax.f32 %v894, 0.0
      %v984 = vmax.f32 %v897, 0.0
      %v985 = vmax.f32 %v899, 0.0
      %v986 = vmax.f32 %v902, 0.0
      %v987 = vmax.f32 %v904, 0.0
      %v988 = vmax.f32 %v907, 0.0
      %v989 = vmax.f32 %v909, 0.0
      %v990 = vmax.f32 %v912, 0.0
      %v991 = vmax.f32 %v914, 0.0
      %v992 = vmax.f32 %v917, 0.0
      %v993 = vmax.f32 %v919, 0.0
      %v994 = vmax.f32 %v922, 0.0
      %v995 = vmax.f32 %v924, 0.0
      %v996 = vmax.f32 %v927, 0.0
      %v997 = vmax.f32 %v929, 0.0
      %v998 = vmax.f32 %v932, 0.0
      %v999 = vmax.f32 %v934, 0.0
      %v1000 = vmin.f32 %v936, 6.0
      %v1001 = vmin.f32 %v937, 6.0
      %v1002 = vmin.f32 %v938, 6.0
      %v1003 = vmin.f32 %v939, 6.0
      %v1004 = vmin.f32 %v940, 6.0
      %v1005 = vmin.f32 %v941, 6.0
      %v1006 = vmin.f32 %v942, 6.0
      %v1007 = vmin.f32 %v943, 6.0
      %v1008 = vmin.f32 %v944, 6.0
      %v1009 = vmin.f32 %v945, 6.0
      %v1010 = vmin.f32 %v946, 6.0
      %v1011 = vmin.f32 %v947, 6.0
      %v1012 = vmin.f32 %v948, 6.0
      %v1013 = vmin.f32 %v949, 6.0
      %v1014 = vmin.f32 %v950, 6.0
      %v1015 = vmin.f32 %v951, 6.0
      %v1016 = vmin.f32 %v952, 6.0
      %v1017 = vmin.f32 %v953, 6.0
      %v1018 = vmin.f32 %v954, 6.0
      %v1019 = vmin.f32 %v955, 6.0
      %v1020 = vmin.f32 %v956, 6.0
      %v1021 = vmin.f32 %v957, 6.0
      %v1022 = vmin.f32 %v958, 6.0
      %v1023 = vmin.f32 %v959, 6.0
      %v1024 = vmin.f32 %v960, 6.0
      %v1025 = vmin.f32 %v961, 6.0
      %v1026 = vmin.f32 %v962, 6.0
      %v1027 = vmin.f32 %v963, 6.0
      %v1028 = vmin.f32 %v964, 6.0
      %v1029 = vmin.f32 %v965, 6.0
      %v1030 = vmin.f32 %v966, 6.0
      %v1031 = vmin.f32 %v967, 6.0
      %v1032 = vmin.f32 %v968, 6.0
      %v1033 = vmin.f32 %v969, 6.0
      %v1034 = vmin.f32 %v970, 6.0
      %v1035 = vmin.f32 %v971, 6.0
      %v1036 = vmin.f32 %v972, 6.0
      %v1037 = vmin.f32 %v973, 6.0
      %v1038 = vmin.f32 %v974, 6.0
      %v1039 = vmin.f32 %v975, 6.0
      %v1040 = vmin.f32 %v976, 6.0
      %v1041 = vmin.f32 %v977, 6.0
      %v1042 = vmin.f32 %v978, 6.0
      %v1043 = vmin.f32 %v979, 6.0
      %v1044 = vmin.f32 %v980, 6.0
      %v1045 = vmin.f32 %v981, 6.0
      %v1046 = vmin.f32 %v982, 6.0
      %v1047 = vmin.f32 %v983, 6.0
      %v1048 = vmin.f32 %v984, 6.0
      %v1049 = vmin.f32 %v985, 6.0
      %v1050 = vmin.f32 %v986, 6.0
      %v1051 = vmin.f32 %v987, 6.0
      %v1052 = vmin.f32 %v988, 6.0
      %v1053 = vmin.f32 %v989, 6.0
      %v1054 = vmin.f32 %v990, 6.0
      %v1055 = vmin.f32 %v991, 6.0
      %v1056 = vmin.f32 %v992, 6.0
      %v1057 = vmin.f32 %v993, 6.0
      %v1058 = vmin.f32 %v994, 6.0
      %v1059 = vmin.f32 %v995, 6.0
      %v1060 = vmin.f32 %v996, 6.0
      %v1061 = vmin.f32 %v997, 6.0
      %v1062 = vmin.f32 %v998, 6.0
      %v1063 = vmin.f32 %v999, 6.0
      %v1064 = vpack.c.bf16 %v1001, %v1000
      %v1065 = vpack.c.bf16 %v1003, %v1002
      %v1066 = vpack.c.bf16 %v1005, %v1004
      %v1067 = vpack.c.bf16 %v1007, %v1006
      %v1068 = vpack.c.bf16 %v1009, %v1008
      %v1069 = vpack.c.bf16 %v1011, %v1010
      %v1070 = vpack.c.bf16 %v1013, %v1012
      %v1071 = vpack.c.bf16 %v1015, %v1014
      %v1072 = vpack.c.bf16 %v1017, %v1016
      %v1073 = vpack.c.bf16 %v1019, %v1018
      %v1074 = vpack.c.bf16 %v1021, %v1020
      %v1075 = vpack.c.bf16 %v1023, %v1022
      %v1076 = vpack.c.bf16 %v1025, %v1024
      %v1077 = vpack.c.bf16 %v1027, %v1026
      %v1078 = vpack.c.bf16 %v1029, %v1028
      %v1079 = vpack.c.bf16 %v1031, %v1030
      %v1080 = vpack.c.bf16 %v1033, %v1032
      %v1081 = vpack.c.bf16 %v1035, %v1034
      %v1082 = vpack.c.bf16 %v1037, %v1036
      %v1083 = vpack.c.bf16 %v1039, %v1038
      %v1084 = vpack.c.bf16 %v1041, %v1040
      %v1085 = vpack.c.bf16 %v1043, %v1042
      %v1086 = vpack.c.bf16 %v1045, %v1044
      %v1087 = vpack.c.bf16 %v1047, %v1046
      %v1088 = vpack.c.bf16 %v1049, %v1048
      %v1089 = vpack.c.bf16 %v1051, %v1050
      %v1090 = vpack.c.bf16 %v1053, %v1052
      %v1091 = vpack.c.bf16 %v1055, %v1054
      %v1092 = vpack.c.bf16 %v1057, %v1056
      %v1093 = vpack.c.bf16 %v1059, %v1058
      %v1094 = vpack.c.bf16 %v1061, %v1060
      %v1095 = vpack.c.bf16 %v1063, %v1062
      %v1096 = vld [vmem:[%s4] sm:$0xf]
      %v1097 = vld [vmem:[%s4 + $0x4] sm:$0xf]
      %v1098 = vld [vmem:[%s4 + $0x8] sm:$0xf]
      %v1099 = vld [vmem:[%s4 + $0xc] sm:$0xf]
      %v1100 = vld [vmem:[%s4 + $0x10] sm:$0xf]
      %v1101 = vld [vmem:[%s4 + $0x14] sm:$0xf]
      %v1102 = vld [vmem:[%s4 + $0x18] sm:$0xf]
      %v1103 = vld [vmem:[%s4 + $0x1c] sm:$0xf]
      %v1104 = vld [vmem:[%s4 + $0x20] sm:$0xf]
      %v1105 = vld [vmem:[%s4 + $0x24] sm:$0xf]
      %v1106 = vld [vmem:[%s4 + $0x28] sm:$0xf]
      %v1107 = vld [vmem:[%s4 + $0x2c] sm:$0xf]
      %v1108 = vld [vmem:[%s4 + $0x30] sm:$0xf]
      %v1109 = vld [vmem:[%s4 + $0x34] sm:$0xf]
      %v1110 = vld [vmem:[%s4 + $0x38] sm:$0xf]
      %v1111 = vld [vmem:[%s4 + $0x3c] sm:$0xf]
      %v1112 = vld [vmem:[%s5] sm:$0x1]
      %v1114 = vperm.slane %v1112, 0
      %v1132 = vunpack.c.l.b16 %v1096
      %v1133 = vunpack.c.l.b16 %v1097
      %v1134 = vunpack.c.l.b16 %v1098
      %v1135 = vunpack.c.l.b16 %v1099
      %v1136 = vunpack.c.l.b16 %v1100
      %v1137 = vunpack.c.l.b16 %v1101
      %v1138 = vunpack.c.l.b16 %v1102
      %v1139 = vunpack.c.l.b16 %v1103
      %v1140 = vunpack.c.l.b16 %v1104
      %v1141 = vunpack.c.l.b16 %v1105
      %v1142 = vunpack.c.l.b16 %v1106
      %v1143 = vunpack.c.l.b16 %v1107
      %v1144 = vunpack.c.l.b16 %v1108
      %v1145 = vunpack.c.l.b16 %v1109
      %v1146 = vunpack.c.l.b16 %v1110
      %v1147 = vunpack.c.l.b16 %v1111
      %v1148 = vpack.c.b16 %v1133, %v1132
      %v1149 = vpack.c.b16 %v1135, %v1134
      %v1150 = vpack.c.b16 %v1137, %v1136
      %v1151 = vpack.c.b16 %v1139, %v1138
      %v1152 = vpack.c.b16 %v1141, %v1140
      %v1153 = vpack.c.b16 %v1143, %v1142
      %v1154 = vpack.c.b16 %v1145, %v1144
      %v1155 = vpack.c.b16 %v1147, %v1146
      %1164 = vmatpush.bf16.msra.mxu0 %v1155
      %1165 = vmatpush.bf16.msra.mxu0 %v1154
      %1166 = vmatpush.bf16.msra.mxu0 %v1153
      %1167 = vmatpush.bf16.msra.mxu0 %v1152
      %1168 = vmatpush.bf16.msra.mxu0 %v1151
      %1169 = vmatpush.bf16.msra.mxu0 %v1150
      %1170 = vmatpush.bf16.msra.mxu0 %v1149
      %1171 = vmatpush.bf16.msra.mxu0 %v1148
      %1172 = vmatmul.bf16.gmra.mxu0 %v1064
      %v1173 = vpop.f32.mrf.mxu0
      %v1174 = vadd.f32 %v1114, %v1173
      %v1175 = vpop.f32.mrf.mxu0
      %v1176 = vadd.f32 %v1114, %v1175
      %1177 = vmatmul.bf16.gmra.mxu0 %v1065
      %v1178 = vpop.f32.mrf.mxu0
      %v1179 = vadd.f32 %v1114, %v1178
      %v1180 = vpop.f32.mrf.mxu0
      %v1181 = vadd.f32 %v1114, %v1180
      %1182 = vmatmul.bf16.gmra.mxu0 %v1066
      %v1183 = vpop.f32.mrf.mxu0
      %v1184 = vadd.f32 %v1114, %v1183
      %v1185 = vpop.f32.mrf.mxu0
      %v1186 = vadd.f32 %v1114, %v1185
      %1187 = vmatmul.bf16.gmra.mxu0 %v1067
      %v1188 = vpop.f32.mrf.mxu0
      %v1189 = vadd.f32 %v1114, %v1188
      %v1190 = vpop.f32.mrf.mxu0
      %v1191 = vadd.f32 %v1114, %v1190
      %1192 = vmatmul.bf16.gmra.mxu0 %v1068
      %v1193 = vpop.f32.mrf.mxu0
      %v1194 = vadd.f32 %v1114, %v1193
      %v1195 = vpop.f32.mrf.mxu0
      %v1196 = vadd.f32 %v1114, %v1195
      %1197 = vmatmul.bf16.gmra.mxu0 %v1069
      %v1198 = vpop.f32.mrf.mxu0
      %v1199 = vadd.f32 %v1114, %v1198
      %v1200 = vpop.f32.mrf.mxu0
      %v1201 = vadd.f32 %v1114, %v1200
      %1202 = vmatmul.bf16.gmra.mxu0 %v1070
      %v1203 = vpop.f32.mrf.mxu0
      %v1204 = vadd.f32 %v1114, %v1203
      %v1205 = vpop.f32.mrf.mxu0
      %v1206 = vadd.f32 %v1114, %v1205
      %1207 = vmatmul.bf16.gmra.mxu0 %v1071
      %v1208 = vpop.f32.mrf.mxu0
      %v1209 = vadd.f32 %v1114, %v1208
      %v1210 = vpop.f32.mrf.mxu0
      %v1211 = vadd.f32 %v1114, %v1210
      %1212 = vmatmul.bf16.gmra.mxu0 %v1072
      %v1213 = vpop.f32.mrf.mxu0
      %v1214 = vadd.f32 %v1114, %v1213
      %v1215 = vpop.f32.mrf.mxu0
      %v1216 = vadd.f32 %v1114, %v1215
      %1217 = vmatmul.bf16.gmra.mxu0 %v1073
      %v1218 = vpop.f32.mrf.mxu0
      %v1219 = vadd.f32 %v1114, %v1218
      %v1220 = vpop.f32.mrf.mxu0
      %v1221 = vadd.f32 %v1114, %v1220
      %1222 = vmatmul.bf16.gmra.mxu0 %v1074
      %v1223 = vpop.f32.mrf.mxu0
      %v1224 = vadd.f32 %v1114, %v1223
      %v1225 = vpop.f32.mrf.mxu0
      %v1226 = vadd.f32 %v1114, %v1225
      %1227 = vmatmul.bf16.gmra.mxu0 %v1075
      %v1228 = vpop.f32.mrf.mxu0
      %v1229 = vadd.f32 %v1114, %v1228
      %v1230 = vpop.f32.mrf.mxu0
      %v1231 = vadd.f32 %v1114, %v1230
      %1232 = vmatmul.bf16.gmra.mxu0 %v1076
      %v1233 = vpop.f32.mrf.mxu0
      %v1234 = vadd.f32 %v1114, %v1233
      %v1235 = vpop.f32.mrf.mxu0
      %v1236 = vadd.f32 %v1114, %v1235
      %1237 = vmatmul.bf16.gmra.mxu0 %v1077
      %v1238 = vpop.f32.mrf.mxu0
      %v1239 = vadd.f32 %v1114, %v1238
      %v1240 = vpop.f32.mrf.mxu0
      %v1241 = vadd.f32 %v1114, %v1240
      %1242 = vmatmul.bf16.gmra.mxu0 %v1078
      %v1243 = vpop.f32.mrf.mxu0
      %v1244 = vadd.f32 %v1114, %v1243
      %v1245 = vpop.f32.mrf.mxu0
      %v1246 = vadd.f32 %v1114, %v1245
      %1247 = vmatmul.bf16.gmra.mxu0 %v1079
      %v1248 = vpop.f32.mrf.mxu0
      %v1249 = vadd.f32 %v1114, %v1248
      %v1250 = vpop.f32.mrf.mxu0
      %v1251 = vadd.f32 %v1114, %v1250
      %1252 = vmatmul.bf16.gmra.mxu0 %v1080
      %v1253 = vpop.f32.mrf.mxu0
      %v1254 = vadd.f32 %v1114, %v1253
      %v1255 = vpop.f32.mrf.mxu0
      %v1256 = vadd.f32 %v1114, %v1255
      %1257 = vmatmul.bf16.gmra.mxu0 %v1081
      %v1258 = vpop.f32.mrf.mxu0
      %v1259 = vadd.f32 %v1114, %v1258
      %v1260 = vpop.f32.mrf.mxu0
      %v1261 = vadd.f32 %v1114, %v1260
      %1262 = vmatmul.bf16.gmra.mxu0 %v1082
      %v1263 = vpop.f32.mrf.mxu0
      %v1264 = vadd.f32 %v1114, %v1263
      %v1265 = vpop.f32.mrf.mxu0
      %v1266 = vadd.f32 %v1114, %v1265
      %1267 = vmatmul.bf16.gmra.mxu0 %v1083
      %v1268 = vpop.f32.mrf.mxu0
      %v1269 = vadd.f32 %v1114, %v1268
      %v1270 = vpop.f32.mrf.mxu0
      %v1271 = vadd.f32 %v1114, %v1270
      %1272 = vmatmul.bf16.gmra.mxu0 %v1084
      %v1273 = vpop.f32.mrf.mxu0
      %v1274 = vadd.f32 %v1114, %v1273
      %v1275 = vpop.f32.mrf.mxu0
      %v1276 = vadd.f32 %v1114, %v1275
      %1277 = vmatmul.bf16.gmra.mxu0 %v1085
      %v1278 = vpop.f32.mrf.mxu0
      %v1279 = vadd.f32 %v1114, %v1278
      %v1280 = vpop.f32.mrf.mxu0
      %v1281 = vadd.f32 %v1114, %v1280
      %1282 = vmatmul.bf16.gmra.mxu0 %v1086
      %v1283 = vpop.f32.mrf.mxu0
      %v1284 = vadd.f32 %v1114, %v1283
      %v1285 = vpop.f32.mrf.mxu0
      %v1286 = vadd.f32 %v1114, %v1285
      %1287 = vmatmul.bf16.gmra.mxu0 %v1087
      %v1288 = vpop.f32.mrf.mxu0
      %v1289 = vadd.f32 %v1114, %v1288
      %v1290 = vpop.f32.mrf.mxu0
      %v1291 = vadd.f32 %v1114, %v1290
      %1292 = vmatmul.bf16.gmra.mxu0 %v1088
      %v1293 = vpop.f32.mrf.mxu0
      %v1294 = vadd.f32 %v1114, %v1293
      %v1295 = vpop.f32.mrf.mxu0
      %v1296 = vadd.f32 %v1114, %v1295
      %1297 = vmatmul.bf16.gmra.mxu0 %v1089
      %v1298 = vpop.f32.mrf.mxu0
      %v1299 = vadd.f32 %v1114, %v1298
      %v1300 = vpop.f32.mrf.mxu0
      %v1301 = vadd.f32 %v1114, %v1300
      %1302 = vmatmul.bf16.gmra.mxu0 %v1090
      %v1303 = vpop.f32.mrf.mxu0
      %v1304 = vadd.f32 %v1114, %v1303
      %v1305 = vpop.f32.mrf.mxu0
      %v1306 = vadd.f32 %v1114, %v1305
      %1307 = vmatmul.bf16.gmra.mxu0 %v1091
      %v1308 = vpop.f32.mrf.mxu0
      %v1309 = vadd.f32 %v1114, %v1308
      %v1310 = vpop.f32.mrf.mxu0
      %v1311 = vadd.f32 %v1114, %v1310
      %1312 = vmatmul.bf16.gmra.mxu0 %v1092
      %v1313 = vpop.f32.mrf.mxu0
      %v1314 = vadd.f32 %v1114, %v1313
      %v1315 = vpop.f32.mrf.mxu0
      %v1316 = vadd.f32 %v1114, %v1315
      %1317 = vmatmul.bf16.gmra.mxu0 %v1093
      %v1318 = vpop.f32.mrf.mxu0
      %v1319 = vadd.f32 %v1114, %v1318
      %v1320 = vpop.f32.mrf.mxu0
      %v1321 = vadd.f32 %v1114, %v1320
      %1322 = vmatmul.bf16.gmra.mxu0 %v1094
      %v1323 = vpop.f32.mrf.mxu0
      %v1324 = vadd.f32 %v1114, %v1323
      %v1325 = vpop.f32.mrf.mxu0
      %v1326 = vadd.f32 %v1114, %v1325
      %1327 = vmatmul.bf16.gmra.mxu0 %v1095
      %v1328 = vpop.f32.mrf.mxu0
      %v1329 = vadd.f32 %v1114, %v1328
      %v1330 = vpop.f32.mrf.mxu0
      %v1331 = vadd.f32 %v1114, %v1330
      %1332 = vdwg.mxu0
      %v1333 = vmax.f32 %v1174, 0.0
      %v1334 = vmax.f32 %v1176, 0.0
      %v1335 = vmax.f32 %v1179, 0.0
      %v1336 = vmax.f32 %v1181, 0.0
      %v1337 = vmax.f32 %v1184, 0.0
      %v1338 = vmax.f32 %v1186, 0.0
      %v1339 = vmax.f32 %v1189, 0.0
      %v1340 = vmax.f32 %v1191, 0.0
      %v1341 = vmax.f32 %v1194, 0.0
      %v1342 = vmax.f32 %v1196, 0.0
      %v1343 = vmax.f32 %v1199, 0.0
      %v1344 = vmax.f32 %v1201, 0.0
      %v1345 = vmax.f32 %v1204, 0.0
      %v1346 = vmax.f32 %v1206, 0.0
      %v1347 = vmax.f32 %v1209, 0.0
      %v1348 = vmax.f32 %v1211, 0.0
      %v1349 = vmax.f32 %v1214, 0.0
      %v1350 = vmax.f32 %v1216, 0.0
      %v1351 = vmax.f32 %v1219, 0.0
      %v1352 = vmax.f32 %v1221, 0.0
      %v1353 = vmax.f32 %v1224, 0.0
      %v1354 = vmax.f32 %v1226, 0.0
      %v1355 = vmax.f32 %v1229, 0.0
      %v1356 = vmax.f32 %v1231, 0.0
      %v1357 = vmax.f32 %v1234, 0.0
      %v1358 = vmax.f32 %v1236, 0.0
      %v1359 = vmax.f32 %v1239, 0.0
      %v1360 = vmax.f32 %v1241, 0.0
      %v1361 = vmax.f32 %v1244, 0.0
      %v1362 = vmax.f32 %v1246, 0.0
      %v1363 = vmax.f32 %v1249, 0.0
      %v1364 = vmax.f32 %v1251, 0.0
      %v1365 = vmax.f32 %v1254, 0.0
      %v1366 = vmax.f32 %v1256, 0.0
      %v1367 = vmax.f32 %v1259, 0.0
      %v1368 = vmax.f32 %v1261, 0.0
      %v1369 = vmax.f32 %v1264, 0.0
      %v1370 = vmax.f32 %v1266, 0.0
      %v1371 = vmax.f32 %v1269, 0.0
      %v1372 = vmax.f32 %v1271, 0.0
      %v1373 = vmax.f32 %v1274, 0.0
      %v1374 = vmax.f32 %v1276, 0.0
      %v1375 = vmax.f32 %v1279, 0.0
      %v1376 = vmax.f32 %v1281, 0.0
      %v1377 = vmax.f32 %v1284, 0.0
      %v1378 = vmax.f32 %v1286, 0.0
      %v1379 = vmax.f32 %v1289, 0.0
      %v1380 = vmax.f32 %v1291, 0.0
      %v1381 = vmax.f32 %v1294, 0.0
      %v1382 = vmax.f32 %v1296, 0.0
      %v1383 = vmax.f32 %v1299, 0.0
      %v1384 = vmax.f32 %v1301, 0.0
      %v1385 = vmax.f32 %v1304, 0.0
      %v1386 = vmax.f32 %v1306, 0.0
      %v1387 = vmax.f32 %v1309, 0.0
      %v1388 = vmax.f32 %v1311, 0.0
      %v1389 = vmax.f32 %v1314, 0.0
      %v1390 = vmax.f32 %v1316, 0.0
      %v1391 = vmax.f32 %v1319, 0.0
      %v1392 = vmax.f32 %v1321, 0.0
      %v1393 = vmax.f32 %v1324, 0.0
      %v1394 = vmax.f32 %v1326, 0.0
      %v1395 = vmax.f32 %v1329, 0.0
      %v1396 = vmax.f32 %v1331, 0.0
      %v1397 = vmin.f32 %v1333, 6.0
      %v1398 = vmin.f32 %v1334, 6.0
      %v1399 = vmin.f32 %v1335, 6.0
      %v1400 = vmin.f32 %v1336, 6.0
      %v1401 = vmin.f32 %v1337, 6.0
      %v1402 = vmin.f32 %v1338, 6.0
      %v1403 = vmin.f32 %v1339, 6.0
      %v1404 = vmin.f32 %v1340, 6.0
      %v1405 = vmin.f32 %v1341, 6.0
      %v1406 = vmin.f32 %v1342, 6.0
      %v1407 = vmin.f32 %v1343, 6.0
      %v1408 = vmin.f32 %v1344, 6.0
      %v1409 = vmin.f32 %v1345, 6.0
      %v1410 = vmin.f32 %v1346, 6.0
      %v1411 = vmin.f32 %v1347, 6.0
      %v1412 = vmin.f32 %v1348, 6.0
      %v1413 = vmin.f32 %v1349, 6.0
      %v1414 = vmin.f32 %v1350, 6.0
      %v1415 = vmin.f32 %v1351, 6.0
      %v1416 = vmin.f32 %v1352, 6.0
      %v1417 = vmin.f32 %v1353, 6.0
      %v1418 = vmin.f32 %v1354, 6.0
      %v1419 = vmin.f32 %v1355, 6.0
      %v1420 = vmin.f32 %v1356, 6.0
      %v1421 = vmin.f32 %v1357, 6.0
      %v1422 = vmin.f32 %v1358, 6.0
      %v1423 = vmin.f32 %v1359, 6.0
      %v1424 = vmin.f32 %v1360, 6.0
      %v1425 = vmin.f32 %v1361, 6.0
      %v1426 = vmin.f32 %v1362, 6.0
      %v1427 = vmin.f32 %v1363, 6.0
      %v1428 = vmin.f32 %v1364, 6.0
      %v1429 = vmin.f32 %v1365, 6.0
      %v1430 = vmin.f32 %v1366, 6.0
      %v1431 = vmin.f32 %v1367, 6.0
      %v1432 = vmin.f32 %v1368, 6.0
      %v1433 = vmin.f32 %v1369, 6.0
      %v1434 = vmin.f32 %v1370, 6.0
      %v1435 = vmin.f32 %v1371, 6.0
      %v1436 = vmin.f32 %v1372, 6.0
      %v1437 = vmin.f32 %v1373, 6.0
      %v1438 = vmin.f32 %v1374, 6.0
      %v1439 = vmin.f32 %v1375, 6.0
      %v1440 = vmin.f32 %v1376, 6.0
      %v1441 = vmin.f32 %v1377, 6.0
      %v1442 = vmin.f32 %v1378, 6.0
      %v1443 = vmin.f32 %v1379, 6.0
      %v1444 = vmin.f32 %v1380, 6.0
      %v1445 = vmin.f32 %v1381, 6.0
      %v1446 = vmin.f32 %v1382, 6.0
      %v1447 = vmin.f32 %v1383, 6.0
      %v1448 = vmin.f32 %v1384, 6.0
      %v1449 = vmin.f32 %v1385, 6.0
      %v1450 = vmin.f32 %v1386, 6.0
      %v1451 = vmin.f32 %v1387, 6.0
      %v1452 = vmin.f32 %v1388, 6.0
      %v1453 = vmin.f32 %v1389, 6.0
      %v1454 = vmin.f32 %v1390, 6.0
      %v1455 = vmin.f32 %v1391, 6.0
      %v1456 = vmin.f32 %v1392, 6.0
      %v1457 = vmin.f32 %v1393, 6.0
      %v1458 = vmin.f32 %v1394, 6.0
      %v1459 = vmin.f32 %v1395, 6.0
      %v1460 = vmin.f32 %v1396, 6.0
      %v1461 = vld [vmem:[%s425] sm:$0xff]
      %v1462 = vld [vmem:[%s425 + $0x8] sm:$0xff]
      %v1463 = vld [vmem:[%s425 + $0x10] sm:$0xff]
      %v1464 = vld [vmem:[%s425 + $0x18] sm:$0xff]
      %v1465 = vld [vmem:[%s425 + $0x20] sm:$0xff]
      %v1466 = vld [vmem:[%s425 + $0x28] sm:$0xff]
      %v1467 = vld [vmem:[%s425 + $0x30] sm:$0xff]
      %v1468 = vld [vmem:[%s425 + $0x38] sm:$0xff]
      %v1469 = vld [vmem:[%s425 + $0x40] sm:$0xff]
      %v1470 = vld [vmem:[%s425 + $0x48] sm:$0xff]
      %v1471 = vld [vmem:[%s425 + $0x50] sm:$0xff]
      %v1472 = vld [vmem:[%s425 + $0x58] sm:$0xff]
      %v1473 = vld [vmem:[%s425 + $0x60] sm:$0xff]
      %v1474 = vld [vmem:[%s425 + $0x68] sm:$0xff]
      %v1475 = vld [vmem:[%s425 + $0x70] sm:$0xff]
      %v1476 = vld [vmem:[%s425 + $0x78] sm:$0xff]
      %v1477 = vld [vmem:[%s425 + $0x80] sm:$0xff]
      %v1478 = vld [vmem:[%s425 + $0x88] sm:$0xff]
      %v1479 = vld [vmem:[%s425 + $0x90] sm:$0xff]
      %v1480 = vld [vmem:[%s425 + $0x98] sm:$0xff]
      %v1481 = vld [vmem:[%s425 + $0xa0] sm:$0xff]
      %v1482 = vld [vmem:[%s425 + $0xa8] sm:$0xff]
      %v1483 = vld [vmem:[%s425 + $0xb0] sm:$0xff]
      %v1484 = vld [vmem:[%s425 + $0xb8] sm:$0xff]
      %v1485 = vld [vmem:[%s425 + $0xc0] sm:$0xff]
      %v1486 = vld [vmem:[%s425 + $0xc8] sm:$0xff]
      %v1487 = vld [vmem:[%s425 + $0xd0] sm:$0xff]
      %v1488 = vld [vmem:[%s425 + $0xd8] sm:$0xff]
      %v1489 = vld [vmem:[%s425 + $0xe0] sm:$0xff]
      %v1490 = vld [vmem:[%s425 + $0xe8] sm:$0xff]
      %v1491 = vld [vmem:[%s425 + $0xf0] sm:$0xff]
      %v1492 = vld [vmem:[%s425 + $0xf8] sm:$0xff]
      %v1493 = vld [vmem:[%s425 + $0x100] sm:$0xff]
      %v1494 = vld [vmem:[%s425 + $0x108] sm:$0xff]
      %v1495 = vld [vmem:[%s425 + $0x110] sm:$0xff]
      %v1496 = vld [vmem:[%s425 + $0x118] sm:$0xff]
      %v1497 = vld [vmem:[%s425 + $0x120] sm:$0xff]
      %v1498 = vld [vmem:[%s425 + $0x128] sm:$0xff]
      %v1499 = vld [vmem:[%s425 + $0x130] sm:$0xff]
      %v1500 = vld [vmem:[%s425 + $0x138] sm:$0xff]
      %v1501 = vld [vmem:[%s425 + $0x140] sm:$0xff]
      %v1502 = vld [vmem:[%s425 + $0x148] sm:$0xff]
      %v1503 = vld [vmem:[%s425 + $0x150] sm:$0xff]
      %v1504 = vld [vmem:[%s425 + $0x158] sm:$0xff]
      %v1505 = vld [vmem:[%s425 + $0x160] sm:$0xff]
      %v1506 = vld [vmem:[%s425 + $0x168] sm:$0xff]
      %v1507 = vld [vmem:[%s425 + $0x170] sm:$0xff]
      %v1508 = vld [vmem:[%s425 + $0x178] sm:$0xff]
      %v1509 = vld [vmem:[%s425 + $0x180] sm:$0xff]
      %v1510 = vld [vmem:[%s425 + $0x188] sm:$0xff]
      %v1511 = vld [vmem:[%s425 + $0x190] sm:$0xff]
      %v1512 = vld [vmem:[%s425 + $0x198] sm:$0xff]
      %v1513 = vld [vmem:[%s425 + $0x1a0] sm:$0xff]
      %v1514 = vld [vmem:[%s425 + $0x1a8] sm:$0xff]
      %v1515 = vld [vmem:[%s425 + $0x1b0] sm:$0xff]
      %v1516 = vld [vmem:[%s425 + $0x1b8] sm:$0xff]
      %v1517 = vld [vmem:[%s425 + $0x1c0] sm:$0xff]
      %v1518 = vld [vmem:[%s425 + $0x1c8] sm:$0xff]
      %v1519 = vld [vmem:[%s425 + $0x1d0] sm:$0xff]
      %v1520 = vld [vmem:[%s425 + $0x1d8] sm:$0xff]
      %v1521 = vld [vmem:[%s425 + $0x1e0] sm:$0xff]
      %v1522 = vld [vmem:[%s425 + $0x1e8] sm:$0xff]
      %v1523 = vld [vmem:[%s425 + $0x1f0] sm:$0xff]
      %v1524 = vld [vmem:[%s425 + $0x1f8] sm:$0xff]
      %1526 = vset.pattern.permute.xlu0 0
      %1527 = vperm.xlu0 %1526, %v1461
      %v1528 = vpop.permute.xlu0 %1527
      %1531 = vset.pattern.permute.xlu0 0
      %1532 = vperm.xlu0 %1531, %v1462
      %v1533 = vpop.permute.xlu0 %1532
      %1536 = vset.pattern.permute.xlu0 0
      %1537 = vperm.xlu0 %1536, %v1463
      %v1538 = vpop.permute.xlu0 %1537
      %1541 = vset.pattern.permute.xlu0 0
      %1542 = vperm.xlu0 %1541, %v1464
      %v1543 = vpop.permute.xlu0 %1542
      %1546 = vset.pattern.permute.xlu0 0
      %1547 = vperm.xlu0 %1546, %v1465
      %v1548 = vpop.permute.xlu0 %1547
      %1551 = vset.pattern.permute.xlu0 0
      %1552 = vperm.xlu0 %1551, %v1466
      %v1553 = vpop.permute.xlu0 %1552
      %1556 = vset.pattern.permute.xlu0 0
      %1557 = vperm.xlu0 %1556, %v1467
      %v1558 = vpop.permute.xlu0 %1557
      %1561 = vset.pattern.permute.xlu0 0
      %1562 = vperm.xlu0 %1561, %v1468
      %v1563 = vpop.permute.xlu0 %1562
      %1566 = vset.pattern.permute.xlu0 0
      %1567 = vperm.xlu0 %1566, %v1469
      %v1568 = vpop.permute.xlu0 %1567
      %1571 = vset.pattern.permute.xlu0 0
      %1572 = vperm.xlu0 %1571, %v1470
      %v1573 = vpop.permute.xlu0 %1572
      %1576 = vset.pattern.permute.xlu0 0
      %1577 = vperm.xlu0 %1576, %v1471
      %v1578 = vpop.permute.xlu0 %1577
      %1581 = vset.pattern.permute.xlu0 0
      %1582 = vperm.xlu0 %1581, %v1472
      %v1583 = vpop.permute.xlu0 %1582
      %1586 = vset.pattern.permute.xlu0 0
      %1587 = vperm.xlu0 %1586, %v1473
      %v1588 = vpop.permute.xlu0 %1587
      %1591 = vset.pattern.permute.xlu0 0
      %1592 = vperm.xlu0 %1591, %v1474
      %v1593 = vpop.permute.xlu0 %1592
      %1596 = vset.pattern.permute.xlu0 0
      %1597 = vperm.xlu0 %1596, %v1475
      %v1598 = vpop.permute.xlu0 %1597
      %1601 = vset.pattern.permute.xlu0 0
      %1602 = vperm.xlu0 %1601, %v1476
      %v1603 = vpop.permute.xlu0 %1602
      %1606 = vset.pattern.permute.xlu0 0
      %1607 = vperm.xlu0 %1606, %v1477
      %v1608 = vpop.permute.xlu0 %1607
      %1611 = vset.pattern.permute.xlu0 0
      %1612 = vperm.xlu0 %1611, %v1478
      %v1613 = vpop.permute.xlu0 %1612
      %1616 = vset.pattern.permute.xlu0 0
      %1617 = vperm.xlu0 %1616, %v1479
      %v1618 = vpop.permute.xlu0 %1617
      %1621 = vset.pattern.permute.xlu0 0
      %1622 = vperm.xlu0 %1621, %v1480
      %v1623 = vpop.permute.xlu0 %1622
      %1626 = vset.pattern.permute.xlu0 0
      %1627 = vperm.xlu0 %1626, %v1481
      %v1628 = vpop.permute.xlu0 %1627
      %1631 = vset.pattern.permute.xlu0 0
      %1632 = vperm.xlu0 %1631, %v1482
      %v1633 = vpop.permute.xlu0 %1632
      %1636 = vset.pattern.permute.xlu0 0
      %1637 = vperm.xlu0 %1636, %v1483
      %v1638 = vpop.permute.xlu0 %1637
      %1641 = vset.pattern.permute.xlu0 0
      %1642 = vperm.xlu0 %1641, %v1484
      %v1643 = vpop.permute.xlu0 %1642
      %1646 = vset.pattern.permute.xlu0 0
      %1647 = vperm.xlu0 %1646, %v1485
      %v1648 = vpop.permute.xlu0 %1647
      %1651 = vset.pattern.permute.xlu0 0
      %1652 = vperm.xlu0 %1651, %v1486
      %v1653 = vpop.permute.xlu0 %1652
      %1656 = vset.pattern.permute.xlu0 0
      %1657 = vperm.xlu0 %1656, %v1487
      %v1658 = vpop.permute.xlu0 %1657
      %1661 = vset.pattern.permute.xlu0 0
      %1662 = vperm.xlu0 %1661, %v1488
      %v1663 = vpop.permute.xlu0 %1662
      %1666 = vset.pattern.permute.xlu0 0
      %1667 = vperm.xlu0 %1666, %v1489
      %v1668 = vpop.permute.xlu0 %1667
      %1671 = vset.pattern.permute.xlu0 0
      %1672 = vperm.xlu0 %1671, %v1490
      %v1673 = vpop.permute.xlu0 %1672
      %1676 = vset.pattern.permute.xlu0 0
      %1677 = vperm.xlu0 %1676, %v1491
      %v1678 = vpop.permute.xlu0 %1677
      %1681 = vset.pattern.permute.xlu0 0
      %1682 = vperm.xlu0 %1681, %v1492
      %v1683 = vpop.permute.xlu0 %1682
      %1686 = vset.pattern.permute.xlu0 0
      %1687 = vperm.xlu0 %1686, %v1493
      %v1688 = vpop.permute.xlu0 %1687
      %1691 = vset.pattern.permute.xlu0 0
      %1692 = vperm.xlu0 %1691, %v1494
      %v1693 = vpop.permute.xlu0 %1692
      %1696 = vset.pattern.permute.xlu0 0
      %1697 = vperm.xlu0 %1696, %v1495
      %v1698 = vpop.permute.xlu0 %1697
      %1701 = vset.pattern.permute.xlu0 0
      %1702 = vperm.xlu0 %1701, %v1496
      %v1703 = vpop.permute.xlu0 %1702
      %1706 = vset.pattern.permute.xlu0 0
      %1707 = vperm.xlu0 %1706, %v1497
      %v1708 = vpop.permute.xlu0 %1707
      %1711 = vset.pattern.permute.xlu0 0
      %1712 = vperm.xlu0 %1711, %v1498
      %v1713 = vpop.permute.xlu0 %1712
      %1716 = vset.pattern.permute.xlu0 0
      %1717 = vperm.xlu0 %1716, %v1499
      %v1718 = vpop.permute.xlu0 %1717
      %1721 = vset.pattern.permute.xlu0 0
      %1722 = vperm.xlu0 %1721, %v1500
      %v1723 = vpop.permute.xlu0 %1722
      %1726 = vset.pattern.permute.xlu0 0
      %1727 = vperm.xlu0 %1726, %v1501
      %v1728 = vpop.permute.xlu0 %1727
      %1731 = vset.pattern.permute.xlu0 0
      %1732 = vperm.xlu0 %1731, %v1502
      %v1733 = vpop.permute.xlu0 %1732
      %1736 = vset.pattern.permute.xlu0 0
      %1737 = vperm.xlu0 %1736, %v1503
      %v1738 = vpop.permute.xlu0 %1737
      %1741 = vset.pattern.permute.xlu0 0
      %1742 = vperm.xlu0 %1741, %v1504
      %v1743 = vpop.permute.xlu0 %1742
      %1746 = vset.pattern.permute.xlu0 0
      %1747 = vperm.xlu0 %1746, %v1505
      %v1748 = vpop.permute.xlu0 %1747
      %1751 = vset.pattern.permute.xlu0 0
      %1752 = vperm.xlu0 %1751, %v1506
      %v1753 = vpop.permute.xlu0 %1752
      %1756 = vset.pattern.permute.xlu0 0
      %1757 = vperm.xlu0 %1756, %v1507
      %v1758 = vpop.permute.xlu0 %1757
      %1761 = vset.pattern.permute.xlu0 0
      %1762 = vperm.xlu0 %1761, %v1508
      %v1763 = vpop.permute.xlu0 %1762
      %1766 = vset.pattern.permute.xlu0 0
      %1767 = vperm.xlu0 %1766, %v1509
      %v1768 = vpop.permute.xlu0 %1767
      %1771 = vset.pattern.permute.xlu0 0
      %1772 = vperm.xlu0 %1771, %v1510
      %v1773 = vpop.permute.xlu0 %1772
      %1776 = vset.pattern.permute.xlu0 0
      %1777 = vperm.xlu0 %1776, %v1511
      %v1778 = vpop.permute.xlu0 %1777
      %1781 = vset.pattern.permute.xlu0 0
      %1782 = vperm.xlu0 %1781, %v1512
      %v1783 = vpop.permute.xlu0 %1782
      %1786 = vset.pattern.permute.xlu0 0
      %1787 = vperm.xlu0 %1786, %v1513
      %v1788 = vpop.permute.xlu0 %1787
      %1791 = vset.pattern.permute.xlu0 0
      %1792 = vperm.xlu0 %1791, %v1514
      %v1793 = vpop.permute.xlu0 %1792
      %1796 = vset.pattern.permute.xlu0 0
      %1797 = vperm.xlu0 %1796, %v1515
      %v1798 = vpop.permute.xlu0 %1797
      %1801 = vset.pattern.permute.xlu0 0
      %1802 = vperm.xlu0 %1801, %v1516
      %v1803 = vpop.permute.xlu0 %1802
      %1806 = vset.pattern.permute.xlu0 0
      %1807 = vperm.xlu0 %1806, %v1517
      %v1808 = vpop.permute.xlu0 %1807
      %1811 = vset.pattern.permute.xlu0 0
      %1812 = vperm.xlu0 %1811, %v1518
      %v1813 = vpop.permute.xlu0 %1812
      %1816 = vset.pattern.permute.xlu0 0
      %1817 = vperm.xlu0 %1816, %v1519
      %v1818 = vpop.permute.xlu0 %1817
      %1821 = vset.pattern.permute.xlu0 0
      %1822 = vperm.xlu0 %1821, %v1520
      %v1823 = vpop.permute.xlu0 %1822
      %1826 = vset.pattern.permute.xlu0 0
      %1827 = vperm.xlu0 %1826, %v1521
      %v1828 = vpop.permute.xlu0 %1827
      %1831 = vset.pattern.permute.xlu0 0
      %1832 = vperm.xlu0 %1831, %v1522
      %v1833 = vpop.permute.xlu0 %1832
      %1836 = vset.pattern.permute.xlu0 0
      %1837 = vperm.xlu0 %1836, %v1523
      %v1838 = vpop.permute.xlu0 %1837
      %1841 = vset.pattern.permute.xlu0 0
      %1842 = vperm.xlu0 %1841, %v1524
      %v1843 = vpop.permute.xlu0 %1842
      %v1845 = vmul.f32 %v1397, %v1528
      %v1846 = vmul.f32 %v1398, %v1533
      %v1847 = vmul.f32 %v1399, %v1538
      %v1848 = vmul.f32 %v1400, %v1543
      %v1849 = vmul.f32 %v1401, %v1548
      %v1850 = vmul.f32 %v1402, %v1553
      %v1851 = vmul.f32 %v1403, %v1558
      %v1852 = vmul.f32 %v1404, %v1563
      %v1853 = vmul.f32 %v1405, %v1568
      %v1854 = vmul.f32 %v1406, %v1573
      %v1855 = vmul.f32 %v1407, %v1578
      %v1856 = vmul.f32 %v1408, %v1583
      %v1857 = vmul.f32 %v1409, %v1588
      %v1858 = vmul.f32 %v1410, %v1593
      %v1859 = vmul.f32 %v1411, %v1598
      %v1860 = vmul.f32 %v1412, %v1603
      %v1861 = vmul.f32 %v1413, %v1608
      %v1862 = vmul.f32 %v1414, %v1613
      %v1863 = vmul.f32 %v1415, %v1618
      %v1864 = vmul.f32 %v1416, %v1623
      %v1865 = vmul.f32 %v1417, %v1628
      %v1866 = vmul.f32 %v1418, %v1633
      %v1867 = vmul.f32 %v1419, %v1638
      %v1868 = vmul.f32 %v1420, %v1643
      %v1869 = vmul.f32 %v1421, %v1648
      %v1870 = vmul.f32 %v1422, %v1653
      %v1871 = vmul.f32 %v1423, %v1658
      %v1872 = vmul.f32 %v1424, %v1663
      %v1873 = vmul.f32 %v1425, %v1668
      %v1874 = vmul.f32 %v1426, %v1673
      %v1875 = vmul.f32 %v1427, %v1678
      %v1876 = vmul.f32 %v1428, %v1683
      %v1877 = vmul.f32 %v1429, %v1688
      %v1878 = vmul.f32 %v1430, %v1693
      %v1879 = vmul.f32 %v1431, %v1698
      %v1880 = vmul.f32 %v1432, %v1703
      %v1881 = vmul.f32 %v1433, %v1708
      %v1882 = vmul.f32 %v1434, %v1713
      %v1883 = vmul.f32 %v1435, %v1718
      %v1884 = vmul.f32 %v1436, %v1723
      %v1885 = vmul.f32 %v1437, %v1728
      %v1886 = vmul.f32 %v1438, %v1733
      %v1887 = vmul.f32 %v1439, %v1738
      %v1888 = vmul.f32 %v1440, %v1743
      %v1889 = vmul.f32 %v1441, %v1748
      %v1890 = vmul.f32 %v1442, %v1753
      %v1891 = vmul.f32 %v1443, %v1758
      %v1892 = vmul.f32 %v1444, %v1763
      %v1893 = vmul.f32 %v1445, %v1768
      %v1894 = vmul.f32 %v1446, %v1773
      %v1895 = vmul.f32 %v1447, %v1778
      %v1896 = vmul.f32 %v1448, %v1783
      %v1897 = vmul.f32 %v1449, %v1788
      %v1898 = vmul.f32 %v1450, %v1793
      %v1899 = vmul.f32 %v1451, %v1798
      %v1900 = vmul.f32 %v1452, %v1803
      %v1901 = vmul.f32 %v1453, %v1808
      %v1902 = vmul.f32 %v1454, %v1813
      %v1903 = vmul.f32 %v1455, %v1818
      %v1904 = vmul.f32 %v1456, %v1823
      %v1905 = vmul.f32 %v1457, %v1828
      %v1906 = vmul.f32 %v1458, %v1833
      %v1907 = vmul.f32 %v1459, %v1838
      %v1908 = vmul.f32 %v1460, %v1843
      %1909 = vst [vmem:[#allocation2] sm:$0xff] 0.0
      %1910 = vst [vmem:[#allocation2 + $0x8] sm:$0xff] 0.0
      %1911 = vst [vmem:[#allocation2 + $0x10] sm:$0xff] 0.0
      %1912 = vst [vmem:[#allocation2 + $0x18] sm:$0xff] 0.0
      %1913 = vst [vmem:[#allocation2 + $0x220] sm:$0xff] 0.0
      %1914 = vst [vmem:[#allocation2 + $0x228] sm:$0xff] 0.0
      %1915 = vst [vmem:[#allocation2 + $0x230] sm:$0xff] 0.0
      %1916 = vst [vmem:[#allocation2 + $0x238] sm:$0xff] 0.0
      %1917 = vst [vmem:[#allocation2 + $0x20] sm:$0xff] %v1845
      %1918 = vst [vmem:[#allocation2 + $0x28] sm:$0xff] %v1846
      %1919 = vst [vmem:[#allocation2 + $0x30] sm:$0xff] %v1847
      %1920 = vst [vmem:[#allocation2 + $0x38] sm:$0xff] %v1848
      %1921 = vst [vmem:[#allocation2 + $0x40] sm:$0xff] %v1849
      %1922 = vst [vmem:[#allocation2 + $0x48] sm:$0xff] %v1850
      %1923 = vst [vmem:[#allocation2 + $0x50] sm:$0xff] %v1851
      %1924 = vst [vmem:[#allocation2 + $0x58] sm:$0xff] %v1852
      %1925 = vst [vmem:[#allocation2 + $0x60] sm:$0xff] %v1853
      %1926 = vst [vmem:[#allocation2 + $0x68] sm:$0xff] %v1854
      %1927 = vst [vmem:[#allocation2 + $0x70] sm:$0xff] %v1855
      %1928 = vst [vmem:[#allocation2 + $0x78] sm:$0xff] %v1856
      %1929 = vst [vmem:[#allocation2 + $0x80] sm:$0xff] %v1857
      %1930 = vst [vmem:[#allocation2 + $0x88] sm:$0xff] %v1858
      %1931 = vst [vmem:[#allocation2 + $0x90] sm:$0xff] %v1859
      %1932 = vst [vmem:[#allocation2 + $0x98] sm:$0xff] %v1860
      %1933 = vst [vmem:[#allocation2 + $0xa0] sm:$0xff] %v1861
      %1934 = vst [vmem:[#allocation2 + $0xa8] sm:$0xff] %v1862
      %1935 = vst [vmem:[#allocation2 + $0xb0] sm:$0xff] %v1863
      %1936 = vst [vmem:[#allocation2 + $0xb8] sm:$0xff] %v1864
      %1937 = vst [vmem:[#allocation2 + $0xc0] sm:$0xff] %v1865
      %1938 = vst [vmem:[#allocation2 + $0xc8] sm:$0xff] %v1866
      %1939 = vst [vmem:[#allocation2 + $0xd0] sm:$0xff] %v1867
      %1940 = vst [vmem:[#allocation2 + $0xd8] sm:$0xff] %v1868
      %1941 = vst [vmem:[#allocation2 + $0xe0] sm:$0xff] %v1869
      %1942 = vst [vmem:[#allocation2 + $0xe8] sm:$0xff] %v1870
      %1943 = vst [vmem:[#allocation2 + $0xf0] sm:$0xff] %v1871
      %1944 = vst [vmem:[#allocation2 + $0xf8] sm:$0xff] %v1872
      %1945 = vst [vmem:[#allocation2 + $0x100] sm:$0xff] %v1873
      %1946 = vst [vmem:[#allocation2 + $0x108] sm:$0xff] %v1874
      %1947 = vst [vmem:[#allocation2 + $0x110] sm:$0xff] %v1875
      %1948 = vst [vmem:[#allocation2 + $0x118] sm:$0xff] %v1876
      %1949 = vst [vmem:[#allocation2 + $0x120] sm:$0xff] %v1877
      %1950 = vst [vmem:[#allocation2 + $0x128] sm:$0xff] %v1878
      %1951 = vst [vmem:[#allocation2 + $0x130] sm:$0xff] %v1879
      %1952 = vst [vmem:[#allocation2 + $0x138] sm:$0xff] %v1880
      %1953 = vst [vmem:[#allocation2 + $0x140] sm:$0xff] %v1881
      %1954 = vst [vmem:[#allocation2 + $0x148] sm:$0xff] %v1882
      %1955 = vst [vmem:[#allocation2 + $0x150] sm:$0xff] %v1883
      %1956 = vst [vmem:[#allocation2 + $0x158] sm:$0xff] %v1884
      %1957 = vst [vmem:[#allocation2 + $0x160] sm:$0xff] %v1885
      %1958 = vst [vmem:[#allocation2 + $0x168] sm:$0xff] %v1886
      %1959 = vst [vmem:[#allocation2 + $0x170] sm:$0xff] %v1887
      %1960 = vst [vmem:[#allocation2 + $0x178] sm:$0xff] %v1888
      %1961 = vst [vmem:[#allocation2 + $0x180] sm:$0xff] %v1889
      %1962 = vst [vmem:[#allocation2 + $0x188] sm:$0xff] %v1890
      %1963 = vst [vmem:[#allocation2 + $0x190] sm:$0xff] %v1891
      %1964 = vst [vmem:[#allocation2 + $0x198] sm:$0xff] %v1892
      %1965 = vst [vmem:[#allocation2 + $0x1a0] sm:$0xff] %v1893
      %1966 = vst [vmem:[#allocation2 + $0x1a8] sm:$0xff] %v1894
      %1967 = vst [vmem:[#allocation2 + $0x1b0] sm:$0xff] %v1895
      %1968 = vst [vmem:[#allocation2 + $0x1b8] sm:$0xff] %v1896
      %1969 = vst [vmem:[#allocation2 + $0x1c0] sm:$0xff] %v1897
      %1970 = vst [vmem:[#allocation2 + $0x1c8] sm:$0xff] %v1898
      %1971 = vst [vmem:[#allocation2 + $0x1d0] sm:$0xff] %v1899
      %1972 = vst [vmem:[#allocation2 + $0x1d8] sm:$0xff] %v1900
      %1973 = vst [vmem:[#allocation2 + $0x1e0] sm:$0xff] %v1901
      %1974 = vst [vmem:[#allocation2 + $0x1e8] sm:$0xff] %v1902
      %1975 = vst [vmem:[#allocation2 + $0x1f0] sm:$0xff] %v1903
      %1976 = vst [vmem:[#allocation2 + $0x1f8] sm:$0xff] %v1904
      %1977 = vst [vmem:[#allocation2 + $0x200] sm:$0xff] %v1905
      %1978 = vst [vmem:[#allocation2 + $0x208] sm:$0xff] %v1906
      %1979 = vst [vmem:[#allocation2 + $0x210] sm:$0xff] %v1907
      %1980 = vst [vmem:[#allocation2 + $0x218] sm:$0xff] %v1908
      %v1981 = vld [vmem:[#allocation2 + $0x7] sm:$0xff]
      %v1982 = vld [vmem:[#allocation2 + $0xf] sm:$0xff]
      %v1983 = vld [vmem:[#allocation2 + $0x17] sm:$0xff]
      %v1984 = vld [vmem:[#allocation2 + $0x1f] sm:$0xff]
      %v1985 = vld [vmem:[#allocation2 + $0x27] sm:$0xff]
      %v1986 = vld [vmem:[#allocation2 + $0x2f] sm:$0xff]
      %v1987 = vld [vmem:[#allocation2 + $0x37] sm:$0xff]
      %v1988 = vld [vmem:[#allocation2 + $0x3f] sm:$0xff]
      %v1989 = vld [vmem:[#allocation2 + $0x47] sm:$0xff]
      %v1990 = vld [vmem:[#allocation2 + $0x4f] sm:$0xff]
      %v1991 = vld [vmem:[#allocation2 + $0x57] sm:$0xff]
      %v1992 = vld [vmem:[#allocation2 + $0x5f] sm:$0xff]
      %v1993 = vld [vmem:[#allocation2 + $0x67] sm:$0xff]
      %v1994 = vld [vmem:[#allocation2 + $0x6f] sm:$0xff]
      %v1995 = vld [vmem:[#allocation2 + $0x77] sm:$0xff]
      %v1996 = vld [vmem:[#allocation2 + $0x7f] sm:$0xff]
      %v1997 = vld [vmem:[#allocation2 + $0x87] sm:$0xff]
      %v1998 = vld [vmem:[#allocation2 + $0x8f] sm:$0xff]
      %v1999 = vld [vmem:[#allocation2 + $0x97] sm:$0xff]
      %v2000 = vld [vmem:[#allocation2 + $0x9f] sm:$0xff]
      %v2001 = vld [vmem:[#allocation2 + $0xa7] sm:$0xff]
      %v2002 = vld [vmem:[#allocation2 + $0xaf] sm:$0xff]
      %v2003 = vld [vmem:[#allocation2 + $0xb7] sm:$0xff]
      %v2004 = vld [vmem:[#allocation2 + $0xbf] sm:$0xff]
      %v2005 = vld [vmem:[#allocation2 + $0xc7] sm:$0xff]
      %v2006 = vld [vmem:[#allocation2 + $0xcf] sm:$0xff]
      %v2007 = vld [vmem:[#allocation2 + $0xd7] sm:$0xff]
      %v2008 = vld [vmem:[#allocation2 + $0xdf] sm:$0xff]
      %v2009 = vld [vmem:[#allocation2 + $0xe7] sm:$0xff]
      %v2010 = vld [vmem:[#allocation2 + $0xef] sm:$0xff]
      %v2011 = vld [vmem:[#allocation2 + $0xf7] sm:$0xff]
      %v2012 = vld [vmem:[#allocation2 + $0xff] sm:$0xff]
      %v2013 = vld [vmem:[#allocation2 + $0x107] sm:$0xff]
      %v2014 = vld [vmem:[#allocation2 + $0x10f] sm:$0xff]
      %v2015 = vld [vmem:[#allocation2 + $0x117] sm:$0xff]
      %v2016 = vld [vmem:[#allocation2 + $0x11f] sm:$0xff]
      %v2017 = vld [vmem:[#allocation2 + $0x127] sm:$0xff]
      %v2018 = vld [vmem:[#allocation2 + $0x12f] sm:$0xff]
      %v2019 = vld [vmem:[#allocation2 + $0x137] sm:$0xff]
      %v2020 = vld [vmem:[#allocation2 + $0x13f] sm:$0xff]
      %v2021 = vld [vmem:[#allocation2 + $0x147] sm:$0xff]
      %v2022 = vld [vmem:[#allocation2 + $0x14f] sm:$0xff]
      %v2023 = vld [vmem:[#allocation2 + $0x157] sm:$0xff]
      %v2024 = vld [vmem:[#allocation2 + $0x15f] sm:$0xff]
      %v2025 = vld [vmem:[#allocation2 + $0x167] sm:$0xff]
      %v2026 = vld [vmem:[#allocation2 + $0x16f] sm:$0xff]
      %v2027 = vld [vmem:[#allocation2 + $0x177] sm:$0xff]
      %v2028 = vld [vmem:[#allocation2 + $0x17f] sm:$0xff]
      %v2029 = vld [vmem:[#allocation2 + $0x187] sm:$0xff]
      %v2030 = vld [vmem:[#allocation2 + $0x18f] sm:$0xff]
      %v2031 = vld [vmem:[#allocation2 + $0x197] sm:$0xff]
      %v2032 = vld [vmem:[#allocation2 + $0x19f] sm:$0xff]
      %v2033 = vld [vmem:[#allocation2 + $0x1a7] sm:$0xff]
      %v2034 = vld [vmem:[#allocation2 + $0x1af] sm:$0xff]
      %v2035 = vld [vmem:[#allocation2 + $0x1b7] sm:$0xff]
      %v2036 = vld [vmem:[#allocation2 + $0x1bf] sm:$0xff]
      %v2037 = vld [vmem:[#allocation2 + $0x1c7] sm:$0xff]
      %v2038 = vld [vmem:[#allocation2 + $0x1cf] sm:$0xff]
      %v2039 = vld [vmem:[#allocation2 + $0x1d7] sm:$0xff]
      %v2040 = vld [vmem:[#allocation2 + $0x1df] sm:$0xff]
      %v2041 = vld [vmem:[#allocation2 + $0x1e7] sm:$0xff]
      %v2042 = vld [vmem:[#allocation2 + $0x1ef] sm:$0xff]
      %v2043 = vld [vmem:[#allocation2 + $0x1f7] sm:$0xff]
      %v2044 = vld [vmem:[#allocation2 + $0x1ff] sm:$0xff]
      %v2045 = vld [vmem:[%s6] sm:$0x1]
      %v2046 = vperm.slane %v2045, 0
      %v2047 = vmul.f32 %v1981, %v2046
      %v2048 = vmul.f32 %v1982, %v2046
      %v2049 = vmul.f32 %v1983, %v2046
      %v2050 = vmul.f32 %v1984, %v2046
      %v2051 = vmul.f32 %v1985, %v2046
      %v2052 = vmul.f32 %v1986, %v2046
      %v2053 = vmul.f32 %v1987, %v2046
      %v2054 = vmul.f32 %v1988, %v2046
      %v2055 = vmul.f32 %v1989, %v2046
      %v2056 = vmul.f32 %v1990, %v2046
      %v2057 = vmul.f32 %v1991, %v2046
      %v2058 = vmul.f32 %v1992, %v2046
      %v2059 = vmul.f32 %v1993, %v2046
      %v2060 = vmul.f32 %v1994, %v2046
      %v2061 = vmul.f32 %v1995, %v2046
      %v2062 = vmul.f32 %v1996, %v2046
      %v2063 = vmul.f32 %v1997, %v2046
      %v2064 = vmul.f32 %v1998, %v2046
      %v2065 = vmul.f32 %v1999, %v2046
      %v2066 = vmul.f32 %v2000, %v2046
      %v2067 = vmul.f32 %v2001, %v2046
      %v2068 = vmul.f32 %v2002, %v2046
      %v2069 = vmul.f32 %v2003, %v2046
      %v2070 = vmul.f32 %v2004, %v2046
      %v2071 = vmul.f32 %v2005, %v2046
      %v2072 = vmul.f32 %v2006, %v2046
      %v2073 = vmul.f32 %v2007, %v2046
      %v2074 = vmul.f32 %v2008, %v2046
      %v2075 = vmul.f32 %v2009, %v2046
      %v2076 = vmul.f32 %v2010, %v2046
      %v2077 = vmul.f32 %v2011, %v2046
      %v2078 = vmul.f32 %v2012, %v2046
      %v2079 = vmul.f32 %v2013, %v2046
      %v2080 = vmul.f32 %v2014, %v2046
      %v2081 = vmul.f32 %v2015, %v2046
      %v2082 = vmul.f32 %v2016, %v2046
      %v2083 = vmul.f32 %v2017, %v2046
      %v2084 = vmul.f32 %v2018, %v2046
      %v2085 = vmul.f32 %v2019, %v2046
      %v2086 = vmul.f32 %v2020, %v2046
      %v2087 = vmul.f32 %v2021, %v2046
      %v2088 = vmul.f32 %v2022, %v2046
      %v2089 = vmul.f32 %v2023, %v2046
      %v2090 = vmul.f32 %v2024, %v2046
      %v2091 = vmul.f32 %v2025, %v2046
      %v2092 = vmul.f32 %v2026, %v2046
      %v2093 = vmul.f32 %v2027, %v2046
      %v2094 = vmul.f32 %v2028, %v2046
      %v2095 = vmul.f32 %v2029, %v2046
      %v2096 = vmul.f32 %v2030, %v2046
      %v2097 = vmul.f32 %v2031, %v2046
      %v2098 = vmul.f32 %v2032, %v2046
      %v2099 = vmul.f32 %v2033, %v2046
      %v2100 = vmul.f32 %v2034, %v2046
      %v2101 = vmul.f32 %v2035, %v2046
      %v2102 = vmul.f32 %v2036, %v2046
      %v2103 = vmul.f32 %v2037, %v2046
      %v2104 = vmul.f32 %v2038, %v2046
      %v2105 = vmul.f32 %v2039, %v2046
      %v2106 = vmul.f32 %v2040, %v2046
      %v2107 = vmul.f32 %v2041, %v2046
      %v2108 = vmul.f32 %v2042, %v2046
      %v2109 = vmul.f32 %v2043, %v2046
      %v2110 = vmul.f32 %v2044, %v2046
      %v2111 = vadd.f32 %v2047, 0.0
      %v2112 = vadd.f32 %v2048, 0.0
      %v2113 = vadd.f32 %v2049, 0.0
      %v2114 = vadd.f32 %v2050, 0.0
      %v2115 = vadd.f32 %v2051, 0.0
      %v2116 = vadd.f32 %v2052, 0.0
      %v2117 = vadd.f32 %v2053, 0.0
      %v2118 = vadd.f32 %v2054, 0.0
      %v2119 = vadd.f32 %v2055, 0.0
      %v2120 = vadd.f32 %v2056, 0.0
      %v2121 = vadd.f32 %v2057, 0.0
      %v2122 = vadd.f32 %v2058, 0.0
      %v2123 = vadd.f32 %v2059, 0.0
      %v2124 = vadd.f32 %v2060, 0.0
      %v2125 = vadd.f32 %v2061, 0.0
      %v2126 = vadd.f32 %v2062, 0.0
      %v2127 = vadd.f32 %v2063, 0.0
      %v2128 = vadd.f32 %v2064, 0.0
      %v2129 = vadd.f32 %v2065, 0.0
      %v2130 = vadd.f32 %v2066, 0.0
      %v2131 = vadd.f32 %v2067, 0.0
      %v2132 = vadd.f32 %v2068, 0.0
      %v2133 = vadd.f32 %v2069, 0.0
      %v2134 = vadd.f32 %v2070, 0.0
      %v2135 = vadd.f32 %v2071, 0.0
      %v2136 = vadd.f32 %v2072, 0.0
      %v2137 = vadd.f32 %v2073, 0.0
      %v2138 = vadd.f32 %v2074, 0.0
      %v2139 = vadd.f32 %v2075, 0.0
      %v2140 = vadd.f32 %v2076, 0.0
      %v2141 = vadd.f32 %v2077, 0.0
      %v2142 = vadd.f32 %v2078, 0.0
      %v2143 = vadd.f32 %v2079, 0.0
      %v2144 = vadd.f32 %v2080, 0.0
      %v2145 = vadd.f32 %v2081, 0.0
      %v2146 = vadd.f32 %v2082, 0.0
      %v2147 = vadd.f32 %v2083, 0.0
      %v2148 = vadd.f32 %v2084, 0.0
      %v2149 = vadd.f32 %v2085, 0.0
      %v2150 = vadd.f32 %v2086, 0.0
      %v2151 = vadd.f32 %v2087, 0.0
      %v2152 = vadd.f32 %v2088, 0.0
      %v2153 = vadd.f32 %v2089, 0.0
      %v2154 = vadd.f32 %v2090, 0.0
      %v2155 = vadd.f32 %v2091, 0.0
      %v2156 = vadd.f32 %v2092, 0.0
      %v2157 = vadd.f32 %v2093, 0.0
      %v2158 = vadd.f32 %v2094, 0.0
      %v2159 = vadd.f32 %v2095, 0.0
      %v2160 = vadd.f32 %v2096, 0.0
      %v2161 = vadd.f32 %v2097, 0.0
      %v2162 = vadd.f32 %v2098, 0.0
      %v2163 = vadd.f32 %v2099, 0.0
      %v2164 = vadd.f32 %v2100, 0.0
      %v2165 = vadd.f32 %v2101, 0.0
      %v2166 = vadd.f32 %v2102, 0.0
      %v2167 = vadd.f32 %v2103, 0.0
      %v2168 = vadd.f32 %v2104, 0.0
      %v2169 = vadd.f32 %v2105, 0.0
      %v2170 = vadd.f32 %v2106, 0.0
      %v2171 = vadd.f32 %v2107, 0.0
      %v2172 = vadd.f32 %v2108, 0.0
      %v2173 = vadd.f32 %v2109, 0.0
      %v2174 = vadd.f32 %v2110, 0.0
      %v2175 = vld [vmem:[#allocation2 + $0x8] sm:$0xff]
      %v2176 = vld [vmem:[#allocation2 + $0x10] sm:$0xff]
      %v2177 = vld [vmem:[#allocation2 + $0x18] sm:$0xff]
      %v2178 = vld [vmem:[#allocation2 + $0x20] sm:$0xff]
      %v2179 = vld [vmem:[#allocation2 + $0x28] sm:$0xff]
      %v2180 = vld [vmem:[#allocation2 + $0x30] sm:$0xff]
      %v2181 = vld [vmem:[#allocation2 + $0x38] sm:$0xff]
      %v2182 = vld [vmem:[#allocation2 + $0x40] sm:$0xff]
      %v2183 = vld [vmem:[#allocation2 + $0x48] sm:$0xff]
      %v2184 = vld [vmem:[#allocation2 + $0x50] sm:$0xff]
      %v2185 = vld [vmem:[#allocation2 + $0x58] sm:$0xff]
      %v2186 = vld [vmem:[#allocation2 + $0x60] sm:$0xff]
      %v2187 = vld [vmem:[#allocation2 + $0x68] sm:$0xff]
      %v2188 = vld [vmem:[#allocation2 + $0x70] sm:$0xff]
      %v2189 = vld [vmem:[#allocation2 + $0x78] sm:$0xff]
      %v2190 = vld [vmem:[#allocation2 + $0x80] sm:$0xff]
      %v2191 = vld [vmem:[#allocation2 + $0x88] sm:$0xff]
      %v2192 = vld [vmem:[#allocation2 + $0x90] sm:$0xff]
      %v2193 = vld [vmem:[#allocation2 + $0x98] sm:$0xff]
      %v2194 = vld [vmem:[#allocation2 + $0xa0] sm:$0xff]
      %v2195 = vld [vmem:[#allocation2 + $0xa8] sm:$0xff]
      %v2196 = vld [vmem:[#allocation2 + $0xb0] sm:$0xff]
      %v2197 = vld [vmem:[#allocation2 + $0xb8] sm:$0xff]
      %v2198 = vld [vmem:[#allocation2 + $0xc0] sm:$0xff]
      %v2199 = vld [vmem:[#allocation2 + $0xc8] sm:$0xff]
      %v2200 = vld [vmem:[#allocation2 + $0xd0] sm:$0xff]
      %v2201 = vld [vmem:[#allocation2 + $0xd8] sm:$0xff]
      %v2202 = vld [vmem:[#allocation2 + $0xe0] sm:$0xff]
      %v2203 = vld [vmem:[#allocation2 + $0xe8] sm:$0xff]
      %v2204 = vld [vmem:[#allocation2 + $0xf0] sm:$0xff]
      %v2205 = vld [vmem:[#allocation2 + $0xf8] sm:$0xff]
      %v2206 = vld [vmem:[#allocation2 + $0x100] sm:$0xff]
      %v2207 = vld [vmem:[#allocation2 + $0x108] sm:$0xff]
      %v2208 = vld [vmem:[#allocation2 + $0x110] sm:$0xff]
      %v2209 = vld [vmem:[#allocation2 + $0x118] sm:$0xff]
      %v2210 = vld [vmem:[#allocation2 + $0x120] sm:$0xff]
      %v2211 = vld [vmem:[#allocation2 + $0x128] sm:$0xff]
      %v2212 = vld [vmem:[#allocation2 + $0x130] sm:$0xff]
      %v2213 = vld [vmem:[#allocation2 + $0x138] sm:$0xff]
      %v2214 = vld [vmem:[#allocation2 + $0x140] sm:$0xff]
      %v2215 = vld [vmem:[#allocation2 + $0x148] sm:$0xff]
      %v2216 = vld [vmem:[#allocation2 + $0x150] sm:$0xff]
      %v2217 = vld [vmem:[#allocation2 + $0x158] sm:$0xff]
      %v2218 = vld [vmem:[#allocation2 + $0x160] sm:$0xff]
      %v2219 = vld [vmem:[#allocation2 + $0x168] sm:$0xff]
      %v2220 = vld [vmem:[#allocation2 + $0x170] sm:$0xff]
      %v2221 = vld [vmem:[#allocation2 + $0x178] sm:$0xff]
      %v2222 = vld [vmem:[#allocation2 + $0x180] sm:$0xff]
      %v2223 = vld [vmem:[#allocation2 + $0x188] sm:$0xff]
      %v2224 = vld [vmem:[#allocation2 + $0x190] sm:$0xff]
      %v2225 = vld [vmem:[#allocation2 + $0x198] sm:$0xff]
      %v2226 = vld [vmem:[#allocation2 + $0x1a0] sm:$0xff]
      %v2227 = vld [vmem:[#allocation2 + $0x1a8] sm:$0xff]
      %v2228 = vld [vmem:[#allocation2 + $0x1b0] sm:$0xff]
      %v2229 = vld [vmem:[#allocation2 + $0x1b8] sm:$0xff]
      %v2230 = vld [vmem:[#allocation2 + $0x1c0] sm:$0xff]
      %v2231 = vld [vmem:[#allocation2 + $0x1c8] sm:$0xff]
      %v2232 = vld [vmem:[#allocation2 + $0x1d0] sm:$0xff]
      %v2233 = vld [vmem:[#allocation2 + $0x1d8] sm:$0xff]
      %v2234 = vld [vmem:[#allocation2 + $0x1e0] sm:$0xff]
      %v2235 = vld [vmem:[#allocation2 + $0x1e8] sm:$0xff]
      %v2236 = vld [vmem:[#allocation2 + $0x1f0] sm:$0xff]
      %v2237 = vld [vmem:[#allocation2 + $0x1f8] sm:$0xff]
      %v2238 = vld [vmem:[#allocation2 + $0x200] sm:$0xff]
      %v2239 = vld [vmem:[%s6 + $0x1] sm:$0x1]
      %v2240 = vperm.slane %v2239, 0
      %v2241 = vmul.f32 %v2175, %v2240
      %v2242 = vmul.f32 %v2176, %v2240
      %v2243 = vmul.f32 %v2177, %v2240
      %v2244 = vmul.f32 %v2178, %v2240
      %v2245 = vmul.f32 %v2179, %v2240
      %v2246 = vmul.f32 %v2180, %v2240
      %v2247 = vmul.f32 %v2181, %v2240
      %v2248 = vmul.f32 %v2182, %v2240
      %v2249 = vmul.f32 %v2183, %v2240
      %v2250 = vmul.f32 %v2184, %v2240
      %v2251 = vmul.f32 %v2185, %v2240
      %v2252 = vmul.f32 %v2186, %v2240
      %v2253 = vmul.f32 %v2187, %v2240
      %v2254 = vmul.f32 %v2188, %v2240
      %v2255 = vmul.f32 %v2189, %v2240
      %v2256 = vmul.f32 %v2190, %v2240
      %v2257 = vmul.f32 %v2191, %v2240
      %v2258 = vmul.f32 %v2192, %v2240
      %v2259 = vmul.f32 %v2193, %v2240
      %v2260 = vmul.f32 %v2194, %v2240
      %v2261 = vmul.f32 %v2195, %v2240
      %v2262 = vmul.f32 %v2196, %v2240
      %v2263 = vmul.f32 %v2197, %v2240
      %v2264 = vmul.f32 %v2198, %v2240
      %v2265 = vmul.f32 %v2199, %v2240
      %v2266 = vmul.f32 %v2200, %v2240
      %v2267 = vmul.f32 %v2201, %v2240
      %v2268 = vmul.f32 %v2202, %v2240
      %v2269 = vmul.f32 %v2203, %v2240
      %v2270 = vmul.f32 %v2204, %v2240
      %v2271 = vmul.f32 %v2205, %v2240
      %v2272 = vmul.f32 %v2206, %v2240
      %v2273 = vmul.f32 %v2207, %v2240
      %v2274 = vmul.f32 %v2208, %v2240
      %v2275 = vmul.f32 %v2209, %v2240
      %v2276 = vmul.f32 %v2210, %v2240
      %v2277 = vmul.f32 %v2211, %v2240
      %v2278 = vmul.f32 %v2212, %v2240
      %v2279 = vmul.f32 %v2213, %v2240
      %v2280 = vmul.f32 %v2214, %v2240
      %v2281 = vmul.f32 %v2215, %v2240
      %v2282 = vmul.f32 %v2216, %v2240
      %v2283 = vmul.f32 %v2217, %v2240
      %v2284 = vmul.f32 %v2218, %v2240
      %v2285 = vmul.f32 %v2219, %v2240
      %v2286 = vmul.f32 %v2220, %v2240
      %v2287 = vmul.f32 %v2221, %v2240
      %v2288 = vmul.f32 %v2222, %v2240
      %v2289 = vmul.f32 %v2223, %v2240
      %v2290 = vmul.f32 %v2224, %v2240
      %v2291 = vmul.f32 %v2225, %v2240
      %v2292 = vmul.f32 %v2226, %v2240
      %v2293 = vmul.f32 %v2227, %v2240
      %v2294 = vmul.f32 %v2228, %v2240
      %v2295 = vmul.f32 %v2229, %v2240
      %v2296 = vmul.f32 %v2230, %v2240
      %v2297 = vmul.f32 %v2231, %v2240
      %v2298 = vmul.f32 %v2232, %v2240
      %v2299 = vmul.f32 %v2233, %v2240
      %v2300 = vmul.f32 %v2234, %v2240
      %v2301 = vmul.f32 %v2235, %v2240
      %v2302 = vmul.f32 %v2236, %v2240
      %v2303 = vmul.f32 %v2237, %v2240
      %v2304 = vmul.f32 %v2238, %v2240
      %v2305 = vadd.f32 %v2111, %v2241
      %v2306 = vadd.f32 %v2112, %v2242
      %v2307 = vadd.f32 %v2113, %v2243
      %v2308 = vadd.f32 %v2114, %v2244
      %v2309 = vadd.f32 %v2115, %v2245
      %v2310 = vadd.f32 %v2116, %v2246
      %v2311 = vadd.f32 %v2117, %v2247
      %v2312 = vadd.f32 %v2118, %v2248
      %v2313 = vadd.f32 %v2119, %v2249
      %v2314 = vadd.f32 %v2120, %v2250
      %v2315 = vadd.f32 %v2121, %v2251
      %v2316 = vadd.f32 %v2122, %v2252
      %v2317 = vadd.f32 %v2123, %v2253
      %v2318 = vadd.f32 %v2124, %v2254
      %v2319 = vadd.f32 %v2125, %v2255
      %v2320 = vadd.f32 %v2126, %v2256
      %v2321 = vadd.f32 %v2127, %v2257
      %v2322 = vadd.f32 %v2128, %v2258
      %v2323 = vadd.f32 %v2129, %v2259
      %v2324 = vadd.f32 %v2130, %v2260
      %v2325 = vadd.f32 %v2131, %v2261
      %v2326 = vadd.f32 %v2132, %v2262
      %v2327 = vadd.f32 %v2133, %v2263
      %v2328 = vadd.f32 %v2134, %v2264
      %v2329 = vadd.f32 %v2135, %v2265
      %v2330 = vadd.f32 %v2136, %v2266
      %v2331 = vadd.f32 %v2137, %v2267
      %v2332 = vadd.f32 %v2138, %v2268
      %v2333 = vadd.f32 %v2139, %v2269
      %v2334 = vadd.f32 %v2140, %v2270
      %v2335 = vadd.f32 %v2141, %v2271
      %v2336 = vadd.f32 %v2142, %v2272
      %v2337 = vadd.f32 %v2143, %v2273
      %v2338 = vadd.f32 %v2144, %v2274
      %v2339 = vadd.f32 %v2145, %v2275
      %v2340 = vadd.f32 %v2146, %v2276
      %v2341 = vadd.f32 %v2147, %v2277
      %v2342 = vadd.f32 %v2148, %v2278
      %v2343 = vadd.f32 %v2149, %v2279
      %v2344 = vadd.f32 %v2150, %v2280
      %v2345 = vadd.f32 %v2151, %v2281
      %v2346 = vadd.f32 %v2152, %v2282
      %v2347 = vadd.f32 %v2153, %v2283
      %v2348 = vadd.f32 %v2154, %v2284
      %v2349 = vadd.f32 %v2155, %v2285
      %v2350 = vadd.f32 %v2156, %v2286
      %v2351 = vadd.f32 %v2157, %v2287
      %v2352 = vadd.f32 %v2158, %v2288
      %v2353 = vadd.f32 %v2159, %v2289
      %v2354 = vadd.f32 %v2160, %v2290
      %v2355 = vadd.f32 %v2161, %v2291
      %v2356 = vadd.f32 %v2162, %v2292
      %v2357 = vadd.f32 %v2163, %v2293
      %v2358 = vadd.f32 %v2164, %v2294
      %v2359 = vadd.f32 %v2165, %v2295
      %v2360 = vadd.f32 %v2166, %v2296
      %v2361 = vadd.f32 %v2167, %v2297
      %v2362 = vadd.f32 %v2168, %v2298
      %v2363 = vadd.f32 %v2169, %v2299
      %v2364 = vadd.f32 %v2170, %v2300
      %v2365 = vadd.f32 %v2171, %v2301
      %v2366 = vadd.f32 %v2172, %v2302
      %v2367 = vadd.f32 %v2173, %v2303
      %v2368 = vadd.f32 %v2174, %v2304
      %v2369 = vld [vmem:[#allocation2 + $0x9] sm:$0xff]
      %v2370 = vld [vmem:[#allocation2 + $0x11] sm:$0xff]
      %v2371 = vld [vmem:[#allocation2 + $0x19] sm:$0xff]
      %v2372 = vld [vmem:[#allocation2 + $0x21] sm:$0xff]
      %v2373 = vld [vmem:[#allocation2 + $0x29] sm:$0xff]
      %v2374 = vld [vmem:[#allocation2 + $0x31] sm:$0xff]
      %v2375 = vld [vmem:[#allocation2 + $0x39] sm:$0xff]
      %v2376 = vld [vmem:[#allocation2 + $0x41] sm:$0xff]
      %v2377 = vld [vmem:[#allocation2 + $0x49] sm:$0xff]
      %v2378 = vld [vmem:[#allocation2 + $0x51] sm:$0xff]
      %v2379 = vld [vmem:[#allocation2 + $0x59] sm:$0xff]
      %v2380 = vld [vmem:[#allocation2 + $0x61] sm:$0xff]
      %v2381 = vld [vmem:[#allocation2 + $0x69] sm:$0xff]
      %v2382 = vld [vmem:[#allocation2 + $0x71] sm:$0xff]
      %v2383 = vld [vmem:[#allocation2 + $0x79] sm:$0xff]
      %v2384 = vld [vmem:[#allocation2 + $0x81] sm:$0xff]
      %v2385 = vld [vmem:[#allocation2 + $0x89] sm:$0xff]
      %v2386 = vld [vmem:[#allocation2 + $0x91] sm:$0xff]
      %v2387 = vld [vmem:[#allocation2 + $0x99] sm:$0xff]
      %v2388 = vld [vmem:[#allocation2 + $0xa1] sm:$0xff]
      %v2389 = vld [vmem:[#allocation2 + $0xa9] sm:$0xff]
      %v2390 = vld [vmem:[#allocation2 + $0xb1] sm:$0xff]
      %v2391 = vld [vmem:[#allocation2 + $0xb9] sm:$0xff]
      %v2392 = vld [vmem:[#allocation2 + $0xc1] sm:$0xff]
      %v2393 = vld [vmem:[#allocation2 + $0xc9] sm:$0xff]
      %v2394 = vld [vmem:[#allocation2 + $0xd1] sm:$0xff]
      %v2395 = vld [vmem:[#allocation2 + $0xd9] sm:$0xff]
      %v2396 = vld [vmem:[#allocation2 + $0xe1] sm:$0xff]
      %v2397 = vld [vmem:[#allocation2 + $0xe9] sm:$0xff]
      %v2398 = vld [vmem:[#allocation2 + $0xf1] sm:$0xff]
      %v2399 = vld [vmem:[#allocation2 + $0xf9] sm:$0xff]
      %v2400 = vld [vmem:[#allocation2 + $0x101] sm:$0xff]
      %v2401 = vld [vmem:[#allocation2 + $0x109] sm:$0xff]
      %v2402 = vld [vmem:[#allocation2 + $0x111] sm:$0xff]
      %v2403 = vld [vmem:[#allocation2 + $0x119] sm:$0xff]
      %v2404 = vld [vmem:[#allocation2 + $0x121] sm:$0xff]
      %v2405 = vld [vmem:[#allocation2 + $0x129] sm:$0xff]
      %v2406 = vld [vmem:[#allocation2 + $0x131] sm:$0xff]
      %v2407 = vld [vmem:[#allocation2 + $0x139] sm:$0xff]
      %v2408 = vld [vmem:[#allocation2 + $0x141] sm:$0xff]
      %v2409 = vld [vmem:[#allocation2 + $0x149] sm:$0xff]
      %v2410 = vld [vmem:[#allocation2 + $0x151] sm:$0xff]
      %v2411 = vld [vmem:[#allocation2 + $0x159] sm:$0xff]
      %v2412 = vld [vmem:[#allocation2 + $0x161] sm:$0xff]
      %v2413 = vld [vmem:[#allocation2 + $0x169] sm:$0xff]
      %v2414 = vld [vmem:[#allocation2 + $0x171] sm:$0xff]
      %v2415 = vld [vmem:[#allocation2 + $0x179] sm:$0xff]
      %v2416 = vld [vmem:[#allocation2 + $0x181] sm:$0xff]
      %v2417 = vld [vmem:[#allocation2 + $0x189] sm:$0xff]
      %v2418 = vld [vmem:[#allocation2 + $0x191] sm:$0xff]
      %v2419 = vld [vmem:[#allocation2 + $0x199] sm:$0xff]
      %v2420 = vld [vmem:[#allocation2 + $0x1a1] sm:$0xff]
      %v2421 = vld [vmem:[#allocation2 + $0x1a9] sm:$0xff]
      %v2422 = vld [vmem:[#allocation2 + $0x1b1] sm:$0xff]
      %v2423 = vld [vmem:[#allocation2 + $0x1b9] sm:$0xff]
      %v2424 = vld [vmem:[#allocation2 + $0x1c1] sm:$0xff]
      %v2425 = vld [vmem:[#allocation2 + $0x1c9] sm:$0xff]
      %v2426 = vld [vmem:[#allocation2 + $0x1d1] sm:$0xff]
      %v2427 = vld [vmem:[#allocation2 + $0x1d9] sm:$0xff]
      %v2428 = vld [vmem:[#allocation2 + $0x1e1] sm:$0xff]
      %v2429 = vld [vmem:[#allocation2 + $0x1e9] sm:$0xff]
      %v2430 = vld [vmem:[#allocation2 + $0x1f1] sm:$0xff]
      %v2431 = vld [vmem:[#allocation2 + $0x1f9] sm:$0xff]
      %v2432 = vld [vmem:[#allocation2 + $0x201] sm:$0xff]
      %v2433 = vld [vmem:[%s6 + $0x2] sm:$0x1]
      %v2434 = vperm.slane %v2433, 0
      %v2435 = vmul.f32 %v2369, %v2434
      %v2436 = vmul.f32 %v2370, %v2434
      %v2437 = vmul.f32 %v2371, %v2434
      %v2438 = vmul.f32 %v2372, %v2434
      %v2439 = vmul.f32 %v2373, %v2434
      %v2440 = vmul.f32 %v2374, %v2434
      %v2441 = vmul.f32 %v2375, %v2434
      %v2442 = vmul.f32 %v2376, %v2434
      %v2443 = vmul.f32 %v2377, %v2434
      %v2444 = vmul.f32 %v2378, %v2434
      %v2445 = vmul.f32 %v2379, %v2434
      %v2446 = vmul.f32 %v2380, %v2434
      %v2447 = vmul.f32 %v2381, %v2434
      %v2448 = vmul.f32 %v2382, %v2434
      %v2449 = vmul.f32 %v2383, %v2434
      %v2450 = vmul.f32 %v2384, %v2434
      %v2451 = vmul.f32 %v2385, %v2434
      %v2452 = vmul.f32 %v2386, %v2434
      %v2453 = vmul.f32 %v2387, %v2434
      %v2454 = vmul.f32 %v2388, %v2434
      %v2455 = vmul.f32 %v2389, %v2434
      %v2456 = vmul.f32 %v2390, %v2434
      %v2457 = vmul.f32 %v2391, %v2434
      %v2458 = vmul.f32 %v2392, %v2434
      %v2459 = vmul.f32 %v2393, %v2434
      %v2460 = vmul.f32 %v2394, %v2434
      %v2461 = vmul.f32 %v2395, %v2434
      %v2462 = vmul.f32 %v2396, %v2434
      %v2463 = vmul.f32 %v2397, %v2434
      %v2464 = vmul.f32 %v2398, %v2434
      %v2465 = vmul.f32 %v2399, %v2434
      %v2466 = vmul.f32 %v2400, %v2434
      %v2467 = vmul.f32 %v2401, %v2434
      %v2468 = vmul.f32 %v2402, %v2434
      %v2469 = vmul.f32 %v2403, %v2434
      %v2470 = vmul.f32 %v2404, %v2434
      %v2471 = vmul.f32 %v2405, %v2434
      %v2472 = vmul.f32 %v2406, %v2434
      %v2473 = vmul.f32 %v2407, %v2434
      %v2474 = vmul.f32 %v2408, %v2434
      %v2475 = vmul.f32 %v2409, %v2434
      %v2476 = vmul.f32 %v2410, %v2434
      %v2477 = vmul.f32 %v2411, %v2434
      %v2478 = vmul.f32 %v2412, %v2434
      %v2479 = vmul.f32 %v2413, %v2434
      %v2480 = vmul.f32 %v2414, %v2434
      %v2481 = vmul.f32 %v2415, %v2434
      %v2482 = vmul.f32 %v2416, %v2434
      %v2483 = vmul.f32 %v2417, %v2434
      %v2484 = vmul.f32 %v2418, %v2434
      %v2485 = vmul.f32 %v2419, %v2434
      %v2486 = vmul.f32 %v2420, %v2434
      %v2487 = vmul.f32 %v2421, %v2434
      %v2488 = vmul.f32 %v2422, %v2434
      %v2489 = vmul.f32 %v2423, %v2434
      %v2490 = vmul.f32 %v2424, %v2434
      %v2491 = vmul.f32 %v2425, %v2434
      %v2492 = vmul.f32 %v2426, %v2434
      %v2493 = vmul.f32 %v2427, %v2434
      %v2494 = vmul.f32 %v2428, %v2434
      %v2495 = vmul.f32 %v2429, %v2434
      %v2496 = vmul.f32 %v2430, %v2434
      %v2497 = vmul.f32 %v2431, %v2434
      %v2498 = vmul.f32 %v2432, %v2434
      %v2499 = vadd.f32 %v2305, %v2435
      %v2500 = vadd.f32 %v2306, %v2436
      %v2501 = vadd.f32 %v2307, %v2437
      %v2502 = vadd.f32 %v2308, %v2438
      %v2503 = vadd.f32 %v2309, %v2439
      %v2504 = vadd.f32 %v2310, %v2440
      %v2505 = vadd.f32 %v2311, %v2441
      %v2506 = vadd.f32 %v2312, %v2442
      %v2507 = vadd.f32 %v2313, %v2443
      %v2508 = vadd.f32 %v2314, %v2444
      %v2509 = vadd.f32 %v2315, %v2445
      %v2510 = vadd.f32 %v2316, %v2446
      %v2511 = vadd.f32 %v2317, %v2447
      %v2512 = vadd.f32 %v2318, %v2448
      %v2513 = vadd.f32 %v2319, %v2449
      %v2514 = vadd.f32 %v2320, %v2450
      %v2515 = vadd.f32 %v2321, %v2451
      %v2516 = vadd.f32 %v2322, %v2452
      %v2517 = vadd.f32 %v2323, %v2453
      %v2518 = vadd.f32 %v2324, %v2454
      %v2519 = vadd.f32 %v2325, %v2455
      %v2520 = vadd.f32 %v2326, %v2456
      %v2521 = vadd.f32 %v2327, %v2457
      %v2522 = vadd.f32 %v2328, %v2458
      %v2523 = vadd.f32 %v2329, %v2459
      %v2524 = vadd.f32 %v2330, %v2460
      %v2525 = vadd.f32 %v2331, %v2461
      %v2526 = vadd.f32 %v2332, %v2462
      %v2527 = vadd.f32 %v2333, %v2463
      %v2528 = vadd.f32 %v2334, %v2464
      %v2529 = vadd.f32 %v2335, %v2465
      %v2530 = vadd.f32 %v2336, %v2466
      %v2531 = vadd.f32 %v2337, %v2467
      %v2532 = vadd.f32 %v2338, %v2468
      %v2533 = vadd.f32 %v2339, %v2469
      %v2534 = vadd.f32 %v2340, %v2470
      %v2535 = vadd.f32 %v2341, %v2471
      %v2536 = vadd.f32 %v2342, %v2472
      %v2537 = vadd.f32 %v2343, %v2473
      %v2538 = vadd.f32 %v2344, %v2474
      %v2539 = vadd.f32 %v2345, %v2475
      %v2540 = vadd.f32 %v2346, %v2476
      %v2541 = vadd.f32 %v2347, %v2477
      %v2542 = vadd.f32 %v2348, %v2478
      %v2543 = vadd.f32 %v2349, %v2479
      %v2544 = vadd.f32 %v2350, %v2480
      %v2545 = vadd.f32 %v2351, %v2481
      %v2546 = vadd.f32 %v2352, %v2482
      %v2547 = vadd.f32 %v2353, %v2483
      %v2548 = vadd.f32 %v2354, %v2484
      %v2549 = vadd.f32 %v2355, %v2485
      %v2550 = vadd.f32 %v2356, %v2486
      %v2551 = vadd.f32 %v2357, %v2487
      %v2552 = vadd.f32 %v2358, %v2488
      %v2553 = vadd.f32 %v2359, %v2489
      %v2554 = vadd.f32 %v2360, %v2490
      %v2555 = vadd.f32 %v2361, %v2491
      %v2556 = vadd.f32 %v2362, %v2492
      %v2557 = vadd.f32 %v2363, %v2493
      %v2558 = vadd.f32 %v2364, %v2494
      %v2559 = vadd.f32 %v2365, %v2495
      %v2560 = vadd.f32 %v2366, %v2496
      %v2561 = vadd.f32 %v2367, %v2497
      %v2562 = vadd.f32 %v2368, %v2498
      %v2563 = vld [vmem:[#allocation2 + $0x207] sm:$0xff]
      %v2564 = vld [vmem:[#allocation2 + $0x20f] sm:$0xff]
      %v2565 = vld [vmem:[#allocation2 + $0x217] sm:$0xff]
      %v2566 = vld [vmem:[%s6 + $0x3] sm:$0x1]
      %v2567 = vperm.slane %v2566, 0
      %v2568 = vmul.f32 %v1984, %v2567
      %v2569 = vmul.f32 %v1985, %v2567
      %v2570 = vmul.f32 %v1986, %v2567
      %v2571 = vmul.f32 %v1987, %v2567
      %v2572 = vmul.f32 %v1988, %v2567
      %v2573 = vmul.f32 %v1989, %v2567
      %v2574 = vmul.f32 %v1990, %v2567
      %v2575 = vmul.f32 %v1991, %v2567
      %v2576 = vmul.f32 %v1992, %v2567
      %v2577 = vmul.f32 %v1993, %v2567
      %v2578 = vmul.f32 %v1994, %v2567
      %v2579 = vmul.f32 %v1995, %v2567
      %v2580 = vmul.f32 %v1996, %v2567
      %v2581 = vmul.f32 %v1997, %v2567
      %v2582 = vmul.f32 %v1998, %v2567
      %v2583 = vmul.f32 %v1999, %v2567
      %v2584 = vmul.f32 %v2000, %v2567
      %v2585 = vmul.f32 %v2001, %v2567
      %v2586 = vmul.f32 %v2002, %v2567
      %v2587 = vmul.f32 %v2003, %v2567
      %v2588 = vmul.f32 %v2004, %v2567
      %v2589 = vmul.f32 %v2005, %v2567
      %v2590 = vmul.f32 %v2006, %v2567
      %v2591 = vmul.f32 %v2007, %v2567
      %v2592 = vmul.f32 %v2008, %v2567
      %v2593 = vmul.f32 %v2009, %v2567
      %v2594 = vmul.f32 %v2010, %v2567
      %v2595 = vmul.f32 %v2011, %v2567
      %v2596 = vmul.f32 %v2012, %v2567
      %v2597 = vmul.f32 %v2013, %v2567
      %v2598 = vmul.f32 %v2014, %v2567
      %v2599 = vmul.f32 %v2015, %v2567
      %v2600 = vmul.f32 %v2016, %v2567
      %v2601 = vmul.f32 %v2017, %v2567
      %v2602 = vmul.f32 %v2018, %v2567
      %v2603 = vmul.f32 %v2019, %v2567
      %v2604 = vmul.f32 %v2020, %v2567
      %v2605 = vmul.f32 %v2021, %v2567
      %v2606 = vmul.f32 %v2022, %v2567
      %v2607 = vmul.f32 %v2023, %v2567
      %v2608 = vmul.f32 %v2024, %v2567
      %v2609 = vmul.f32 %v2025, %v2567
      %v2610 = vmul.f32 %v2026, %v2567
      %v2611 = vmul.f32 %v2027, %v2567
      %v2612 = vmul.f32 %v2028, %v2567
      %v2613 = vmul.f32 %v2029, %v2567
      %v2614 = vmul.f32 %v2030, %v2567
      %v2615 = vmul.f32 %v2031, %v2567
      %v2616 = vmul.f32 %v2032, %v2567
      %v2617 = vmul.f32 %v2033, %v2567
      %v2618 = vmul.f32 %v2034, %v2567
      %v2619 = vmul.f32 %v2035, %v2567
      %v2620 = vmul.f32 %v2036, %v2567
      %v2621 = vmul.f32 %v2037, %v2567
      %v2622 = vmul.f32 %v2038, %v2567
      %v2623 = vmul.f32 %v2039, %v2567
      %v2624 = vmul.f32 %v2040, %v2567
      %v2625 = vmul.f32 %v2041, %v2567
      %v2626 = vmul.f32 %v2042, %v2567
      %v2627 = vmul.f32 %v2043, %v2567
      %v2628 = vmul.f32 %v2044, %v2567
      %v2629 = vmul.f32 %v2563, %v2567
      %v2630 = vmul.f32 %v2564, %v2567
      %v2631 = vmul.f32 %v2565, %v2567
      %v2632 = vadd.f32 %v2499, %v2568
      %v2633 = vadd.f32 %v2500, %v2569
      %v2634 = vadd.f32 %v2501, %v2570
      %v2635 = vadd.f32 %v2502, %v2571
      %v2636 = vadd.f32 %v2503, %v2572
      %v2637 = vadd.f32 %v2504, %v2573
      %v2638 = vadd.f32 %v2505, %v2574
      %v2639 = vadd.f32 %v2506, %v2575
      %v2640 = vadd.f32 %v2507, %v2576
      %v2641 = vadd.f32 %v2508, %v2577
      %v2642 = vadd.f32 %v2509, %v2578
      %v2643 = vadd.f32 %v2510, %v2579
      %v2644 = vadd.f32 %v2511, %v2580
      %v2645 = vadd.f32 %v2512, %v2581
      %v2646 = vadd.f32 %v2513, %v2582
      %v2647 = vadd.f32 %v2514, %v2583
      %v2648 = vadd.f32 %v2515, %v2584
      %v2649 = vadd.f32 %v2516, %v2585
      %v2650 = vadd.f32 %v2517, %v2586
      %v2651 = vadd.f32 %v2518, %v2587
      %v2652 = vadd.f32 %v2519, %v2588
      %v2653 = vadd.f32 %v2520, %v2589
      %v2654 = vadd.f32 %v2521, %v2590
      %v2655 = vadd.f32 %v2522, %v2591
      %v2656 = vadd.f32 %v2523, %v2592
      %v2657 = vadd.f32 %v2524, %v2593
      %v2658 = vadd.f32 %v2525, %v2594
      %v2659 = vadd.f32 %v2526, %v2595
      %v2660 = vadd.f32 %v2527, %v2596
      %v2661 = vadd.f32 %v2528, %v2597
      %v2662 = vadd.f32 %v2529, %v2598
      %v2663 = vadd.f32 %v2530, %v2599
      %v2664 = vadd.f32 %v2531, %v2600
      %v2665 = vadd.f32 %v2532, %v2601
      %v2666 = vadd.f32 %v2533, %v2602
      %v2667 = vadd.f32 %v2534, %v2603
      %v2668 = vadd.f32 %v2535, %v2604
      %v2669 = vadd.f32 %v2536, %v2605
      %v2670 = vadd.f32 %v2537, %v2606
      %v2671 = vadd.f32 %v2538, %v2607
      %v2672 = vadd.f32 %v2539, %v2608
      %v2673 = vadd.f32 %v2540, %v2609
      %v2674 = vadd.f32 %v2541, %v2610
      %v2675 = vadd.f32 %v2542, %v2611
      %v2676 = vadd.f32 %v2543, %v2612
      %v2677 = vadd.f32 %v2544, %v2613
      %v2678 = vadd.f32 %v2545, %v2614
      %v2679 = vadd.f32 %v2546, %v2615
      %v2680 = vadd.f32 %v2547, %v2616
      %v2681 = vadd.f32 %v2548, %v2617
      %v2682 = vadd.f32 %v2549, %v2618
      %v2683 = vadd.f32 %v2550, %v2619
      %v2684 = vadd.f32 %v2551, %v2620
      %v2685 = vadd.f32 %v2552, %v2621
      %v2686 = vadd.f32 %v2553, %v2622
      %v2687 = vadd.f32 %v2554, %v2623
      %v2688 = vadd.f32 %v2555, %v2624
      %v2689 = vadd.f32 %v2556, %v2625
      %v2690 = vadd.f32 %v2557, %v2626
      %v2691 = vadd.f32 %v2558, %v2627
      %v2692 = vadd.f32 %v2559, %v2628
      %v2693 = vadd.f32 %v2560, %v2629
      %v2694 = vadd.f32 %v2561, %v2630
      %v2695 = vadd.f32 %v2562, %v2631
      %v2696 = vld [vmem:[#allocation2 + $0x208] sm:$0xff]
      %v2697 = vld [vmem:[#allocation2 + $0x210] sm:$0xff]
      %v2698 = vld [vmem:[#allocation2 + $0x218] sm:$0xff]
      %v2699 = vld [vmem:[%s6 + $0x4] sm:$0x1]
      %v2700 = vperm.slane %v2699, 0
      %v2701 = vmul.f32 %v2178, %v2700
      %v2702 = vmul.f32 %v2179, %v2700
      %v2703 = vmul.f32 %v2180, %v2700
      %v2704 = vmul.f32 %v2181, %v2700
      %v2705 = vmul.f32 %v2182, %v2700
      %v2706 = vmul.f32 %v2183, %v2700
      %v2707 = vmul.f32 %v2184, %v2700
      %v2708 = vmul.f32 %v2185, %v2700
      %v2709 = vmul.f32 %v2186, %v2700
      %v2710 = vmul.f32 %v2187, %v2700
      %v2711 = vmul.f32 %v2188, %v2700
      %v2712 = vmul.f32 %v2189, %v2700
      %v2713 = vmul.f32 %v2190, %v2700
      %v2714 = vmul.f32 %v2191, %v2700
      %v2715 = vmul.f32 %v2192, %v2700
      %v2716 = vmul.f32 %v2193, %v2700
      %v2717 = vmul.f32 %v2194, %v2700
      %v2718 = vmul.f32 %v2195, %v2700
      %v2719 = vmul.f32 %v2196, %v2700
      %v2720 = vmul.f32 %v2197, %v2700
      %v2721 = vmul.f32 %v2198, %v2700
      %v2722 = vmul.f32 %v2199, %v2700
      %v2723 = vmul.f32 %v2200, %v2700
      %v2724 = vmul.f32 %v2201, %v2700
      %v2725 = vmul.f32 %v2202, %v2700
      %v2726 = vmul.f32 %v2203, %v2700
      %v2727 = vmul.f32 %v2204, %v2700
      %v2728 = vmul.f32 %v2205, %v2700
      %v2729 = vmul.f32 %v2206, %v2700
      %v2730 = vmul.f32 %v2207, %v2700
      %v2731 = vmul.f32 %v2208, %v2700
      %v2732 = vmul.f32 %v2209, %v2700
      %v2733 = vmul.f32 %v2210, %v2700
      %v2734 = vmul.f32 %v2211, %v2700
      %v2735 = vmul.f32 %v2212, %v2700
      %v2736 = vmul.f32 %v2213, %v2700
      %v2737 = vmul.f32 %v2214, %v2700
      %v2738 = vmul.f32 %v2215, %v2700
      %v2739 = vmul.f32 %v2216, %v2700
      %v2740 = vmul.f32 %v2217, %v2700
      %v2741 = vmul.f32 %v2218, %v2700
      %v2742 = vmul.f32 %v2219, %v2700
      %v2743 = vmul.f32 %v2220, %v2700
      %v2744 = vmul.f32 %v2221, %v2700
      %v2745 = vmul.f32 %v2222, %v2700
      %v2746 = vmul.f32 %v2223, %v2700
      %v2747 = vmul.f32 %v2224, %v2700
      %v2748 = vmul.f32 %v2225, %v2700
      %v2749 = vmul.f32 %v2226, %v2700
      %v2750 = vmul.f32 %v2227, %v2700
      %v2751 = vmul.f32 %v2228, %v2700
      %v2752 = vmul.f32 %v2229, %v2700
      %v2753 = vmul.f32 %v2230, %v2700
      %v2754 = vmul.f32 %v2231, %v2700
      %v2755 = vmul.f32 %v2232, %v2700
      %v2756 = vmul.f32 %v2233, %v2700
      %v2757 = vmul.f32 %v2234, %v2700
      %v2758 = vmul.f32 %v2235, %v2700
      %v2759 = vmul.f32 %v2236, %v2700
      %v2760 = vmul.f32 %v2237, %v2700
      %v2761 = vmul.f32 %v2238, %v2700
      %v2762 = vmul.f32 %v2696, %v2700
      %v2763 = vmul.f32 %v2697, %v2700
      %v2764 = vmul.f32 %v2698, %v2700
      %v2765 = vadd.f32 %v2632, %v2701
      %v2766 = vadd.f32 %v2633, %v2702
      %v2767 = vadd.f32 %v2634, %v2703
      %v2768 = vadd.f32 %v2635, %v2704
      %v2769 = vadd.f32 %v2636, %v2705
      %v2770 = vadd.f32 %v2637, %v2706
      %v2771 = vadd.f32 %v2638, %v2707
      %v2772 = vadd.f32 %v2639, %v2708
      %v2773 = vadd.f32 %v2640, %v2709
      %v2774 = vadd.f32 %v2641, %v2710
      %v2775 = vadd.f32 %v2642, %v2711
      %v2776 = vadd.f32 %v2643, %v2712
      %v2777 = vadd.f32 %v2644, %v2713
      %v2778 = vadd.f32 %v2645, %v2714
      %v2779 = vadd.f32 %v2646, %v2715
      %v2780 = vadd.f32 %v2647, %v2716
      %v2781 = vadd.f32 %v2648, %v2717
      %v2782 = vadd.f32 %v2649, %v2718
      %v2783 = vadd.f32 %v2650, %v2719
      %v2784 = vadd.f32 %v2651, %v2720
      %v2785 = vadd.f32 %v2652, %v2721
      %v2786 = vadd.f32 %v2653, %v2722
      %v2787 = vadd.f32 %v2654, %v2723
      %v2788 = vadd.f32 %v2655, %v2724
      %v2789 = vadd.f32 %v2656, %v2725
      %v2790 = vadd.f32 %v2657, %v2726
      %v2791 = vadd.f32 %v2658, %v2727
      %v2792 = vadd.f32 %v2659, %v2728
      %v2793 = vadd.f32 %v2660, %v2729
      %v2794 = vadd.f32 %v2661, %v2730
      %v2795 = vadd.f32 %v2662, %v2731
      %v2796 = vadd.f32 %v2663, %v2732
      %v2797 = vadd.f32 %v2664, %v2733
      %v2798 = vadd.f32 %v2665, %v2734
      %v2799 = vadd.f32 %v2666, %v2735
      %v2800 = vadd.f32 %v2667, %v2736
      %v2801 = vadd.f32 %v2668, %v2737
      %v2802 = vadd.f32 %v2669, %v2738
      %v2803 = vadd.f32 %v2670, %v2739
      %v2804 = vadd.f32 %v2671, %v2740
      %v2805 = vadd.f32 %v2672, %v2741
      %v2806 = vadd.f32 %v2673, %v2742
      %v2807 = vadd.f32 %v2674, %v2743
      %v2808 = vadd.f32 %v2675, %v2744
      %v2809 = vadd.f32 %v2676, %v2745
      %v2810 = vadd.f32 %v2677, %v2746
      %v2811 = vadd.f32 %v2678, %v2747
      %v2812 = vadd.f32 %v2679, %v2748
      %v2813 = vadd.f32 %v2680, %v2749
      %v2814 = vadd.f32 %v2681, %v2750
      %v2815 = vadd.f32 %v2682, %v2751
      %v2816 = vadd.f32 %v2683, %v2752
      %v2817 = vadd.f32 %v2684, %v2753
      %v2818 = vadd.f32 %v2685, %v2754
      %v2819 = vadd.f32 %v2686, %v2755
      %v2820 = vadd.f32 %v2687, %v2756
      %v2821 = vadd.f32 %v2688, %v2757
      %v2822 = vadd.f32 %v2689, %v2758
      %v2823 = vadd.f32 %v2690, %v2759
      %v2824 = vadd.f32 %v2691, %v2760
      %v2825 = vadd.f32 %v2692, %v2761
      %v2826 = vadd.f32 %v2693, %v2762
      %v2827 = vadd.f32 %v2694, %v2763
      %v2828 = vadd.f32 %v2695, %v2764
      %v2829 = vld [vmem:[#allocation2 + $0x209] sm:$0xff]
      %v2830 = vld [vmem:[#allocation2 + $0x211] sm:$0xff]
      %v2831 = vld [vmem:[#allocation2 + $0x219] sm:$0xff]
      %v2832 = vld [vmem:[%s6 + $0x5] sm:$0x1]
      %v2833 = vperm.slane %v2832, 0
      %v2834 = vmul.f32 %v2372, %v2833
      %v2835 = vmul.f32 %v2373, %v2833
      %v2836 = vmul.f32 %v2374, %v2833
      %v2837 = vmul.f32 %v2375, %v2833
      %v2838 = vmul.f32 %v2376, %v2833
      %v2839 = vmul.f32 %v2377, %v2833
      %v2840 = vmul.f32 %v2378, %v2833
      %v2841 = vmul.f32 %v2379, %v2833
      %v2842 = vmul.f32 %v2380, %v2833
      %v2843 = vmul.f32 %v2381, %v2833
      %v2844 = vmul.f32 %v2382, %v2833
      %v2845 = vmul.f32 %v2383, %v2833
      %v2846 = vmul.f32 %v2384, %v2833
      %v2847 = vmul.f32 %v2385, %v2833
      %v2848 = vmul.f32 %v2386, %v2833
      %v2849 = vmul.f32 %v2387, %v2833
      %v2850 = vmul.f32 %v2388, %v2833
      %v2851 = vmul.f32 %v2389, %v2833
      %v2852 = vmul.f32 %v2390, %v2833
      %v2853 = vmul.f32 %v2391, %v2833
      %v2854 = vmul.f32 %v2392, %v2833
      %v2855 = vmul.f32 %v2393, %v2833
      %v2856 = vmul.f32 %v2394, %v2833
      %v2857 = vmul.f32 %v2395, %v2833
      %v2858 = vmul.f32 %v2396, %v2833
      %v2859 = vmul.f32 %v2397, %v2833
      %v2860 = vmul.f32 %v2398, %v2833
      %v2861 = vmul.f32 %v2399, %v2833
      %v2862 = vmul.f32 %v2400, %v2833
      %v2863 = vmul.f32 %v2401, %v2833
      %v2864 = vmul.f32 %v2402, %v2833
      %v2865 = vmul.f32 %v2403, %v2833
      %v2866 = vmul.f32 %v2404, %v2833
      %v2867 = vmul.f32 %v2405, %v2833
      %v2868 = vmul.f32 %v2406, %v2833
      %v2869 = vmul.f32 %v2407, %v2833
      %v2870 = vmul.f32 %v2408, %v2833
      %v2871 = vmul.f32 %v2409, %v2833
      %v2872 = vmul.f32 %v2410, %v2833
      %v2873 = vmul.f32 %v2411, %v2833
      %v2874 = vmul.f32 %v2412, %v2833
      %v2875 = vmul.f32 %v2413, %v2833
      %v2876 = vmul.f32 %v2414, %v2833
      %v2877 = vmul.f32 %v2415, %v2833
      %v2878 = vmul.f32 %v2416, %v2833
      %v2879 = vmul.f32 %v2417, %v2833
      %v2880 = vmul.f32 %v2418, %v2833
      %v2881 = vmul.f32 %v2419, %v2833
      %v2882 = vmul.f32 %v2420, %v2833
      %v2883 = vmul.f32 %v2421, %v2833
      %v2884 = vmul.f32 %v2422, %v2833
      %v2885 = vmul.f32 %v2423, %v2833
      %v2886 = vmul.f32 %v2424, %v2833
      %v2887 = vmul.f32 %v2425, %v2833
      %v2888 = vmul.f32 %v2426, %v2833
      %v2889 = vmul.f32 %v2427, %v2833
      %v2890 = vmul.f32 %v2428, %v2833
      %v2891 = vmul.f32 %v2429, %v2833
      %v2892 = vmul.f32 %v2430, %v2833
      %v2893 = vmul.f32 %v2431, %v2833
      %v2894 = vmul.f32 %v2432, %v2833
      %v2895 = vmul.f32 %v2829, %v2833
      %v2896 = vmul.f32 %v2830, %v2833
      %v2897 = vmul.f32 %v2831, %v2833
      %v2898 = vadd.f32 %v2765, %v2834
      %v2899 = vadd.f32 %v2766, %v2835
      %v2900 = vadd.f32 %v2767, %v2836
      %v2901 = vadd.f32 %v2768, %v2837
      %v2902 = vadd.f32 %v2769, %v2838
      %v2903 = vadd.f32 %v2770, %v2839
      %v2904 = vadd.f32 %v2771, %v2840
      %v2905 = vadd.f32 %v2772, %v2841
      %v2906 = vadd.f32 %v2773, %v2842
      %v2907 = vadd.f32 %v2774, %v2843
      %v2908 = vadd.f32 %v2775, %v2844
      %v2909 = vadd.f32 %v2776, %v2845
      %v2910 = vadd.f32 %v2777, %v2846
      %v2911 = vadd.f32 %v2778, %v2847
      %v2912 = vadd.f32 %v2779, %v2848
      %v2913 = vadd.f32 %v2780, %v2849
      %v2914 = vadd.f32 %v2781, %v2850
      %v2915 = vadd.f32 %v2782, %v2851
      %v2916 = vadd.f32 %v2783, %v2852
      %v2917 = vadd.f32 %v2784, %v2853
      %v2918 = vadd.f32 %v2785, %v2854
      %v2919 = vadd.f32 %v2786, %v2855
      %v2920 = vadd.f32 %v2787, %v2856
      %v2921 = vadd.f32 %v2788, %v2857
      %v2922 = vadd.f32 %v2789, %v2858
      %v2923 = vadd.f32 %v2790, %v2859
      %v2924 = vadd.f32 %v2791, %v2860
      %v2925 = vadd.f32 %v2792, %v2861
      %v2926 = vadd.f32 %v2793, %v2862
      %v2927 = vadd.f32 %v2794, %v2863
      %v2928 = vadd.f32 %v2795, %v2864
      %v2929 = vadd.f32 %v2796, %v2865
      %v2930 = vadd.f32 %v2797, %v2866
      %v2931 = vadd.f32 %v2798, %v2867
      %v2932 = vadd.f32 %v2799, %v2868
      %v2933 = vadd.f32 %v2800, %v2869
      %v2934 = vadd.f32 %v2801, %v2870
      %v2935 = vadd.f32 %v2802, %v2871
      %v2936 = vadd.f32 %v2803, %v2872
      %v2937 = vadd.f32 %v2804, %v2873
      %v2938 = vadd.f32 %v2805, %v2874
      %v2939 = vadd.f32 %v2806, %v2875
      %v2940 = vadd.f32 %v2807, %v2876
      %v2941 = vadd.f32 %v2808, %v2877
      %v2942 = vadd.f32 %v2809, %v2878
      %v2943 = vadd.f32 %v2810, %v2879
      %v2944 = vadd.f32 %v2811, %v2880
      %v2945 = vadd.f32 %v2812, %v2881
      %v2946 = vadd.f32 %v2813, %v2882
      %v2947 = vadd.f32 %v2814, %v2883
      %v2948 = vadd.f32 %v2815, %v2884
      %v2949 = vadd.f32 %v2816, %v2885
      %v2950 = vadd.f32 %v2817, %v2886
      %v2951 = vadd.f32 %v2818, %v2887
      %v2952 = vadd.f32 %v2819, %v2888
      %v2953 = vadd.f32 %v2820, %v2889
      %v2954 = vadd.f32 %v2821, %v2890
      %v2955 = vadd.f32 %v2822, %v2891
      %v2956 = vadd.f32 %v2823, %v2892
      %v2957 = vadd.f32 %v2824, %v2893
      %v2958 = vadd.f32 %v2825, %v2894
      %v2959 = vadd.f32 %v2826, %v2895
      %v2960 = vadd.f32 %v2827, %v2896
      %v2961 = vadd.f32 %v2828, %v2897
      %v2962 = vld [vmem:[#allocation2 + $0x21f] sm:$0xff]
      %v2963 = vld [vmem:[#allocation2 + $0x227] sm:$0xff]
      %v2964 = vld [vmem:[#allocation2 + $0x22f] sm:$0xff]
      %v2965 = vld [vmem:[%s6 + $0x6] sm:$0x1]
      %v2966 = vperm.slane %v2965, 0
      %v2967 = vmul.f32 %v1987, %v2966
      %v2968 = vmul.f32 %v1988, %v2966
      %v2969 = vmul.f32 %v1989, %v2966
      %v2970 = vmul.f32 %v1990, %v2966
      %v2971 = vmul.f32 %v1991, %v2966
      %v2972 = vmul.f32 %v1992, %v2966
      %v2973 = vmul.f32 %v1993, %v2966
      %v2974 = vmul.f32 %v1994, %v2966
      %v2975 = vmul.f32 %v1995, %v2966
      %v2976 = vmul.f32 %v1996, %v2966
      %v2977 = vmul.f32 %v1997, %v2966
      %v2978 = vmul.f32 %v1998, %v2966
      %v2979 = vmul.f32 %v1999, %v2966
      %v2980 = vmul.f32 %v2000, %v2966
      %v2981 = vmul.f32 %v2001, %v2966
      %v2982 = vmul.f32 %v2002, %v2966
      %v2983 = vmul.f32 %v2003, %v2966
      %v2984 = vmul.f32 %v2004, %v2966
      %v2985 = vmul.f32 %v2005, %v2966
      %v2986 = vmul.f32 %v2006, %v2966
      %v2987 = vmul.f32 %v2007, %v2966
      %v2988 = vmul.f32 %v2008, %v2966
      %v2989 = vmul.f32 %v2009, %v2966
      %v2990 = vmul.f32 %v2010, %v2966
      %v2991 = vmul.f32 %v2011, %v2966
      %v2992 = vmul.f32 %v2012, %v2966
      %v2993 = vmul.f32 %v2013, %v2966
      %v2994 = vmul.f32 %v2014, %v2966
      %v2995 = vmul.f32 %v2015, %v2966
      %v2996 = vmul.f32 %v2016, %v2966
      %v2997 = vmul.f32 %v2017, %v2966
      %v2998 = vmul.f32 %v2018, %v2966
      %v2999 = vmul.f32 %v2019, %v2966
      %v3000 = vmul.f32 %v2020, %v2966
      %v3001 = vmul.f32 %v2021, %v2966
      %v3002 = vmul.f32 %v2022, %v2966
      %v3003 = vmul.f32 %v2023, %v2966
      %v3004 = vmul.f32 %v2024, %v2966
      %v3005 = vmul.f32 %v2025, %v2966
      %v3006 = vmul.f32 %v2026, %v2966
      %v3007 = vmul.f32 %v2027, %v2966
      %v3008 = vmul.f32 %v2028, %v2966
      %v3009 = vmul.f32 %v2029, %v2966
      %v3010 = vmul.f32 %v2030, %v2966
      %v3011 = vmul.f32 %v2031, %v2966
      %v3012 = vmul.f32 %v2032, %v2966
      %v3013 = vmul.f32 %v2033, %v2966
      %v3014 = vmul.f32 %v2034, %v2966
      %v3015 = vmul.f32 %v2035, %v2966
      %v3016 = vmul.f32 %v2036, %v2966
      %v3017 = vmul.f32 %v2037, %v2966
      %v3018 = vmul.f32 %v2038, %v2966
      %v3019 = vmul.f32 %v2039, %v2966
      %v3020 = vmul.f32 %v2040, %v2966
      %v3021 = vmul.f32 %v2041, %v2966
      %v3022 = vmul.f32 %v2042, %v2966
      %v3023 = vmul.f32 %v2043, %v2966
      %v3024 = vmul.f32 %v2044, %v2966
      %v3025 = vmul.f32 %v2563, %v2966
      %v3026 = vmul.f32 %v2564, %v2966
      %v3027 = vmul.f32 %v2565, %v2966
      %v3028 = vmul.f32 %v2962, %v2966
      %v3029 = vmul.f32 %v2963, %v2966
      %v3030 = vmul.f32 %v2964, %v2966
      %v3031 = vadd.f32 %v2898, %v2967
      %v3032 = vadd.f32 %v2899, %v2968
      %v3033 = vadd.f32 %v2900, %v2969
      %v3034 = vadd.f32 %v2901, %v2970
      %v3035 = vadd.f32 %v2902, %v2971
      %v3036 = vadd.f32 %v2903, %v2972
      %v3037 = vadd.f32 %v2904, %v2973
      %v3038 = vadd.f32 %v2905, %v2974
      %v3039 = vadd.f32 %v2906, %v2975
      %v3040 = vadd.f32 %v2907, %v2976
      %v3041 = vadd.f32 %v2908, %v2977
      %v3042 = vadd.f32 %v2909, %v2978
      %v3043 = vadd.f32 %v2910, %v2979
      %v3044 = vadd.f32 %v2911, %v2980
      %v3045 = vadd.f32 %v2912, %v2981
      %v3046 = vadd.f32 %v2913, %v2982
      %v3047 = vadd.f32 %v2914, %v2983
      %v3048 = vadd.f32 %v2915, %v2984
      %v3049 = vadd.f32 %v2916, %v2985
      %v3050 = vadd.f32 %v2917, %v2986
      %v3051 = vadd.f32 %v2918, %v2987
      %v3052 = vadd.f32 %v2919, %v2988
      %v3053 = vadd.f32 %v2920, %v2989
      %v3054 = vadd.f32 %v2921, %v2990
      %v3055 = vadd.f32 %v2922, %v2991
      %v3056 = vadd.f32 %v2923, %v2992
      %v3057 = vadd.f32 %v2924, %v2993
      %v3058 = vadd.f32 %v2925, %v2994
      %v3059 = vadd.f32 %v2926, %v2995
      %v3060 = vadd.f32 %v2927, %v2996
      %v3061 = vadd.f32 %v2928, %v2997
      %v3062 = vadd.f32 %v2929, %v2998
      %v3063 = vadd.f32 %v2930, %v2999
      %v3064 = vadd.f32 %v2931, %v3000
      %v3065 = vadd.f32 %v2932, %v3001
      %v3066 = vadd.f32 %v2933, %v3002
      %v3067 = vadd.f32 %v2934, %v3003
      %v3068 = vadd.f32 %v2935, %v3004
      %v3069 = vadd.f32 %v2936, %v3005
      %v3070 = vadd.f32 %v2937, %v3006
      %v3071 = vadd.f32 %v2938, %v3007
      %v3072 = vadd.f32 %v2939, %v3008
      %v3073 = vadd.f32 %v2940, %v3009
      %v3074 = vadd.f32 %v2941, %v3010
      %v3075 = vadd.f32 %v2942, %v3011
      %v3076 = vadd.f32 %v2943, %v3012
      %v3077 = vadd.f32 %v2944, %v3013
      %v3078 = vadd.f32 %v2945, %v3014
      %v3079 = vadd.f32 %v2946, %v3015
      %v3080 = vadd.f32 %v2947, %v3016
      %v3081 = vadd.f32 %v2948, %v3017
      %v3082 = vadd.f32 %v2949, %v3018
      %v3083 = vadd.f32 %v2950, %v3019
      %v3084 = vadd.f32 %v2951, %v3020
      %v3085 = vadd.f32 %v2952, %v3021
      %v3086 = vadd.f32 %v2953, %v3022
      %v3087 = vadd.f32 %v2954, %v3023
      %v3088 = vadd.f32 %v2955, %v3024
      %v3089 = vadd.f32 %v2956, %v3025
      %v3090 = vadd.f32 %v2957, %v3026
      %v3091 = vadd.f32 %v2958, %v3027
      %v3092 = vadd.f32 %v2959, %v3028
      %v3093 = vadd.f32 %v2960, %v3029
      %v3094 = vadd.f32 %v2961, %v3030
      %v3095 = vld [vmem:[#allocation2 + $0x220] sm:$0xff]
      %v3096 = vld [vmem:[#allocation2 + $0x228] sm:$0xff]
      %v3097 = vld [vmem:[#allocation2 + $0x230] sm:$0xff]
      %v3098 = vld [vmem:[%s6 + $0x7] sm:$0x1]
      %v3099 = vperm.slane %v3098, 0
      %v3100 = vmul.f32 %v2181, %v3099
      %v3101 = vmul.f32 %v2182, %v3099
      %v3102 = vmul.f32 %v2183, %v3099
      %v3103 = vmul.f32 %v2184, %v3099
      %v3104 = vmul.f32 %v2185, %v3099
      %v3105 = vmul.f32 %v2186, %v3099
      %v3106 = vmul.f32 %v2187, %v3099
      %v3107 = vmul.f32 %v2188, %v3099
      %v3108 = vmul.f32 %v2189, %v3099
      %v3109 = vmul.f32 %v2190, %v3099
      %v3110 = vmul.f32 %v2191, %v3099
      %v3111 = vmul.f32 %v2192, %v3099
      %v3112 = vmul.f32 %v2193, %v3099
      %v3113 = vmul.f32 %v2194, %v3099
      %v3114 = vmul.f32 %v2195, %v3099
      %v3115 = vmul.f32 %v2196, %v3099
      %v3116 = vmul.f32 %v2197, %v3099
      %v3117 = vmul.f32 %v2198, %v3099
      %v3118 = vmul.f32 %v2199, %v3099
      %v3119 = vmul.f32 %v2200, %v3099
      %v3120 = vmul.f32 %v2201, %v3099
      %v3121 = vmul.f32 %v2202, %v3099
      %v3122 = vmul.f32 %v2203, %v3099
      %v3123 = vmul.f32 %v2204, %v3099
      %v3124 = vmul.f32 %v2205, %v3099
      %v3125 = vmul.f32 %v2206, %v3099
      %v3126 = vmul.f32 %v2207, %v3099
      %v3127 = vmul.f32 %v2208, %v3099
      %v3128 = vmul.f32 %v2209, %v3099
      %v3129 = vmul.f32 %v2210, %v3099
      %v3130 = vmul.f32 %v2211, %v3099
      %v3131 = vmul.f32 %v2212, %v3099
      %v3132 = vmul.f32 %v2213, %v3099
      %v3133 = vmul.f32 %v2214, %v3099
      %v3134 = vmul.f32 %v2215, %v3099
      %v3135 = vmul.f32 %v2216, %v3099
      %v3136 = vmul.f32 %v2217, %v3099
      %v3137 = vmul.f32 %v2218, %v3099
      %v3138 = vmul.f32 %v2219, %v3099
      %v3139 = vmul.f32 %v2220, %v3099
      %v3140 = vmul.f32 %v2221, %v3099
      %v3141 = vmul.f32 %v2222, %v3099
      %v3142 = vmul.f32 %v2223, %v3099
      %v3143 = vmul.f32 %v2224, %v3099
      %v3144 = vmul.f32 %v2225, %v3099
      %v3145 = vmul.f32 %v2226, %v3099
      %v3146 = vmul.f32 %v2227, %v3099
      %v3147 = vmul.f32 %v2228, %v3099
      %v3148 = vmul.f32 %v2229, %v3099
      %v3149 = vmul.f32 %v2230, %v3099
      %v3150 = vmul.f32 %v2231, %v3099
      %v3151 = vmul.f32 %v2232, %v3099
      %v3152 = vmul.f32 %v2233, %v3099
      %v3153 = vmul.f32 %v2234, %v3099
      %v3154 = vmul.f32 %v2235, %v3099
      %v3155 = vmul.f32 %v2236, %v3099
      %v3156 = vmul.f32 %v2237, %v3099
      %v3157 = vmul.f32 %v2238, %v3099
      %v3158 = vmul.f32 %v2696, %v3099
      %v3159 = vmul.f32 %v2697, %v3099
      %v3160 = vmul.f32 %v2698, %v3099
      %v3161 = vmul.f32 %v3095, %v3099
      %v3162 = vmul.f32 %v3096, %v3099
      %v3163 = vmul.f32 %v3097, %v3099
      %v3164 = vadd.f32 %v3031, %v3100
      %v3165 = vadd.f32 %v3032, %v3101
      %v3166 = vadd.f32 %v3033, %v3102
      %v3167 = vadd.f32 %v3034, %v3103
      %v3168 = vadd.f32 %v3035, %v3104
      %v3169 = vadd.f32 %v3036, %v3105
      %v3170 = vadd.f32 %v3037, %v3106
      %v3171 = vadd.f32 %v3038, %v3107
      %v3172 = vadd.f32 %v3039, %v3108
      %v3173 = vadd.f32 %v3040, %v3109
      %v3174 = vadd.f32 %v3041, %v3110
      %v3175 = vadd.f32 %v3042, %v3111
      %v3176 = vadd.f32 %v3043, %v3112
      %v3177 = vadd.f32 %v3044, %v3113
      %v3178 = vadd.f32 %v3045, %v3114
      %v3179 = vadd.f32 %v3046, %v3115
      %v3180 = vadd.f32 %v3047, %v3116
      %v3181 = vadd.f32 %v3048, %v3117
      %v3182 = vadd.f32 %v3049, %v3118
      %v3183 = vadd.f32 %v3050, %v3119
      %v3184 = vadd.f32 %v3051, %v3120
      %v3185 = vadd.f32 %v3052, %v3121
      %v3186 = vadd.f32 %v3053, %v3122
      %v3187 = vadd.f32 %v3054, %v3123
      %v3188 = vadd.f32 %v3055, %v3124
      %v3189 = vadd.f32 %v3056, %v3125
      %v3190 = vadd.f32 %v3057, %v3126
      %v3191 = vadd.f32 %v3058, %v3127
      %v3192 = vadd.f32 %v3059, %v3128
      %v3193 = vadd.f32 %v3060, %v3129
      %v3194 = vadd.f32 %v3061, %v3130
      %v3195 = vadd.f32 %v3062, %v3131
      %v3196 = vadd.f32 %v3063, %v3132
      %v3197 = vadd.f32 %v3064, %v3133
      %v3198 = vadd.f32 %v3065, %v3134
      %v3199 = vadd.f32 %v3066, %v3135
      %v3200 = vadd.f32 %v3067, %v3136
      %v3201 = vadd.f32 %v3068, %v3137
      %v3202 = vadd.f32 %v3069, %v3138
      %v3203 = vadd.f32 %v3070, %v3139
      %v3204 = vadd.f32 %v3071, %v3140
      %v3205 = vadd.f32 %v3072, %v3141
      %v3206 = vadd.f32 %v3073, %v3142
      %v3207 = vadd.f32 %v3074, %v3143
      %v3208 = vadd.f32 %v3075, %v3144
      %v3209 = vadd.f32 %v3076, %v3145
      %v3210 = vadd.f32 %v3077, %v3146
      %v3211 = vadd.f32 %v3078, %v3147
      %v3212 = vadd.f32 %v3079, %v3148
      %v3213 = vadd.f32 %v3080, %v3149
      %v3214 = vadd.f32 %v3081, %v3150
      %v3215 = vadd.f32 %v3082, %v3151
      %v3216 = vadd.f32 %v3083, %v3152
      %v3217 = vadd.f32 %v3084, %v3153
      %v3218 = vadd.f32 %v3085, %v3154
      %v3219 = vadd.f32 %v3086, %v3155
      %v3220 = vadd.f32 %v3087, %v3156
      %v3221 = vadd.f32 %v3088, %v3157
      %v3222 = vadd.f32 %v3089, %v3158
      %v3223 = vadd.f32 %v3090, %v3159
      %v3224 = vadd.f32 %v3091, %v3160
      %v3225 = vadd.f32 %v3092, %v3161
      %v3226 = vadd.f32 %v3093, %v3162
      %v3227 = vadd.f32 %v3094, %v3163
      %v3228 = vld [vmem:[#allocation2 + $0x221] sm:$0xff]
      %v3229 = vld [vmem:[#allocation2 + $0x229] sm:$0xff]
      %v3230 = vld [vmem:[#allocation2 + $0x231] sm:$0xff]
      %v3231 = vld [vmem:[%s6 + $0x8] sm:$0x1]
      %v3232 = vperm.slane %v3231, 0
      %v3233 = vmul.f32 %v2375, %v3232
      %v3234 = vmul.f32 %v2376, %v3232
      %v3235 = vmul.f32 %v2377, %v3232
      %v3236 = vmul.f32 %v2378, %v3232
      %v3237 = vmul.f32 %v2379, %v3232
      %v3238 = vmul.f32 %v2380, %v3232
      %v3239 = vmul.f32 %v2381, %v3232
      %v3240 = vmul.f32 %v2382, %v3232
      %v3241 = vmul.f32 %v2383, %v3232
      %v3242 = vmul.f32 %v2384, %v3232
      %v3243 = vmul.f32 %v2385, %v3232
      %v3244 = vmul.f32 %v2386, %v3232
      %v3245 = vmul.f32 %v2387, %v3232
      %v3246 = vmul.f32 %v2388, %v3232
      %v3247 = vmul.f32 %v2389, %v3232
      %v3248 = vmul.f32 %v2390, %v3232
      %v3249 = vmul.f32 %v2391, %v3232
      %v3250 = vmul.f32 %v2392, %v3232
      %v3251 = vmul.f32 %v2393, %v3232
      %v3252 = vmul.f32 %v2394, %v3232
      %v3253 = vmul.f32 %v2395, %v3232
      %v3254 = vmul.f32 %v2396, %v3232
      %v3255 = vmul.f32 %v2397, %v3232
      %v3256 = vmul.f32 %v2398, %v3232
      %v3257 = vmul.f32 %v2399, %v3232
      %v3258 = vmul.f32 %v2400, %v3232
      %v3259 = vmul.f32 %v2401, %v3232
      %v3260 = vmul.f32 %v2402, %v3232
      %v3261 = vmul.f32 %v2403, %v3232
      %v3262 = vmul.f32 %v2404, %v3232
      %v3263 = vmul.f32 %v2405, %v3232
      %v3264 = vmul.f32 %v2406, %v3232
      %v3265 = vmul.f32 %v2407, %v3232
      %v3266 = vmul.f32 %v2408, %v3232
      %v3267 = vmul.f32 %v2409, %v3232
      %v3268 = vmul.f32 %v2410, %v3232
      %v3269 = vmul.f32 %v2411, %v3232
      %v3270 = vmul.f32 %v2412, %v3232
      %v3271 = vmul.f32 %v2413, %v3232
      %v3272 = vmul.f32 %v2414, %v3232
      %v3273 = vmul.f32 %v2415, %v3232
      %v3274 = vmul.f32 %v2416, %v3232
      %v3275 = vmul.f32 %v2417, %v3232
      %v3276 = vmul.f32 %v2418, %v3232
      %v3277 = vmul.f32 %v2419, %v3232
      %v3278 = vmul.f32 %v2420, %v3232
      %v3279 = vmul.f32 %v2421, %v3232
      %v3280 = vmul.f32 %v2422, %v3232
      %v3281 = vmul.f32 %v2423, %v3232
      %v3282 = vmul.f32 %v2424, %v3232
      %v3283 = vmul.f32 %v2425, %v3232
      %v3284 = vmul.f32 %v2426, %v3232
      %v3285 = vmul.f32 %v2427, %v3232
      %v3286 = vmul.f32 %v2428, %v3232
      %v3287 = vmul.f32 %v2429, %v3232
      %v3288 = vmul.f32 %v2430, %v3232
      %v3289 = vmul.f32 %v2431, %v3232
      %v3290 = vmul.f32 %v2432, %v3232
      %v3291 = vmul.f32 %v2829, %v3232
      %v3292 = vmul.f32 %v2830, %v3232
      %v3293 = vmul.f32 %v2831, %v3232
      %v3294 = vmul.f32 %v3228, %v3232
      %v3295 = vmul.f32 %v3229, %v3232
      %v3296 = vmul.f32 %v3230, %v3232
      %v3297 = vadd.f32 %v3164, %v3233
      %v3298 = vadd.f32 %v3165, %v3234
      %v3299 = vadd.f32 %v3166, %v3235
      %v3300 = vadd.f32 %v3167, %v3236
      %v3301 = vadd.f32 %v3168, %v3237
      %v3302 = vadd.f32 %v3169, %v3238
      %v3303 = vadd.f32 %v3170, %v3239
      %v3304 = vadd.f32 %v3171, %v3240
      %v3305 = vadd.f32 %v3172, %v3241
      %v3306 = vadd.f32 %v3173, %v3242
      %v3307 = vadd.f32 %v3174, %v3243
      %v3308 = vadd.f32 %v3175, %v3244
      %v3309 = vadd.f32 %v3176, %v3245
      %v3310 = vadd.f32 %v3177, %v3246
      %v3311 = vadd.f32 %v3178, %v3247
      %v3312 = vadd.f32 %v3179, %v3248
      %v3313 = vadd.f32 %v3180, %v3249
      %v3314 = vadd.f32 %v3181, %v3250
      %v3315 = vadd.f32 %v3182, %v3251
      %v3316 = vadd.f32 %v3183, %v3252
      %v3317 = vadd.f32 %v3184, %v3253
      %v3318 = vadd.f32 %v3185, %v3254
      %v3319 = vadd.f32 %v3186, %v3255
      %v3320 = vadd.f32 %v3187, %v3256
      %v3321 = vadd.f32 %v3188, %v3257
      %v3322 = vadd.f32 %v3189, %v3258
      %v3323 = vadd.f32 %v3190, %v3259
      %v3324 = vadd.f32 %v3191, %v3260
      %v3325 = vadd.f32 %v3192, %v3261
      %v3326 = vadd.f32 %v3193, %v3262
      %v3327 = vadd.f32 %v3194, %v3263
      %v3328 = vadd.f32 %v3195, %v3264
      %v3329 = vadd.f32 %v3196, %v3265
      %v3330 = vadd.f32 %v3197, %v3266
      %v3331 = vadd.f32 %v3198, %v3267
      %v3332 = vadd.f32 %v3199, %v3268
      %v3333 = vadd.f32 %v3200, %v3269
      %v3334 = vadd.f32 %v3201, %v3270
      %v3335 = vadd.f32 %v3202, %v3271
      %v3336 = vadd.f32 %v3203, %v3272
      %v3337 = vadd.f32 %v3204, %v3273
      %v3338 = vadd.f32 %v3205, %v3274
      %v3339 = vadd.f32 %v3206, %v3275
      %v3340 = vadd.f32 %v3207, %v3276
      %v3341 = vadd.f32 %v3208, %v3277
      %v3342 = vadd.f32 %v3209, %v3278
      %v3343 = vadd.f32 %v3210, %v3279
      %v3344 = vadd.f32 %v3211, %v3280
      %v3345 = vadd.f32 %v3212, %v3281
      %v3346 = vadd.f32 %v3213, %v3282
      %v3347 = vadd.f32 %v3214, %v3283
      %v3348 = vadd.f32 %v3215, %v3284
      %v3349 = vadd.f32 %v3216, %v3285
      %v3350 = vadd.f32 %v3217, %v3286
      %v3351 = vadd.f32 %v3218, %v3287
      %v3352 = vadd.f32 %v3219, %v3288
      %v3353 = vadd.f32 %v3220, %v3289
      %v3354 = vadd.f32 %v3221, %v3290
      %v3355 = vadd.f32 %v3222, %v3291
      %v3356 = vadd.f32 %v3223, %v3292
      %v3357 = vadd.f32 %v3224, %v3293
      %v3358 = vadd.f32 %v3225, %v3294
      %v3359 = vadd.f32 %v3226, %v3295
      %v3360 = vadd.f32 %v3227, %v3296
      %v3361 = vld [vmem:[%s7] sm:$0x1]
      %v3363 = vperm.slane %v3361, 0
      %v3365 = vadd.f32 %v3297, %v3363
      %v3366 = vadd.f32 %v3298, %v3363
      %v3367 = vadd.f32 %v3299, %v3363
      %v3368 = vadd.f32 %v3300, %v3363
      %v3369 = vadd.f32 %v3301, %v3363
      %v3370 = vadd.f32 %v3302, %v3363
      %v3371 = vadd.f32 %v3303, %v3363
      %v3372 = vadd.f32 %v3304, %v3363
      %v3373 = vadd.f32 %v3305, %v3363
      %v3374 = vadd.f32 %v3306, %v3363
      %v3375 = vadd.f32 %v3307, %v3363
      %v3376 = vadd.f32 %v3308, %v3363
      %v3377 = vadd.f32 %v3309, %v3363
      %v3378 = vadd.f32 %v3310, %v3363
      %v3379 = vadd.f32 %v3311, %v3363
      %v3380 = vadd.f32 %v3312, %v3363
      %v3381 = vadd.f32 %v3313, %v3363
      %v3382 = vadd.f32 %v3314, %v3363
      %v3383 = vadd.f32 %v3315, %v3363
      %v3384 = vadd.f32 %v3316, %v3363
      %v3385 = vadd.f32 %v3317, %v3363
      %v3386 = vadd.f32 %v3318, %v3363
      %v3387 = vadd.f32 %v3319, %v3363
      %v3388 = vadd.f32 %v3320, %v3363
      %v3389 = vadd.f32 %v3321, %v3363
      %v3390 = vadd.f32 %v3322, %v3363
      %v3391 = vadd.f32 %v3323, %v3363
      %v3392 = vadd.f32 %v3324, %v3363
      %v3393 = vadd.f32 %v3325, %v3363
      %v3394 = vadd.f32 %v3326, %v3363
      %v3395 = vadd.f32 %v3327, %v3363
      %v3396 = vadd.f32 %v3328, %v3363
      %v3397 = vadd.f32 %v3329, %v3363
      %v3398 = vadd.f32 %v3330, %v3363
      %v3399 = vadd.f32 %v3331, %v3363
      %v3400 = vadd.f32 %v3332, %v3363
      %v3401 = vadd.f32 %v3333, %v3363
      %v3402 = vadd.f32 %v3334, %v3363
      %v3403 = vadd.f32 %v3335, %v3363
      %v3404 = vadd.f32 %v3336, %v3363
      %v3405 = vadd.f32 %v3337, %v3363
      %v3406 = vadd.f32 %v3338, %v3363
      %v3407 = vadd.f32 %v3339, %v3363
      %v3408 = vadd.f32 %v3340, %v3363
      %v3409 = vadd.f32 %v3341, %v3363
      %v3410 = vadd.f32 %v3342, %v3363
      %v3411 = vadd.f32 %v3343, %v3363
      %v3412 = vadd.f32 %v3344, %v3363
      %v3413 = vadd.f32 %v3345, %v3363
      %v3414 = vadd.f32 %v3346, %v3363
      %v3415 = vadd.f32 %v3347, %v3363
      %v3416 = vadd.f32 %v3348, %v3363
      %v3417 = vadd.f32 %v3349, %v3363
      %v3418 = vadd.f32 %v3350, %v3363
      %v3419 = vadd.f32 %v3351, %v3363
      %v3420 = vadd.f32 %v3352, %v3363
      %v3421 = vadd.f32 %v3353, %v3363
      %v3422 = vadd.f32 %v3354, %v3363
      %v3423 = vadd.f32 %v3355, %v3363
      %v3424 = vadd.f32 %v3356, %v3363
      %v3425 = vadd.f32 %v3357, %v3363
      %v3426 = vadd.f32 %v3358, %v3363
      %v3427 = vadd.f32 %v3359, %v3363
      %v3428 = vadd.f32 %v3360, %v3363
      %v3429 = vmax.f32 %v3365, 0.0
      %v3430 = vmax.f32 %v3366, 0.0
      %v3431 = vmax.f32 %v3367, 0.0
      %v3432 = vmax.f32 %v3368, 0.0
      %v3433 = vmax.f32 %v3369, 0.0
      %v3434 = vmax.f32 %v3370, 0.0
      %v3435 = vmax.f32 %v3371, 0.0
      %v3436 = vmax.f32 %v3372, 0.0
      %v3437 = vmax.f32 %v3373, 0.0
      %v3438 = vmax.f32 %v3374, 0.0
      %v3439 = vmax.f32 %v3375, 0.0
      %v3440 = vmax.f32 %v3376, 0.0
      %v3441 = vmax.f32 %v3377, 0.0
      %v3442 = vmax.f32 %v3378, 0.0
      %v3443 = vmax.f32 %v3379, 0.0
      %v3444 = vmax.f32 %v3380, 0.0
      %v3445 = vmax.f32 %v3381, 0.0
      %v3446 = vmax.f32 %v3382, 0.0
      %v3447 = vmax.f32 %v3383, 0.0
      %v3448 = vmax.f32 %v3384, 0.0
      %v3449 = vmax.f32 %v3385, 0.0
      %v3450 = vmax.f32 %v3386, 0.0
      %v3451 = vmax.f32 %v3387, 0.0
      %v3452 = vmax.f32 %v3388, 0.0
      %v3453 = vmax.f32 %v3389, 0.0
      %v3454 = vmax.f32 %v3390, 0.0
      %v3455 = vmax.f32 %v3391, 0.0
      %v3456 = vmax.f32 %v3392, 0.0
      %v3457 = vmax.f32 %v3393, 0.0
      %v3458 = vmax.f32 %v3394, 0.0
      %v3459 = vmax.f32 %v3395, 0.0
      %v3460 = vmax.f32 %v3396, 0.0
      %v3461 = vmax.f32 %v3397, 0.0
      %v3462 = vmax.f32 %v3398, 0.0
      %v3463 = vmax.f32 %v3399, 0.0
      %v3464 = vmax.f32 %v3400, 0.0
      %v3465 = vmax.f32 %v3401, 0.0
      %v3466 = vmax.f32 %v3402, 0.0
      %v3467 = vmax.f32 %v3403, 0.0
      %v3468 = vmax.f32 %v3404, 0.0
      %v3469 = vmax.f32 %v3405, 0.0
      %v3470 = vmax.f32 %v3406, 0.0
      %v3471 = vmax.f32 %v3407, 0.0
      %v3472 = vmax.f32 %v3408, 0.0
      %v3473 = vmax.f32 %v3409, 0.0
      %v3474 = vmax.f32 %v3410, 0.0
      %v3475 = vmax.f32 %v3411, 0.0
      %v3476 = vmax.f32 %v3412, 0.0
      %v3477 = vmax.f32 %v3413, 0.0
      %v3478 = vmax.f32 %v3414, 0.0
      %v3479 = vmax.f32 %v3415, 0.0
      %v3480 = vmax.f32 %v3416, 0.0
      %v3481 = vmax.f32 %v3417, 0.0
      %v3482 = vmax.f32 %v3418, 0.0
      %v3483 = vmax.f32 %v3419, 0.0
      %v3484 = vmax.f32 %v3420, 0.0
      %v3485 = vmax.f32 %v3421, 0.0
      %v3486 = vmax.f32 %v3422, 0.0
      %v3487 = vmax.f32 %v3423, 0.0
      %v3488 = vmax.f32 %v3424, 0.0
      %v3489 = vmax.f32 %v3425, 0.0
      %v3490 = vmax.f32 %v3426, 0.0
      %v3491 = vmax.f32 %v3427, 0.0
      %v3492 = vmax.f32 %v3428, 0.0
      %v3493 = vmin.f32 %v3429, 6.0
      %v3494 = vmin.f32 %v3430, 6.0
      %v3495 = vmin.f32 %v3431, 6.0
      %v3496 = vmin.f32 %v3432, 6.0
      %v3497 = vmin.f32 %v3433, 6.0
      %v3498 = vmin.f32 %v3434, 6.0
      %v3499 = vmin.f32 %v3435, 6.0
      %v3500 = vmin.f32 %v3436, 6.0
      %v3501 = vmin.f32 %v3437, 6.0
      %v3502 = vmin.f32 %v3438, 6.0
      %v3503 = vmin.f32 %v3439, 6.0
      %v3504 = vmin.f32 %v3440, 6.0
      %v3505 = vmin.f32 %v3441, 6.0
      %v3506 = vmin.f32 %v3442, 6.0
      %v3507 = vmin.f32 %v3443, 6.0
      %v3508 = vmin.f32 %v3444, 6.0
      %v3509 = vmin.f32 %v3445, 6.0
      %v3510 = vmin.f32 %v3446, 6.0
      %v3511 = vmin.f32 %v3447, 6.0
      %v3512 = vmin.f32 %v3448, 6.0
      %v3513 = vmin.f32 %v3449, 6.0
      %v3514 = vmin.f32 %v3450, 6.0
      %v3515 = vmin.f32 %v3451, 6.0
      %v3516 = vmin.f32 %v3452, 6.0
      %v3517 = vmin.f32 %v3453, 6.0
      %v3518 = vmin.f32 %v3454, 6.0
      %v3519 = vmin.f32 %v3455, 6.0
      %v3520 = vmin.f32 %v3456, 6.0
      %v3521 = vmin.f32 %v3457, 6.0
      %v3522 = vmin.f32 %v3458, 6.0
      %v3523 = vmin.f32 %v3459, 6.0
      %v3524 = vmin.f32 %v3460, 6.0
      %v3525 = vmin.f32 %v3461, 6.0
      %v3526 = vmin.f32 %v3462, 6.0
      %v3527 = vmin.f32 %v3463, 6.0
      %v3528 = vmin.f32 %v3464, 6.0
      %v3529 = vmin.f32 %v3465, 6.0
      %v3530 = vmin.f32 %v3466, 6.0
      %v3531 = vmin.f32 %v3467, 6.0
      %v3532 = vmin.f32 %v3468, 6.0
      %v3533 = vmin.f32 %v3469, 6.0
      %v3534 = vmin.f32 %v3470, 6.0
      %v3535 = vmin.f32 %v3471, 6.0
      %v3536 = vmin.f32 %v3472, 6.0
      %v3537 = vmin.f32 %v3473, 6.0
      %v3538 = vmin.f32 %v3474, 6.0
      %v3539 = vmin.f32 %v3475, 6.0
      %v3540 = vmin.f32 %v3476, 6.0
      %v3541 = vmin.f32 %v3477, 6.0
      %v3542 = vmin.f32 %v3478, 6.0
      %v3543 = vmin.f32 %v3479, 6.0
      %v3544 = vmin.f32 %v3480, 6.0
      %v3545 = vmin.f32 %v3481, 6.0
      %v3546 = vmin.f32 %v3482, 6.0
      %v3547 = vmin.f32 %v3483, 6.0
      %v3548 = vmin.f32 %v3484, 6.0
      %v3549 = vmin.f32 %v3485, 6.0
      %v3550 = vmin.f32 %v3486, 6.0
      %v3551 = vmin.f32 %v3487, 6.0
      %v3552 = vmin.f32 %v3488, 6.0
      %v3553 = vmin.f32 %v3489, 6.0
      %v3554 = vmin.f32 %v3490, 6.0
      %v3555 = vmin.f32 %v3491, 6.0
      %v3556 = vmin.f32 %v3492, 6.0
      %v3557 = vld [vmem:[%s8] sm:$0xf]
      %v3558 = vpack.c.bf16 %v3494, %v3493
      %v3559 = vpack.c.bf16 %v3496, %v3495
      %v3560 = vpack.c.bf16 %v3498, %v3497
      %v3561 = vpack.c.bf16 %v3500, %v3499
      %v3562 = vpack.c.bf16 %v3502, %v3501
      %v3563 = vpack.c.bf16 %v3504, %v3503
      %v3564 = vpack.c.bf16 %v3506, %v3505
      %v3565 = vpack.c.bf16 %v3508, %v3507
      %v3566 = vpack.c.bf16 %v3510, %v3509
      %v3567 = vpack.c.bf16 %v3512, %v3511
      %v3568 = vpack.c.bf16 %v3514, %v3513
      %v3569 = vpack.c.bf16 %v3516, %v3515
      %v3570 = vpack.c.bf16 %v3518, %v3517
      %v3571 = vpack.c.bf16 %v3520, %v3519
      %v3572 = vpack.c.bf16 %v3522, %v3521
      %v3573 = vpack.c.bf16 %v3524, %v3523
      %v3574 = vpack.c.bf16 %v3526, %v3525
      %v3575 = vpack.c.bf16 %v3528, %v3527
      %v3576 = vpack.c.bf16 %v3530, %v3529
      %v3577 = vpack.c.bf16 %v3532, %v3531
      %v3578 = vpack.c.bf16 %v3534, %v3533
      %v3579 = vpack.c.bf16 %v3536, %v3535
      %v3580 = vpack.c.bf16 %v3538, %v3537
      %v3581 = vpack.c.bf16 %v3540, %v3539
      %v3582 = vpack.c.bf16 %v3542, %v3541
      %v3583 = vpack.c.bf16 %v3544, %v3543
      %v3584 = vpack.c.bf16 %v3546, %v3545
      %v3585 = vpack.c.bf16 %v3548, %v3547
      %v3586 = vpack.c.bf16 %v3550, %v3549
      %v3587 = vpack.c.bf16 %v3552, %v3551
      %v3588 = vpack.c.bf16 %v3554, %v3553
      %v3589 = vpack.c.bf16 %v3556, %v3555
      %v3590 = vld [vmem:[%s9] sm:$0xf]
      %3591 = vmatpush.bf16.xpose.msra.mxu0 %v1071
      %3592 = vmatpush.bf16.xpose.msra.mxu0 %v1070
      %3593 = vmatpush.bf16.xpose.msra.mxu0 %v1069
      %3594 = vmatpush.bf16.xpose.msra.mxu0 %v1068
      %3595 = vmatpush.bf16.xpose.msra.mxu0 %v1067
      %3596 = vmatpush.bf16.xpose.msra.mxu0 %v1066
      %3597 = vmatpush.bf16.xpose.msra.mxu0 %v1065
      %3598 = vmatpush.bf16.xpose.msra.mxu0 %v1064
      %3599 = vmatmul.bf16.gmra.mxu0 %v3590
      %v3600 = vpop.f32.mrf.mxu0
      %v3601 = vadd.f32 0.0, %v3600
      %v3602 = vpop.f32.mrf.mxu0
      %3603 = vdwg.mxu0
      %3604 = vmatpush.bf16.xpose.msra.mxu0 %v1079
      %3605 = vmatpush.bf16.xpose.msra.mxu0 %v1078
      %3606 = vmatpush.bf16.xpose.msra.mxu0 %v1077
      %3607 = vmatpush.bf16.xpose.msra.mxu0 %v1076
      %3608 = vmatpush.bf16.xpose.msra.mxu0 %v1075
      %3609 = vmatpush.bf16.xpose.msra.mxu0 %v1074
      %3610 = vmatpush.bf16.xpose.msra.mxu0 %v1073
      %3611 = vmatpush.bf16.xpose.msra.mxu0 %v1072
      %3612 = vmatmul.bf16.gmra.mxu0 %v3590
      %v3613 = vpop.f32.mrf.mxu0
      %v3614 = vadd.f32 0.0, %v3613
      %v3615 = vpop.f32.mrf.mxu0
      %3616 = vdwg.mxu0
      %3617 = vmatpush.bf16.xpose.msra.mxu0 %v1087
      %3618 = vmatpush.bf16.xpose.msra.mxu0 %v1086
      %3619 = vmatpush.bf16.xpose.msra.mxu0 %v1085
      %3620 = vmatpush.bf16.xpose.msra.mxu0 %v1084
      %3621 = vmatpush.bf16.xpose.msra.mxu0 %v1083
      %3622 = vmatpush.bf16.xpose.msra.mxu0 %v1082
      %3623 = vmatpush.bf16.xpose.msra.mxu0 %v1081
      %3624 = vmatpush.bf16.xpose.msra.mxu0 %v1080
      %3625 = vmatmul.bf16.gmra.mxu0 %v3590
      %v3626 = vpop.f32.mrf.mxu0
      %v3627 = vadd.f32 0.0, %v3626
      %v3628 = vpop.f32.mrf.mxu0
      %3629 = vdwg.mxu0
      %3630 = vmatpush.bf16.xpose.msra.mxu0 %v1095
      %3631 = vmatpush.bf16.xpose.msra.mxu0 %v1094
      %3632 = vmatpush.bf16.xpose.msra.mxu0 %v1093
      %3633 = vmatpush.bf16.xpose.msra.mxu0 %v1092
      %3634 = vmatpush.bf16.xpose.msra.mxu0 %v1091
      %3635 = vmatpush.bf16.xpose.msra.mxu0 %v1090
      %3636 = vmatpush.bf16.xpose.msra.mxu0 %v1089
      %3637 = vmatpush.bf16.xpose.msra.mxu0 %v1088
      %3638 = vmatmul.bf16.gmra.mxu0 %v3590
      %v3639 = vpop.f32.mrf.mxu0
      %v3640 = vadd.f32 0.0, %v3639
      %v3641 = vpop.f32.mrf.mxu0
      %3642 = vdwg.mxu0
      %3643 = vmatpush.bf16.xpose.msra.mxu0 %v3565
      %3644 = vmatpush.bf16.xpose.msra.mxu0 %v3564
      %3645 = vmatpush.bf16.xpose.msra.mxu0 %v3563
      %3646 = vmatpush.bf16.xpose.msra.mxu0 %v3562
      %3647 = vmatpush.bf16.xpose.msra.mxu0 %v3561
      %3648 = vmatpush.bf16.xpose.msra.mxu0 %v3560
      %3649 = vmatpush.bf16.xpose.msra.mxu0 %v3559
      %3650 = vmatpush.bf16.xpose.msra.mxu0 %v3558
      %3651 = vmatmul.bf16.gmra.mxu0 %v3557
      %v3652 = vpop.f32.mrf.mxu0
      %v3653 = vadd.f32 %v3601, %v3652
      %v3654 = vpop.f32.mrf.mxu0
      %3655 = vdwg.mxu0
      %3656 = vmatpush.bf16.xpose.msra.mxu0 %v3573
      %3657 = vmatpush.bf16.xpose.msra.mxu0 %v3572
      %3658 = vmatpush.bf16.xpose.msra.mxu0 %v3571
      %3659 = vmatpush.bf16.xpose.msra.mxu0 %v3570
      %3660 = vmatpush.bf16.xpose.msra.mxu0 %v3569
      %3661 = vmatpush.bf16.xpose.msra.mxu0 %v3568
      %3662 = vmatpush.bf16.xpose.msra.mxu0 %v3567
      %3663 = vmatpush.bf16.xpose.msra.mxu0 %v3566
      %3664 = vmatmul.bf16.gmra.mxu0 %v3557
      %v3665 = vpop.f32.mrf.mxu0
      %v3666 = vadd.f32 %v3614, %v3665
      %v3667 = vpop.f32.mrf.mxu0
      %3668 = vdwg.mxu0
      %3669 = vmatpush.bf16.xpose.msra.mxu0 %v3581
      %3670 = vmatpush.bf16.xpose.msra.mxu0 %v3580
      %3671 = vmatpush.bf16.xpose.msra.mxu0 %v3579
      %3672 = vmatpush.bf16.xpose.msra.mxu0 %v3578
      %3673 = vmatpush.bf16.xpose.msra.mxu0 %v3577
      %3674 = vmatpush.bf16.xpose.msra.mxu0 %v3576
      %3675 = vmatpush.bf16.xpose.msra.mxu0 %v3575
      %3676 = vmatpush.bf16.xpose.msra.mxu0 %v3574
      %3677 = vmatmul.bf16.gmra.mxu0 %v3557
      %v3678 = vpop.f32.mrf.mxu0
      %v3679 = vadd.f32 %v3627, %v3678
      %v3680 = vpop.f32.mrf.mxu0
      %3681 = vdwg.mxu0
      %3682 = vmatpush.bf16.xpose.msra.mxu0 %v3589
      %3683 = vmatpush.bf16.xpose.msra.mxu0 %v3588
      %3684 = vmatpush.bf16.xpose.msra.mxu0 %v3587
      %3685 = vmatpush.bf16.xpose.msra.mxu0 %v3586
      %3686 = vmatpush.bf16.xpose.msra.mxu0 %v3585
      %3687 = vmatpush.bf16.xpose.msra.mxu0 %v3584
      %3688 = vmatpush.bf16.xpose.msra.mxu0 %v3583
      %3689 = vmatpush.bf16.xpose.msra.mxu0 %v3582
      %3690 = vmatmul.bf16.gmra.mxu0 %v3557
      %v3691 = vpop.f32.mrf.mxu0
      %v3692 = vadd.f32 %v3640, %v3691
      %v3693 = vpop.f32.mrf.mxu0
      %3694 = vdwg.mxu0
      %v3695 = vld [vmem:[#allocation3] sm:$0x1]
      %3697 = vset.pattern.permute.xlu0 0
      %3698 = vperm.xlu0 %3697, %v3695
      %v3699 = vpop.permute.xlu0 %3698
      %v3701 = vperm.slane %v3699, 0
      %v3702 = vadd.f32 %v3653, %v3701
      %v3703 = vadd.f32 %v3666, %v3701
      %v3704 = vadd.f32 %v3679, %v3701
      %v3705 = vadd.f32 %v3692, %v3701
      %v3710 = vrot.slane %v3703, 7
      %v3711 = vrot.slane %v3704, 6
      %v3712 = vrot.slane %v3705, 5
      %vm3713 = vcmask 1040384
      %v3714 = vsel %vm3713, %v3702, %v3710
      %vm3715 = vcmask 1042434
      %v3716 = vsel %vm3715, %v3711, %v3712
      %vm3717 = vcmask 1041408
      %v3718 = vsel %vm3717, %v3714, %v3716
      %v3720 = vlaneseq
      %vm3721 = vcmp.ge.s32.totalorder %v3720, 0
      %vm3722 = vcmp.lt.s32.totalorder %v3720, 512
      %vm3723 = vmand %vm3721, %vm3722
      %3724 = vst.msk [vmem:[%s442] sm:$0xf] %vm3723, %v3718
      %p3725 = scmp.lt.s32.totalorder %s28, 1
      %s3726 = scalar_select %p3725, %s28, 1
      %p3727 = scmp.lt.s32.totalorder %s29, 0
      %s3728 = scalar_select %p3727, %s29, 0
      %s3729 = smul.addr %s3728, 4
      %s3730 = smul.addr %s3726, 4
      %s3731 = sadd.s32 %s3729, %s3730
      %s3732 = scalar_lea.vmem %s11, %s3731
      // Predicated region
      $region65: #{wrapper_forward.1} parent=63 // pred_check
        %p3733 = pneg %p299
      $region66: #{wrapper_forward.1} parent=63 // pred_check_branch
        %3735 = sbr.rel (%p3733) target = $region68
      $region67: #{wrapper_forward.1} parent=63 // pred_region
        _
      $region68: #{wrapper_forward.1} parent=63 // pred_fallthru
        _
    $region64: #{wrapper_forward.1} parent=5 // pred_fallthru
      _
    %p3736 = scmp.le.s32.totalorder 2, %s19
    // Predicated region
    $region69: #{wrapper_forward.1} parent=5 // pred_check
      %p3737 = pneg %p3736
    $region70: #{wrapper_forward.1} parent=5 // pred_check_branch
      %3739 = sbr.rel (%p3737) target = $region72
    $region71: #{wrapper_forward.1} parent=5 // pred_region
      %s3740 = ssub.s32 %s19, 2
      // Predicated region
      $region73: #{wrapper_forward.1} parent=71 // pred_check
        %p3741 = pneg %p305
      $region74: #{wrapper_forward.1} parent=71 // pred_check_branch
        %3743 = sbr.rel (%p3741) target = $region76
      $region75: #{wrapper_forward.1} parent=71 // pred_region
        %p3744 = scmp.lt.s32.totalorder %s30, 1
        %s3745 = scalar_select %p3744, %s30, 1
        %p3746 = scmp.lt.s32.totalorder %s31, 0
        %s3747 = scalar_select %p3746, %s31, 0
        %s3748 = smul.addr %s3747, 4
        %s3749 = smul.addr %s3745, 4
        %s3750 = sadd.s32 %s3748, %s3749
        %s3751 = scalar_lea.vmem %s11, %s3750
      $region76: #{wrapper_forward.1} parent=71 // pred_fallthru
        _
    $region72: #{wrapper_forward.1} parent=5 // pred_fallthru
      _
  $region6: #{wrapper_forward.1} parent=0 // loop_footer
    %s23 = sadd.s32 1, %s19
  $region7: #{wrapper_forward.1} parent=0 // loop_footer_branch
    %18 = sbr.rel target = $region3
  $region8: #{wrapper_forward.1} parent=0 // loop_exit
    _

</llo_original>
